<compile_context>
chip_gen: v7x
topology: tpu7x:2x2x1
jax: 0.10.0
libtpu: 0.0.40
codegen_flags: <defaults>
</compile_context>

<pallas_src>
import jax
import jax.numpy as jnp
from jax.experimental import pallas as pl
from jax.experimental.pallas import tpu as pltpu

HIDDEN = 400        # model hidden width (as in the PyTorch spec)
HIDDEN_PAD = 512    # lane/MXU-aligned padded width (extra slots are zero)


# ----------------------------- Pallas kernel --------------------------------
def _rescvae_kernel(x_ref, yaug_ref, eps_ref,
                    w1x_ref, w1yb_ref,
                    wml_ref, bml_ref,
                    wd1z_ref, wd1yb_ref,
                    wd2_ref, bd2_ref,
                    xrec_ref, ml_ref):
    f32 = jnp.float32
    bf16 = jnp.bfloat16

    x = x_ref[...].astype(bf16)          # f32 tile read from HBM, cast in VMEM
    yaug = yaug_ref[...].astype(bf16)    # [y | 1], reused enc + dec

    # ---- encoder fc1: h = relu(x @ W1x + [y|1] @ [W1y; b1]) ----
    h = (jnp.dot(x, w1x_ref[...], preferred_element_type=f32)
         + jnp.dot(yaug, w1yb_ref[...], preferred_element_type=f32))
    h = jnp.maximum(h, 0.0)                                   # ReLU

    # ---- fused, lane-padded mu|logvar projection (f32 bias) ----
    ml = (jnp.dot(h.astype(bf16), wml_ref[...], preferred_element_type=f32)
          + bml_ref[...])
    ml_ref[...] = ml                      # single lane-dense 128-wide store

    latent = eps_ref.shape[1]
    mu = ml[:, :latent]
    logvar = ml[:, latent:2 * latent]

    # ---- reparameterize: z = mu + eps * exp(0.5 * logvar) ----
    z = mu + eps_ref[...] * jnp.exp(0.5 * logvar)

    # ---- decoder fc1: hd = elu(z @ Wd1z + [y|1] @ [Wd1y; bd1]) ----
    hd = (jnp.dot(z.astype(bf16), wd1z_ref[...], preferred_element_type=f32)
          + jnp.dot(yaug, wd1yb_ref[...], preferred_element_type=f32))
    hd = jnp.where(hd > 0.0, hd, jnp.exp(jnp.minimum(hd, 0.0)) - 1.0)  # ELU(1)

    logits = (jnp.dot(hd.astype(bf16), wd2_ref[...], preferred_element_type=f32)
              + bd2_ref[...])
    # sigmoid via one EUP tanh; exact and stays in [0, 1].
    xrec_ref[...] = 0.5 * jnp.tanh(0.5 * logits) + 0.5


# --------------------------------- wrapper -----------------------------------
def rescvae_forward(x, y_soft, eps, packed):
    """x: [B, C, H, W] f32, y_soft: [B, cond] f32, eps: [B, latent] f32."""
    (w1x, w1yb, wml, bml, wd1z, wd1yb, wd2, bd2) = packed
    B = x.shape[0]
    in_dim = w1x.shape[0]
    cond1 = w1yb.shape[0]                 # cond + 1 (ones column carries b1/bd1)
    latent = wd1z.shape[0]
    ml_pad = wml.shape[1]                 # lane-padded 2*latent (>=128)
    out_dim = wd2.shape[1]

    # ---- batch padding + tiling: TB rows per grid step ----
    TB = 256
    Bp = ((B + 7) // 8) * 8               # pad batch to 8 sublanes
    if Bp <= TB:
        TB = Bp
    else:
        Bp = ((Bp + TB - 1) // TB) * TB
    grid = (Bp // TB,)

    pad = ((0, Bp - B), (0, 0))
    x_flat = jnp.pad(x.reshape(B, -1), pad)                       # f32 (cast in-kernel)
    y_aug = jnp.pad(jnp.concatenate(
        [y_soft, jnp.ones((B, 1), y_soft.dtype)], axis=1), pad)   # [y | 1], f32
    epsb = jnp.pad(eps, pad)                                      # f32

    row = lambda i: (i, 0)      # batch-tiled operands
    rep = lambda i: (0, 0)      # weights: constant block -> VMEM-resident

    in_specs = [
        pl.BlockSpec((TB, in_dim), row),
        pl.BlockSpec((TB, cond1), row),
        pl.BlockSpec((TB, latent), row),
        pl.BlockSpec(w1x.shape, rep),
        pl.BlockSpec(w1yb.shape, rep),
        pl.BlockSpec(wml.shape, rep),
        pl.BlockSpec(bml.shape, rep),
        pl.BlockSpec(wd1z.shape, rep),
        pl.BlockSpec(wd1yb.shape, rep),
        pl.BlockSpec(wd2.shape, rep),
        pl.BlockSpec(bd2.shape, rep),
    ]
    out_specs = (pl.BlockSpec((TB, out_dim), row),
                 pl.BlockSpec((TB, ml_pad), row))
    out_shapes = (jax.ShapeDtypeStruct((Bp, out_dim), jnp.float32),   # x_recon
                  jax.ShapeDtypeStruct((Bp, ml_pad), jnp.float32))    # mu|logvar

    args = (x_flat, y_aug, epsb, w1x, w1yb, wml, bml, wd1z, wd1yb, wd2, bd2)
    flops = 2 * Bp * (in_dim * HIDDEN_PAD + cond1 * HIDDEN_PAD
                      + HIDDEN_PAD * ml_pad
                      + latent * HIDDEN_PAD + cond1 * HIDDEN_PAD
                      + HIDDEN_PAD * out_dim)
    transcendentals = Bp * (latent + HIDDEN_PAD + out_dim)
    bytes_accessed = (sum(int(a.size) * a.dtype.itemsize for a in args)
                      + Bp * (out_dim + ml_pad) * 4)

    xrec, ml = pl.pallas_call(
        _rescvae_kernel,
        out_shape=out_shapes,
        grid=grid,
        in_specs=in_specs,
        out_specs=out_specs,
        compiler_params=pltpu.CompilerParams(
            dimension_semantics=("parallel",)),
        cost_estimate=pl.CostEstimate(flops=flops,
                                      transcendentals=transcendentals,
                                      bytes_accessed=bytes_accessed),
    )(*args)

    # slice off padded batch rows / padded lanes before anything downstream
    return xrec[:B], ml[:B, :latent], ml[:B, latent:2 * latent]


# ------------------------ deterministic parameter init ----------------------
def init_params(key, input_dim, latent_dim, output_dim, cond):
    """PyTorch nn.Linear-style U(-1/sqrt(fan_in), .) init; weights stored [in, out]."""
    def linear(k, fan_in, fan_out):
        kw, kb = jax.random.split(k)
        lim = 1.0 / jnp.sqrt(fan_in)
        w = jax.random.uniform(kw, (fan_in, fan_out), jnp.float32, -lim, lim)
        b = jax.random.uniform(kb, (1, fan_out), jnp.float32, -lim, lim)
        return w, b

    k1, k2, k3, k4, k5 = jax.random.split(key, 5)
    w1, b1 = linear(k1, input_dim + cond, HIDDEN)      # enc fc1
    wmu, bmu = linear(k2, HIDDEN, latent_dim)          # enc fc2_mu
    wlv, blv = linear(k3, HIDDEN, latent_dim)          # enc fc2_logvar
    wd1, bd1 = linear(k4, latent_dim + cond, HIDDEN)   # dec fc1
    wd2, bd2 = linear(k5, HIDDEN, output_dim)          # dec fc2
    return dict(w1=w1, b1=b1, wmu=wmu, bmu=bmu, wlv=wlv, blv=blv,
                wd1=wd1, bd1=bd1, wd2=wd2, bd2=bd2)


def pack_params(p, input_dim, latent_dim):
    """Split concats, fold b1/bd1 into the [y|1] matmuls, fuse + lane-pad
    mu|logvar, zero-pad hidden 400->512, cast weights to bf16 (biases f32).
    All padding is exact (zero rows/cols, relu(0)=elu(0)=0)."""
    hp = HIDDEN_PAD - HIDDEN
    bf16 = jnp.bfloat16
    ml_pad = max(128, ((2 * latent_dim + 127) // 128) * 128)

    w1x = jnp.pad(p["w1"][:input_dim], ((0, 0), (0, hp))).astype(bf16)
    w1yb = jnp.pad(jnp.concatenate([p["w1"][input_dim:], p["b1"]], axis=0),
                   ((0, 0), (0, hp))).astype(bf16)          # (cond+1, HID_PAD)

    wml = jnp.concatenate([p["wmu"], p["wlv"]], axis=1)     # (HIDDEN, 2*latent)
    wml = jnp.pad(wml, ((0, hp), (0, ml_pad - 2 * latent_dim))).astype(bf16)
    bml = jnp.pad(jnp.concatenate([p["bmu"], p["blv"]], axis=1),
                  ((0, 0), (0, ml_pad - 2 * latent_dim)))    # f32 (1, ml_pad)

    wd1z = jnp.pad(p["wd1"][:latent_dim], ((0, 0), (0, hp))).astype(bf16)
    wd1yb = jnp.pad(jnp.concatenate([p["wd1"][latent_dim:], p["bd1"]], axis=0),
                    ((0, 0), (0, hp))).astype(bf16)          # (cond+1, HID_PAD)

    wd2 = jnp.pad(p["wd2"], ((0, hp), (0, 0))).astype(bf16)
    bd2 = p["bd2"]                                           # f32 (1, out_dim)
    return (w1x, w1yb, wml, bml, wd1z, wd1yb, wd2, bd2)


# ----------------------------- pure-JAX reference ---------------------------
def reference_forward(x, y_soft, eps, packed):
    """Mirrors the kernel's mixed precision (bf16 operands, f32 accumulation)."""
    (w1x, w1yb, wml, bml, wd1z, wd1yb, wd2, bd2) = packed
    f32, bf16 = jnp.float32, jnp.bfloat16
    B = x.shape[0]
    latent = wd1z.shape[0]
    xf = x.reshape(B, -1).astype(bf16)
    yaug = jnp.concatenate([y_soft, jnp.ones((B, 1), y_soft.dtype)],
                           axis=1).astype(bf16)
    h = (jnp.dot(xf, w1x, preferred_element_type=f32)
         + jnp.dot(yaug, w1yb, preferred_element_type=f32))
    h = jnp.maximum(h, 0.0)
    ml = jnp.dot(h.astype(bf16), wml, preferred_element_type=f32) + bml
    mu, logvar = ml[:, :latent], ml[:, latent:2 * latent]
    z = mu + eps * jnp.exp(0.5 * logvar)
    hd = (jnp.dot(z.astype(bf16), wd1z, preferred_element_type=f32)
          + jnp.dot(yaug, wd1yb, preferred_element_type=f32))
    hd = jnp.where(hd > 0.0, hd, jnp.exp(jnp.minimum(hd, 0.0)) - 1.0)
    logits = jnp.dot(hd.astype(bf16), wd2, preferred_element_type=f32) + bd2
    return jax.nn.sigmoid(logits), mu, logvar


# ----------------------------------- main ------------------------------------
if __name__ == "__main__":
    B, C, H, W = 2, 4, 16, 16
    input_dim = C * H * W          # 1024 (128-aligned contraction)
    latent_dim = 32
    output_dim = input_dim
    cond = 8

    key = jax.random.PRNGKey(0)
    kx, ky, keps, kp = jax.random.split(key, 4)

    x = jax.random.normal(kx, (B, C, H, W), jnp.float32)
    y_soft = jax.nn.softmax(jax.random.normal(ky, (B, cond), jnp.float32), axis=-1)
    # eps passed explicitly so the kernel is deterministic / checkable
    # (torch.randn_like in reparameterize).
    eps = jax.random.normal(keps, (B, latent_dim), jnp.float32)

    params = init_params(kp, input_dim, latent_dim, output_dim, cond)
    packed = pack_params(params, input_dim, latent_dim)

    x_recon, mu, logvar = jax.block_until_ready(
        rescvae_forward(x, y_soft, eps, packed))

    xr_ref, mu_ref, lv_ref = reference_forward(x, y_soft, eps, packed)

    assert x_recon.shape == (B, output_dim)
    assert mu.shape == (B, latent_dim) and logvar.shape == (B, latent_dim)
    assert jnp.all(jnp.isfinite(x_recon))
    assert jnp.all((x_recon >= 0.0) & (x_recon <= 1.0))
    assert jnp.allclose(mu, mu_ref, atol=5e-3, rtol=5e-3)
    assert jnp.allclose(logvar, lv_ref, atol=5e-3, rtol=5e-3)
    assert jnp.allclose(x_recon, xr_ref, atol=1e-2, rtol=1e-2)

    print("KERNEL_OK")
</pallas_src>

<mosaic_0001>
module attributes {stable_mosaic.version = 11 : i64} {
  func.func @_rescvae_kernel(%arg0: i32, %arg1: memref<8x1024xf32, #tpu.memory_space<vmem>>, %arg2: memref<8x9xf32, #tpu.memory_space<vmem>>, %arg3: memref<8x32xf32, #tpu.memory_space<vmem>>, %arg4: memref<1024x512xbf16, #tpu.memory_space<vmem>>, %arg5: memref<9x512xbf16, #tpu.memory_space<vmem>>, %arg6: memref<512x128xbf16, #tpu.memory_space<vmem>>, %arg7: memref<1x128xf32, #tpu.memory_space<vmem>>, %arg8: memref<32x512xbf16, #tpu.memory_space<vmem>>, %arg9: memref<9x512xbf16, #tpu.memory_space<vmem>>, %arg10: memref<512x1024xbf16, #tpu.memory_space<vmem>>, %arg11: memref<1x1024xf32, #tpu.memory_space<vmem>>, %arg12: memref<8x1024xf32, #tpu.memory_space<vmem>>, %arg13: memref<8x128xf32, #tpu.memory_space<vmem>>) attributes {dimension_semantics = [#tpu.dimension_semantics<parallel>], iteration_bounds = array<i64: 1>, scalar_prefetch = 0 : i64, scratch_operands = 0 : i64, tpu.core_type = #tpu.core_type<tc>, window_params = [{transform_indices = @transform_0, window_bounds = array<i64: 8, 1024>}, {transform_indices = @transform_1, window_bounds = array<i64: 8, 9>}, {transform_indices = @transform_2, window_bounds = array<i64: 8, 32>}, {pipeline_mode = #tpu.pipeline_mode<synchronous>, transform_indices = @transform_3, window_bounds = array<i64: 1024, 512>}, {pipeline_mode = #tpu.pipeline_mode<synchronous>, transform_indices = @transform_4, window_bounds = array<i64: 9, 512>}, {pipeline_mode = #tpu.pipeline_mode<synchronous>, transform_indices = @transform_5, window_bounds = array<i64: 512, 128>}, {pipeline_mode = #tpu.pipeline_mode<synchronous>, transform_indices = @transform_6, window_bounds = array<i64: 1, 128>}, {pipeline_mode = #tpu.pipeline_mode<synchronous>, transform_indices = @transform_7, window_bounds = array<i64: 32, 512>}, {pipeline_mode = #tpu.pipeline_mode<synchronous>, transform_indices = @transform_8, window_bounds = array<i64: 9, 512>}, {pipeline_mode = #tpu.pipeline_mode<synchronous>, transform_indices = @transform_9, window_bounds = array<i64: 512, 1024>}, {pipeline_mode = #tpu.pipeline_mode<synchronous>, transform_indices = @transform_10, window_bounds = array<i64: 1, 1024>}, {transform_indices = @transform_11, window_bounds = array<i64: 8, 1024>}, {transform_indices = @transform_12, window_bounds = array<i64: 8, 128>}]} {
    %c0 = arith.constant 0 : index
    %c0_0 = arith.constant 0 : index
    %0 = vector.load %arg1[%c0, %c0_0] : memref<8x1024xf32, #tpu.memory_space<vmem>>, vector<8x1024xf32>
    %1 = arith.truncf %0 : vector<8x1024xf32> to vector<8x1024xbf16>
    %c0_1 = arith.constant 0 : index
    %c0_2 = arith.constant 0 : index
    %2 = vector.load %arg2[%c0_1, %c0_2] : memref<8x9xf32, #tpu.memory_space<vmem>>, vector<8x9xf32>
    %3 = arith.truncf %2 : vector<8x9xf32> to vector<8x9xbf16>
    %c0_3 = arith.constant 0 : index
    %c0_4 = arith.constant 0 : index
    %4 = vector.load %arg4[%c0_3, %c0_4] : memref<1024x512xbf16, #tpu.memory_space<vmem>>, vector<1024x512xbf16>
    %cst = arith.constant dense<0.000000e+00> : vector<8x512xf32>
    %5 = tpu.matmul %1, %4, %cst {dimension_numbers = #tpu.dot_dimension_numbers<[1], [0], [0], [1], [0, 0, 1, 1], [], []>} : vector<8x1024xbf16>, vector<1024x512xbf16>, vector<8x512xf32> -> vector<8x512xf32>
    %c0_5 = arith.constant 0 : index
    %c0_6 = arith.constant 0 : index
    %6 = vector.load %arg5[%c0_5, %c0_6] : memref<9x512xbf16, #tpu.memory_space<vmem>>, vector<9x512xbf16>
    %cst_7 = arith.constant dense<0.000000e+00> : vector<8x512xf32>
    %7 = tpu.matmul %3, %6, %cst_7 {dimension_numbers = #tpu.dot_dimension_numbers<[1], [0], [0], [1], [0, 0, 1, 1], [], []>} : vector<8x9xbf16>, vector<9x512xbf16>, vector<8x512xf32> -> vector<8x512xf32>
    %8 = arith.addf %5, %7 : vector<8x512xf32>
    %cst_8 = arith.constant 0.000000e+00 : f32
    %9 = vector.broadcast %cst_8 : f32 to vector<8x512xf32>
    %10 = arith.maximumf %8, %9 : vector<8x512xf32>
    %11 = arith.truncf %10 : vector<8x512xf32> to vector<8x512xbf16>
    %c0_9 = arith.constant 0 : index
    %c0_10 = arith.constant 0 : index
    %12 = vector.load %arg6[%c0_9, %c0_10] : memref<512x128xbf16, #tpu.memory_space<vmem>>, vector<512x128xbf16>
    %cst_11 = arith.constant dense<0.000000e+00> : vector<8x128xf32>
    %13 = tpu.matmul %11, %12, %cst_11 {dimension_numbers = #tpu.dot_dimension_numbers<[1], [0], [0], [1], [0, 0, 1, 1], [], []>} : vector<8x512xbf16>, vector<512x128xbf16>, vector<8x128xf32> -> vector<8x128xf32>
    %c0_12 = arith.constant 0 : index
    %c0_13 = arith.constant 0 : index
    %14 = vector.load %arg7[%c0_12, %c0_13] : memref<1x128xf32, #tpu.memory_space<vmem>>, vector<1x128xf32>
    %15 = vector.broadcast %14 : vector<1x128xf32> to vector<8x128xf32>
    %16 = arith.addf %13, %15 : vector<8x128xf32>
    %c0_14 = arith.constant 0 : index
    %c0_15 = arith.constant 0 : index
    %17 = vector.load %arg13[%c0_14, %c0_15] : memref<8x128xf32, #tpu.memory_space<vmem>>, vector<8x128xf32>
    tpu.vector_store %arg13[%c0_14, %c0_15], %16 {strides = array<i32>} : memref<8x128xf32, #tpu.memory_space<vmem>>, vector<8x128xf32>,
    %18 = vector.extract_strided_slice %16 {offsets = [0, 0], sizes = [8, 32], strides = [1, 1]} : vector<8x128xf32> to vector<8x32xf32>
    %19 = vector.extract_strided_slice %16 {offsets = [0, 32], sizes = [8, 32], strides = [1, 1]} : vector<8x128xf32> to vector<8x32xf32>
    %c0_16 = arith.constant 0 : index
    %c0_17 = arith.constant 0 : index
    %20 = vector.load %arg3[%c0_16, %c0_17] : memref<8x32xf32, #tpu.memory_space<vmem>>, vector<8x32xf32>
    %cst_18 = arith.constant 5.000000e-01 : f32
    %21 = vector.broadcast %cst_18 : f32 to vector<8x32xf32>
    %22 = arith.mulf %21, %19 : vector<8x32xf32>
    %23 = math.exp %22 : vector<8x32xf32>
    %24 = arith.mulf %20, %23 : vector<8x32xf32>
    %25 = arith.addf %18, %24 : vector<8x32xf32>
    %26 = arith.truncf %25 : vector<8x32xf32> to vector<8x32xbf16>
    %c0_19 = arith.constant 0 : index
    %c0_20 = arith.constant 0 : index
    %27 = vector.load %arg8[%c0_19, %c0_20] : memref<32x512xbf16, #tpu.memory_space<vmem>>, vector<32x512xbf16>
    %cst_21 = arith.constant dense<0.000000e+00> : vector<8x512xf32>
    %28 = tpu.matmul %26, %27, %cst_21 {dimension_numbers = #tpu.dot_dimension_numbers<[1], [0], [0], [1], [0, 0, 1, 1], [], []>} : vector<8x32xbf16>, vector<32x512xbf16>, vector<8x512xf32> -> vector<8x512xf32>
    %c0_22 = arith.constant 0 : index
    %c0_23 = arith.constant 0 : index
    %29 = vector.load %arg9[%c0_22, %c0_23] : memref<9x512xbf16, #tpu.memory_space<vmem>>, vector<9x512xbf16>
    %cst_24 = arith.constant dense<0.000000e+00> : vector<8x512xf32>
    %30 = tpu.matmul %3, %29, %cst_24 {dimension_numbers = #tpu.dot_dimension_numbers<[1], [0], [0], [1], [0, 0, 1, 1], [], []>} : vector<8x9xbf16>, vector<9x512xbf16>, vector<8x512xf32> -> vector<8x512xf32>
    %31 = arith.addf %28, %30 : vector<8x512xf32>
    %cst_25 = arith.constant 0.000000e+00 : f32
    %32 = vector.broadcast %cst_25 : f32 to vector<8x512xf32>
    %33 = arith.cmpf ogt, %31, %32 : vector<8x512xf32>
    %cst_26 = arith.constant 0.000000e+00 : f32
    %34 = vector.broadcast %cst_26 : f32 to vector<8x512xf32>
    %35 = arith.minimumf %31, %34 : vector<8x512xf32>
    %36 = math.exp %35 : vector<8x512xf32>
    %cst_27 = arith.constant 1.000000e+00 : f32
    %37 = vector.broadcast %cst_27 : f32 to vector<8x512xf32>
    %38 = arith.subf %36, %37 : vector<8x512xf32>
    %39 = arith.select %33, %31, %38 : vector<8x512xi1>, vector<8x512xf32>
    %40 = arith.truncf %39 : vector<8x512xf32> to vector<8x512xbf16>
    %c0_28 = arith.constant 0 : index
    %c0_29 = arith.constant 0 : index
    %41 = vector.load %arg10[%c0_28, %c0_29] : memref<512x1024xbf16, #tpu.memory_space<vmem>>, vector<512x1024xbf16>
    %cst_30 = arith.constant dense<0.000000e+00> : vector<8x1024xf32>
    %42 = tpu.matmul %40, %41, %cst_30 {dimension_numbers = #tpu.dot_dimension_numbers<[1], [0], [0], [1], [0, 0, 1, 1], [], []>} : vector<8x512xbf16>, vector<512x1024xbf16>, vector<8x1024xf32> -> vector<8x1024xf32>
    %c0_31 = arith.constant 0 : index
    %c0_32 = arith.constant 0 : index
    %43 = vector.load %arg11[%c0_31, %c0_32] : memref<1x1024xf32, #tpu.memory_space<vmem>>, vector<1x1024xf32>
    %44 = vector.broadcast %43 : vector<1x1024xf32> to vector<8x1024xf32>
    %45 = arith.addf %42, %44 : vector<8x1024xf32>
    %cst_33 = arith.constant 5.000000e-01 : f32
    %46 = vector.broadcast %cst_33 : f32 to vector<8x1024xf32>
    %47 = arith.mulf %46, %45 : vector<8x1024xf32>
    %48 = math.tanh %47 : vector<8x1024xf32>
    %cst_34 = arith.constant 5.000000e-01 : f32
    %49 = vector.broadcast %cst_34 : f32 to vector<8x1024xf32>
    %50 = arith.mulf %49, %48 : vector<8x1024xf32>
    %cst_35 = arith.constant 5.000000e-01 : f32
    %51 = vector.broadcast %cst_35 : f32 to vector<8x1024xf32>
    %52 = arith.addf %50, %51 : vector<8x1024xf32>
    %c0_36 = arith.constant 0 : index
    %c0_37 = arith.constant 0 : index
    %53 = vector.load %arg12[%c0_36, %c0_37] : memref<8x1024xf32, #tpu.memory_space<vmem>>, vector<8x1024xf32>
    tpu.vector_store %arg12[%c0_36, %c0_37], %52 {strides = array<i32>} : memref<8x1024xf32, #tpu.memory_space<vmem>>, vector<8x1024xf32>,
    return
  }
  func.func @transform_0(%arg0: i32) -> (i32, i32) {
    %c0_i32 = arith.constant 0 : i32
    %c0_i32_0 = arith.constant 0 : i32
    return %arg0, %c0_i32 : i32, i32
  }
  func.func @transform_1(%arg0: i32) -> (i32, i32) {
    %c0_i32 = arith.constant 0 : i32
    %c0_i32_0 = arith.constant 0 : i32
    return %arg0, %c0_i32 : i32, i32
  }
  func.func @transform_2(%arg0: i32) -> (i32, i32) {
    %c0_i32 = arith.constant 0 : i32
    %c0_i32_0 = arith.constant 0 : i32
    return %arg0, %c0_i32 : i32, i32
  }
  func.func @transform_3(%arg0: i32) -> (i32, i32) {
    %c0_i32 = arith.constant 0 : i32
    %c0_i32_0 = arith.constant 0 : i32
    %c0_i32_1 = arith.constant 0 : i32
    return %c0_i32, %c0_i32_0 : i32, i32
  }
  func.func @transform_4(%arg0: i32) -> (i32, i32) {
    %c0_i32 = arith.constant 0 : i32
    %c0_i32_0 = arith.constant 0 : i32
    %c0_i32_1 = arith.constant 0 : i32
    return %c0_i32, %c0_i32_0 : i32, i32
  }
  func.func @transform_5(%arg0: i32) -> (i32, i32) {
    %c0_i32 = arith.constant 0 : i32
    %c0_i32_0 = arith.constant 0 : i32
    %c0_i32_1 = arith.constant 0 : i32
    return %c0_i32, %c0_i32_0 : i32, i32
  }
  func.func @transform_6(%arg0: i32) -> (i32, i32) {
    %c0_i32 = arith.constant 0 : i32
    %c0_i32_0 = arith.constant 0 : i32
    %c0_i32_1 = arith.constant 0 : i32
    return %c0_i32, %c0_i32_0 : i32, i32
  }
  func.func @transform_7(%arg0: i32) -> (i32, i32) {
    %c0_i32 = arith.constant 0 : i32
    %c0_i32_0 = arith.constant 0 : i32
    %c0_i32_1 = arith.constant 0 : i32
    return %c0_i32, %c0_i32_0 : i32, i32
  }
  func.func @transform_8(%arg0: i32) -> (i32, i32) {
    %c0_i32 = arith.constant 0 : i32
    %c0_i32_0 = arith.constant 0 : i32
    %c0_i32_1 = arith.constant 0 : i32
    return %c0_i32, %c0_i32_0 : i32, i32
  }
  func.func @transform_9(%arg0: i32) -> (i32, i32) {
    %c0_i32 = arith.constant 0 : i32
    %c0_i32_0 = arith.constant 0 : i32
    %c0_i32_1 = arith.constant 0 : i32
    return %c0_i32, %c0_i32_0 : i32, i32
  }
  func.func @transform_10(%arg0: i32) -> (i32, i32) {
    %c0_i32 = arith.constant 0 : i32
    %c0_i32_0 = arith.constant 0 : i32
    %c0_i32_1 = arith.constant 0 : i32
    return %c0_i32, %c0_i32_0 : i32, i32
  }
  func.func @transform_11(%arg0: i32) -> (i32, i32) {
    %c0_i32 = arith.constant 0 : i32
    %c0_i32_0 = arith.constant 0 : i32
    return %arg0, %c0_i32 : i32, i32
  }
  func.func @transform_12(%arg0: i32) -> (i32, i32) {
    %c0_i32 = arith.constant 0 : i32
    %c0_i32_0 = arith.constant 0 : i32
    return %arg0, %c0_i32 : i32, i32
  }
}

</mosaic_0001>

<llo_original>
// kernel: tpu_custom_call.1
$region0: #{tpu_custom_call.1}
  #allocation0 [shape = 'u32[]', space=smem, size = 0x4, offset = 0x4, fixed_abs, tag = 'smem constant byte address 0x4 - core index']
  #allocation1 [shape = 'u32[144,128]{1,0:T(1,128)}', space=vmem, size = 0x12000, scoped, tag = 'internal scratch']
  %s0 = inlined_call_operand.hbm [shape: f32[8,1024], index: 0, kind: input, shape index: {}]
  %s1 = inlined_call_operand.hbm [shape: f32[8,9], index: 1, kind: input, shape index: {}]
  %s2 = inlined_call_operand.hbm [shape: f32[8,32], index: 2, kind: input, shape index: {}]
  %s3 = inlined_call_operand.hbm [shape: bf16[1024,512], index: 3, kind: input, shape index: {}]
  %s4 = inlined_call_operand.hbm [shape: bf16[9,512], index: 4, kind: input, shape index: {}]
  %s5 = inlined_call_operand.hbm [shape: bf16[512,128], index: 5, kind: input, shape index: {}]
  %s6 = inlined_call_operand.vmem [shape: f32[1,128], index: 6, kind: input, shape index: {}]
  %s7 = inlined_call_operand.hbm [shape: bf16[32,512], index: 7, kind: input, shape index: {}]
  %s8 = inlined_call_operand.hbm [shape: bf16[9,512], index: 8, kind: input, shape index: {}]
  %s9 = inlined_call_operand.hbm [shape: bf16[512,1024], index: 9, kind: input, shape index: {}]
  %s10 = inlined_call_operand.vmem [shape: f32[1,1024], index: 10, kind: input, shape index: {}]
  %s11 = inlined_call_operand.hbm [shape: f32[8,1024], index: 11, kind: output, shape index: {0}]
  %s12 = inlined_call_operand.hbm [shape: f32[8,128], index: 12, kind: output, shape index: {1}]
  %13 = xla_tuple %s11, %s12
  %s14 = sld [smem:[#allocation0]]
  $region98: #{tpu_custom_call.1} parent=0
    _
  %s16 = ssub.s32 1, %s14
  %s17 = scalar_select 0, %s16, %s14
  $region1: #{tpu_custom_call.1} parent=0
    #allocation2 [shape = 'u8[32768]{0}', space=vmem, size = 0x8000, scoped, tag = 'input window, operand 0, single buffered']
    #allocation3 [shape = 's32[1]{0}', space=sflag, size = 0x4, scoped, tag = 'scoped memory for tpu_custom_call.1']
    #allocation4 [shape = 's32[1]{0}', space=sflag, size = 0x4, scoped, tag = 'scoped memory for tpu_custom_call.1']
    #allocation5 [shape = 'u8[4096]{0}', space=vmem, size = 0x1000, scoped, tag = 'input window, operand 1, single buffered']
    #allocation6 [shape = 's32[1]{0}', space=sflag, size = 0x4, scoped, tag = 'scoped memory for tpu_custom_call.1']
    #allocation7 [shape = 'u8[4096]{0}', space=vmem, size = 0x1000, scoped, tag = 'input window, operand 2, single buffered']
    #allocation8 [shape = 'u8[1048576]{0}', space=vmem, size = 0x100000, scoped, tag = 'input window, operand 3, single buffered']
    #allocation9 [shape = 's32[1]{0}', space=sflag, size = 0x4, scoped, tag = 'scoped memory for tpu_custom_call.1']
    #allocation10 [shape = 'u8[16384]{0}', space=vmem, size = 0x4000, scoped, tag = 'input window, operand 4, single buffered']
    #allocation11 [shape = 'u8[131072]{0}', space=vmem, size = 0x20000, scoped, tag = 'input window, operand 5, single buffered']
    #allocation12 [shape = 's32[1]{0}', space=sflag, size = 0x4, scoped, tag = 'scoped memory for tpu_custom_call.1']
    #allocation13 [shape = 'u8[32768]{0}', space=vmem, size = 0x8000, scoped, tag = 'input window, operand 7, single buffered']
    #allocation14 [shape = 'u8[16384]{0}', space=vmem, size = 0x4000, scoped, tag = 'input window, operand 8, single buffered']
    #allocation15 [shape = 's32[1]{0}', space=sflag, size = 0x4, scoped, tag = 'scoped memory for tpu_custom_call.1']
    #allocation16 [shape = 'u8[1048576]{0}', space=vmem, size = 0x100000, scoped, tag = 'input window, operand 9, single buffered']
    #allocation17 [shape = 'u8[32768]{0}', space=vmem, size = 0x8000, scoped, tag = 'output window, operand 0, single buffered']
    #allocation18 [shape = 'u8[4096]{0}', space=vmem, size = 0x1000, scoped, tag = 'output window, operand 1, single buffered']
    #allocation19 [shape = 's32[1]{0}', space=sflag, size = 0x4, scoped, tag = 'scoped memory for tpu_custom_call.1']
    %18 = vsyncpa [#allocation3], 0
    %19 = vsyncpa [#allocation6], 0
    %20 = vsyncpa [#allocation9], 0
    %21 = vsyncpa [#allocation12], 0
    %22 = vsyncpa [#allocation15], 0
    %23 = vsyncpa [#allocation4], 0
    %24 = vsyncpa [#allocation19], 0
    // Predicated region
    $region2: #{tpu_custom_call.1} parent=1 // pred_check
      _
    $region3: #{tpu_custom_call.1} parent=1 // pred_check_branch
      %26 = sbr.rel (0) target = $region5
    $region4: #{tpu_custom_call.1} parent=1 // pred_region
      %s28 = ssub.s32 1024, 1024
      %29 = vsyncadd [#allocation3], %s28
      %s31 = sshll.u32 [#allocation2], 4
      %s32 = int_to_ptr.vmem [resolvable:$true] %s31
      %34 = dma.hbm_to_vmem [thread:$0]  %s0, 1024, %s32, [#allocation3]
    $region5: #{tpu_custom_call.1} parent=1 // pred_fallthru
      _
    // Predicated region
    $region6: #{tpu_custom_call.1} parent=1 // pred_check
      _
    $region7: #{tpu_custom_call.1} parent=1 // pred_check_branch
      %36 = sbr.rel (0) target = $region9
    $region8: #{tpu_custom_call.1} parent=1 // pred_region
      %s38 = ssub.s32 128, 128
      %39 = vsyncadd [#allocation6], %s38
      %s41 = sshll.u32 [#allocation5], 4
      %s42 = int_to_ptr.vmem [resolvable:$true] %s41
      %44 = dma.hbm_to_vmem [thread:$0]  %s1, 128, %s42, [#allocation6]
    $region9: #{tpu_custom_call.1} parent=1 // pred_fallthru
      _
    // Predicated region
    $region10: #{tpu_custom_call.1} parent=1 // pred_check
      _
    $region11: #{tpu_custom_call.1} parent=1 // pred_check_branch
      %46 = sbr.rel (0) target = $region13
    $region12: #{tpu_custom_call.1} parent=1 // pred_region
      %s48 = ssub.s32 128, 128
      %49 = vsyncadd [#allocation6], %s48
      %s51 = sshll.u32 [#allocation7], 4
      %s52 = int_to_ptr.vmem [resolvable:$true] %s51
      %54 = dma.hbm_to_vmem [thread:$0]  %s2, 128, %s52, [#allocation6]
    $region13: #{tpu_custom_call.1} parent=1 // pred_fallthru
      _
    // Predicated region
    $region14: #{tpu_custom_call.1} parent=1 // pred_check
      _
    $region15: #{tpu_custom_call.1} parent=1 // pred_check_branch
      %56 = sbr.rel (0) target = $region17
    $region16: #{tpu_custom_call.1} parent=1 // pred_region
      %s58 = ssub.s32 32768, 32768
      %59 = vsyncadd [#allocation9], %s58
      %s60 = sshll.u32 [#allocation8], 4
      %s61 = int_to_ptr.vmem [resolvable:$true] %s60
      %66 = dma.hbm_to_vmem [thread:$0]  %s3, 32768, %s61, [#allocation9], 256, 256, 16
    $region17: #{tpu_custom_call.1} parent=1 // pred_fallthru
      _
    // Predicated region
    $region18: #{tpu_custom_call.1} parent=1 // pred_check
      _
    $region19: #{tpu_custom_call.1} parent=1 // pred_check_branch
      %68 = sbr.rel (0) target = $region21
    $region20: #{tpu_custom_call.1} parent=1 // pred_region
      %s70 = ssub.s32 512, 512
      %71 = vsyncadd [#allocation9], %s70
      %s72 = sshll.u32 [#allocation10], 4
      %s73 = int_to_ptr.vmem [resolvable:$true] %s72
      %78 = dma.hbm_to_vmem [thread:$0]  %s4, 512, %s73, [#allocation9], 256, 256, 16
    $region21: #{tpu_custom_call.1} parent=1 // pred_fallthru
      _
    // Predicated region
    $region22: #{tpu_custom_call.1} parent=1 // pred_check
      _
    $region23: #{tpu_custom_call.1} parent=1 // pred_check_branch
      %80 = sbr.rel (0) target = $region25
    $region24: #{tpu_custom_call.1} parent=1 // pred_region
      %s82 = ssub.s32 4096, 4096
      %83 = vsyncadd [#allocation12], %s82
      %s84 = sshll.u32 [#allocation11], 4
      %s85 = int_to_ptr.vmem [resolvable:$true] %s84
      %90 = dma.hbm_to_vmem [thread:$0]  %s5, 4096, %s85, [#allocation12], 64, 64, 4
    $region25: #{tpu_custom_call.1} parent=1 // pred_fallthru
      _
    // Predicated region
    $region26: #{tpu_custom_call.1} parent=1 // pred_check
      _
    $region27: #{tpu_custom_call.1} parent=1 // pred_check_branch
      %92 = sbr.rel (0) target = $region29
    $region28: #{tpu_custom_call.1} parent=1 // pred_region
      _
    $region29: #{tpu_custom_call.1} parent=1 // pred_fallthru
      _
    // Predicated region
    $region30: #{tpu_custom_call.1} parent=1 // pred_check
      _
    $region31: #{tpu_custom_call.1} parent=1 // pred_check_branch
      %94 = sbr.rel (0) target = $region33
    $region32: #{tpu_custom_call.1} parent=1 // pred_region
      %s96 = ssub.s32 1024, 1024
      %97 = vsyncadd [#allocation12], %s96
      %s98 = sshll.u32 [#allocation13], 4
      %s99 = int_to_ptr.vmem [resolvable:$true] %s98
      %104 = dma.hbm_to_vmem [thread:$0]  %s7, 1024, %s99, [#allocation12], 256, 256, 16
    $region33: #{tpu_custom_call.1} parent=1 // pred_fallthru
      _
    // Predicated region
    $region34: #{tpu_custom_call.1} parent=1 // pred_check
      _
    $region35: #{tpu_custom_call.1} parent=1 // pred_check_branch
      %106 = sbr.rel (0) target = $region37
    $region36: #{tpu_custom_call.1} parent=1 // pred_region
      %s108 = ssub.s32 512, 512
      %109 = vsyncadd [#allocation15], %s108
      %s110 = sshll.u32 [#allocation14], 4
      %s111 = int_to_ptr.vmem [resolvable:$true] %s110
      %116 = dma.hbm_to_vmem [thread:$0]  %s8, 512, %s111, [#allocation15], 256, 256, 16
    $region37: #{tpu_custom_call.1} parent=1 // pred_fallthru
      _
    // Predicated region
    $region38: #{tpu_custom_call.1} parent=1 // pred_check
      _
    $region39: #{tpu_custom_call.1} parent=1 // pred_check_branch
      %118 = sbr.rel (0) target = $region41
    $region40: #{tpu_custom_call.1} parent=1 // pred_region
      %s120 = ssub.s32 32768, 32768
      %121 = vsyncadd [#allocation15], %s120
      %s122 = sshll.u32 [#allocation16], 4
      %s123 = int_to_ptr.vmem [resolvable:$true] %s122
      %128 = dma.hbm_to_vmem [thread:$0]  %s9, 32768, %s123, [#allocation15], 512, 512, 32
    $region41: #{tpu_custom_call.1} parent=1 // pred_fallthru
      _
    // Predicated region
    $region42: #{tpu_custom_call.1} parent=1 // pred_check
      _
    $region43: #{tpu_custom_call.1} parent=1 // pred_check_branch
      %130 = sbr.rel (0) target = $region45
    $region44: #{tpu_custom_call.1} parent=1 // pred_region
      _
    $region45: #{tpu_custom_call.1} parent=1 // pred_fallthru
      _
    // Predicated region
    $region46: #{tpu_custom_call.1} parent=1 // pred_check
      _
    $region47: #{tpu_custom_call.1} parent=1 // pred_check_branch
      %132 = sbr.rel (0) target = $region49
    $region48: #{tpu_custom_call.1} parent=1 // pred_region
      %133 = dma.done [#allocation3], 1024
    $region49: #{tpu_custom_call.1} parent=1 // pred_fallthru
      _
    // Predicated region
    $region50: #{tpu_custom_call.1} parent=1 // pred_check
      _
    $region51: #{tpu_custom_call.1} parent=1 // pred_check_branch
      %135 = sbr.rel (0) target = $region53
    $region52: #{tpu_custom_call.1} parent=1 // pred_region
      %136 = dma.done [#allocation6], 128
    $region53: #{tpu_custom_call.1} parent=1 // pred_fallthru
      _
    // Predicated region
    $region54: #{tpu_custom_call.1} parent=1 // pred_check
      _
    $region55: #{tpu_custom_call.1} parent=1 // pred_check_branch
      %138 = sbr.rel (0) target = $region57
    $region56: #{tpu_custom_call.1} parent=1 // pred_region
      %139 = dma.done [#allocation6], 128
    $region57: #{tpu_custom_call.1} parent=1 // pred_fallthru
      _
    // Predicated region
    $region58: #{tpu_custom_call.1} parent=1 // pred_check
      _
    $region59: #{tpu_custom_call.1} parent=1 // pred_check_branch
      %141 = sbr.rel (0) target = $region61
    $region60: #{tpu_custom_call.1} parent=1 // pred_region
      %142 = dma.done [#allocation9], 32768
    $region61: #{tpu_custom_call.1} parent=1 // pred_fallthru
      _
    // Predicated region
    $region62: #{tpu_custom_call.1} parent=1 // pred_check
      _
    $region63: #{tpu_custom_call.1} parent=1 // pred_check_branch
      %144 = sbr.rel (0) target = $region65
    $region64: #{tpu_custom_call.1} parent=1 // pred_region
      %145 = dma.done [#allocation9], 512
    $region65: #{tpu_custom_call.1} parent=1 // pred_fallthru
      _
    // Predicated region
    $region66: #{tpu_custom_call.1} parent=1 // pred_check
      _
    $region67: #{tpu_custom_call.1} parent=1 // pred_check_branch
      %147 = sbr.rel (0) target = $region69
    $region68: #{tpu_custom_call.1} parent=1 // pred_region
      %148 = dma.done [#allocation12], 4096
    $region69: #{tpu_custom_call.1} parent=1 // pred_fallthru
      _
    // Predicated region
    $region70: #{tpu_custom_call.1} parent=1 // pred_check
      _
    $region71: #{tpu_custom_call.1} parent=1 // pred_check_branch
      %150 = sbr.rel (0) target = $region73
    $region72: #{tpu_custom_call.1} parent=1 // pred_region
      %151 = dma.done [#allocation12], 1024
    $region73: #{tpu_custom_call.1} parent=1 // pred_fallthru
      _
    // Predicated region
    $region74: #{tpu_custom_call.1} parent=1 // pred_check
      _
    $region75: #{tpu_custom_call.1} parent=1 // pred_check_branch
      %153 = sbr.rel (0) target = $region77
    $region76: #{tpu_custom_call.1} parent=1 // pred_region
      %154 = dma.done [#allocation15], 512
    $region77: #{tpu_custom_call.1} parent=1 // pred_fallthru
      _
    // Predicated region
    $region78: #{tpu_custom_call.1} parent=1 // pred_check
      _
    $region79: #{tpu_custom_call.1} parent=1 // pred_check_branch
      %156 = sbr.rel (0) target = $region81
    $region80: #{tpu_custom_call.1} parent=1 // pred_region
      %157 = dma.done [#allocation15], 32768
    $region81: #{tpu_custom_call.1} parent=1 // pred_fallthru
      _
    %v159 = vld [vmem:[#allocation2] sm:$0xff]
    %v160 = vld [vmem:[#allocation2 + $0x8] sm:$0xff]
    %v161 = vld [vmem:[#allocation2 + $0x10] sm:$0xff]
    %v162 = vld [vmem:[#allocation2 + $0x18] sm:$0xff]
    %v163 = vld [vmem:[#allocation2 + $0x20] sm:$0xff]
    %v164 = vld [vmem:[#allocation2 + $0x28] sm:$0xff]
    %v165 = vld [vmem:[#allocation2 + $0x30] sm:$0xff]
    %v166 = vld [vmem:[#allocation2 + $0x38] sm:$0xff]
    %v167 = vpack.c.bf16 %v159, %v159
    %v168 = vpack.c.bf16 %v160, %v160
    %v169 = vpack.c.bf16 %v161, %v161
    %v170 = vpack.c.bf16 %v162, %v162
    %v171 = vpack.c.bf16 %v163, %v163
    %v172 = vpack.c.bf16 %v164, %v164
    %v173 = vpack.c.bf16 %v165, %v165
    %v174 = vpack.c.bf16 %v166, %v166
    %v175 = vld [vmem:[#allocation5] sm:$0xff]
    %v176 = vpack.c.bf16 %v175, %v175
    %v177 = vld [vmem:[#allocation8] sm:$0xff]
    %v178 = vld [vmem:[#allocation8 + $0x8] sm:$0xff]
    %v179 = vld [vmem:[#allocation8 + $0x10] sm:$0xff]
    %v180 = vld [vmem:[#allocation8 + $0x18] sm:$0xff]
    %v181 = vld [vmem:[#allocation8 + $0x20] sm:$0xff]
    %v182 = vld [vmem:[#allocation8 + $0x28] sm:$0xff]
    %v183 = vld [vmem:[#allocation8 + $0x30] sm:$0xff]
    %v184 = vld [vmem:[#allocation8 + $0x38] sm:$0xff]
    %v185 = vld [vmem:[#allocation8 + $0x40] sm:$0xff]
    %v186 = vld [vmem:[#allocation8 + $0x48] sm:$0xff]
    %v187 = vld [vmem:[#allocation8 + $0x50] sm:$0xff]
    %v188 = vld [vmem:[#allocation8 + $0x58] sm:$0xff]
    %v189 = vld [vmem:[#allocation8 + $0x60] sm:$0xff]
    %v190 = vld [vmem:[#allocation8 + $0x68] sm:$0xff]
    %v191 = vld [vmem:[#allocation8 + $0x70] sm:$0xff]
    %v192 = vld [vmem:[#allocation8 + $0x78] sm:$0xff]
    %v193 = vld [vmem:[#allocation8 + $0x80] sm:$0xff]
    %v194 = vld [vmem:[#allocation8 + $0x88] sm:$0xff]
    %v195 = vld [vmem:[#allocation8 + $0x90] sm:$0xff]
    %v196 = vld [vmem:[#allocation8 + $0x98] sm:$0xff]
    %v197 = vld [vmem:[#allocation8 + $0xa0] sm:$0xff]
    %v198 = vld [vmem:[#allocation8 + $0xa8] sm:$0xff]
    %v199 = vld [vmem:[#allocation8 + $0xb0] sm:$0xff]
    %v200 = vld [vmem:[#allocation8 + $0xb8] sm:$0xff]
    %v201 = vld [vmem:[#allocation8 + $0xc0] sm:$0xff]
    %v202 = vld [vmem:[#allocation8 + $0xc8] sm:$0xff]
    %v203 = vld [vmem:[#allocation8 + $0xd0] sm:$0xff]
    %v204 = vld [vmem:[#allocation8 + $0xd8] sm:$0xff]
    %v205 = vld [vmem:[#allocation8 + $0xe0] sm:$0xff]
    %v206 = vld [vmem:[#allocation8 + $0xe8] sm:$0xff]
    %v207 = vld [vmem:[#allocation8 + $0xf0] sm:$0xff]
    %v208 = vld [vmem:[#allocation8 + $0xf8] sm:$0xff]
    %v209 = vld [vmem:[#allocation8 + $0x100] sm:$0xff]
    %v210 = vld [vmem:[#allocation8 + $0x108] sm:$0xff]
    %v211 = vld [vmem:[#allocation8 + $0x110] sm:$0xff]
    %v212 = vld [vmem:[#allocation8 + $0x118] sm:$0xff]
    %v213 = vld [vmem:[#allocation8 + $0x120] sm:$0xff]
    %v214 = vld [vmem:[#allocation8 + $0x128] sm:$0xff]
    %v215 = vld [vmem:[#allocation8 + $0x130] sm:$0xff]
    %v216 = vld [vmem:[#allocation8 + $0x138] sm:$0xff]
    %v217 = vld [vmem:[#allocation8 + $0x140] sm:$0xff]
    %v218 = vld [vmem:[#allocation8 + $0x148] sm:$0xff]
    %v219 = vld [vmem:[#allocation8 + $0x150] sm:$0xff]
    %v220 = vld [vmem:[#allocation8 + $0x158] sm:$0xff]
    %v221 = vld [vmem:[#allocation8 + $0x160] sm:$0xff]
    %v222 = vld [vmem:[#allocation8 + $0x168] sm:$0xff]
    %v223 = vld [vmem:[#allocation8 + $0x170] sm:$0xff]
    %v224 = vld [vmem:[#allocation8 + $0x178] sm:$0xff]
    %v225 = vld [vmem:[#allocation8 + $0x180] sm:$0xff]
    %v226 = vld [vmem:[#allocation8 + $0x188] sm:$0xff]
    %v227 = vld [vmem:[#allocation8 + $0x190] sm:$0xff]
    %v228 = vld [vmem:[#allocation8 + $0x198] sm:$0xff]
    %v229 = vld [vmem:[#allocation8 + $0x1a0] sm:$0xff]
    %v230 = vld [vmem:[#allocation8 + $0x1a8] sm:$0xff]
    %v231 = vld [vmem:[#allocation8 + $0x1b0] sm:$0xff]
    %v232 = vld [vmem:[#allocation8 + $0x1b8] sm:$0xff]
    %v233 = vld [vmem:[#allocation8 + $0x1c0] sm:$0xff]
    %v234 = vld [vmem:[#allocation8 + $0x1c8] sm:$0xff]
    %v235 = vld [vmem:[#allocation8 + $0x1d0] sm:$0xff]
    %v236 = vld [vmem:[#allocation8 + $0x1d8] sm:$0xff]
    %v237 = vld [vmem:[#allocation8 + $0x1e0] sm:$0xff]
    %v238 = vld [vmem:[#allocation8 + $0x1e8] sm:$0xff]
    %v239 = vld [vmem:[#allocation8 + $0x1f0] sm:$0xff]
    %v240 = vld [vmem:[#allocation8 + $0x1f8] sm:$0xff]
    %v241 = vld [vmem:[#allocation8 + $0x200] sm:$0xff]
    %v242 = vld [vmem:[#allocation8 + $0x208] sm:$0xff]
    %v243 = vld [vmem:[#allocation8 + $0x210] sm:$0xff]
    %v244 = vld [vmem:[#allocation8 + $0x218] sm:$0xff]
    %v245 = vld [vmem:[#allocation8 + $0x220] sm:$0xff]
    %v246 = vld [vmem:[#allocation8 + $0x228] sm:$0xff]
    %v247 = vld [vmem:[#allocation8 + $0x230] sm:$0xff]
    %v248 = vld [vmem:[#allocation8 + $0x238] sm:$0xff]
    %v249 = vld [vmem:[#allocation8 + $0x240] sm:$0xff]
    %v250 = vld [vmem:[#allocation8 + $0x248] sm:$0xff]
    %v251 = vld [vmem:[#allocation8 + $0x250] sm:$0xff]
    %v252 = vld [vmem:[#allocation8 + $0x258] sm:$0xff]
    %v253 = vld [vmem:[#allocation8 + $0x260] sm:$0xff]
    %v254 = vld [vmem:[#allocation8 + $0x268] sm:$0xff]
    %v255 = vld [vmem:[#allocation8 + $0x270] sm:$0xff]
    %v256 = vld [vmem:[#allocation8 + $0x278] sm:$0xff]
    %v257 = vld [vmem:[#allocation8 + $0x280] sm:$0xff]
    %v258 = vld [vmem:[#allocation8 + $0x288] sm:$0xff]
    %v259 = vld [vmem:[#allocation8 + $0x290] sm:$0xff]
    %v260 = vld [vmem:[#allocation8 + $0x298] sm:$0xff]
    %v261 = vld [vmem:[#allocation8 + $0x2a0] sm:$0xff]
    %v262 = vld [vmem:[#allocation8 + $0x2a8] sm:$0xff]
    %v263 = vld [vmem:[#allocation8 + $0x2b0] sm:$0xff]
    %v264 = vld [vmem:[#allocation8 + $0x2b8] sm:$0xff]
    %v265 = vld [vmem:[#allocation8 + $0x2c0] sm:$0xff]
    %v266 = vld [vmem:[#allocation8 + $0x2c8] sm:$0xff]
    %v267 = vld [vmem:[#allocation8 + $0x2d0] sm:$0xff]
    %v268 = vld [vmem:[#allocation8 + $0x2d8] sm:$0xff]
    %v269 = vld [vmem:[#allocation8 + $0x2e0] sm:$0xff]
    %v270 = vld [vmem:[#allocation8 + $0x2e8] sm:$0xff]
    %v271 = vld [vmem:[#allocation8 + $0x2f0] sm:$0xff]
    %v272 = vld [vmem:[#allocation8 + $0x2f8] sm:$0xff]
    %v273 = vld [vmem:[#allocation8 + $0x300] sm:$0xff]
    %v274 = vld [vmem:[#allocation8 + $0x308] sm:$0xff]
    %v275 = vld [vmem:[#allocation8 + $0x310] sm:$0xff]
    %v276 = vld [vmem:[#allocation8 + $0x318] sm:$0xff]
    %v277 = vld [vmem:[#allocation8 + $0x320] sm:$0xff]
    %v278 = vld [vmem:[#allocation8 + $0x328] sm:$0xff]
    %v279 = vld [vmem:[#allocation8 + $0x330] sm:$0xff]
    %v280 = vld [vmem:[#allocation8 + $0x338] sm:$0xff]
    %v281 = vld [vmem:[#allocation8 + $0x340] sm:$0xff]
    %v282 = vld [vmem:[#allocation8 + $0x348] sm:$0xff]
    %v283 = vld [vmem:[#allocation8 + $0x350] sm:$0xff]
    %v284 = vld [vmem:[#allocation8 + $0x358] sm:$0xff]
    %v285 = vld [vmem:[#allocation8 + $0x360] sm:$0xff]
    %v286 = vld [vmem:[#allocation8 + $0x368] sm:$0xff]
    %v287 = vld [vmem:[#allocation8 + $0x370] sm:$0xff]
    %v288 = vld [vmem:[#allocation8 + $0x378] sm:$0xff]
    %v289 = vld [vmem:[#allocation8 + $0x380] sm:$0xff]
    %v290 = vld [vmem:[#allocation8 + $0x388] sm:$0xff]
    %v291 = vld [vmem:[#allocation8 + $0x390] sm:$0xff]
    %v292 = vld [vmem:[#allocation8 + $0x398] sm:$0xff]
    %v293 = vld [vmem:[#allocation8 + $0x3a0] sm:$0xff]
    %v294 = vld [vmem:[#allocation8 + $0x3a8] sm:$0xff]
    %v295 = vld [vmem:[#allocation8 + $0x3b0] sm:$0xff]
    %v296 = vld [vmem:[#allocation8 + $0x3b8] sm:$0xff]
    %v297 = vld [vmem:[#allocation8 + $0x3c0] sm:$0xff]
    %v298 = vld [vmem:[#allocation8 + $0x3c8] sm:$0xff]
    %v299 = vld [vmem:[#allocation8 + $0x3d0] sm:$0xff]
    %v300 = vld [vmem:[#allocation8 + $0x3d8] sm:$0xff]
    %v301 = vld [vmem:[#allocation8 + $0x3e0] sm:$0xff]
    %v302 = vld [vmem:[#allocation8 + $0x3e8] sm:$0xff]
    %v303 = vld [vmem:[#allocation8 + $0x3f0] sm:$0xff]
    %v304 = vld [vmem:[#allocation8 + $0x3f8] sm:$0xff]
    %v305 = vld [vmem:[#allocation8 + $0x400] sm:$0xff]
    %v306 = vld [vmem:[#allocation8 + $0x408] sm:$0xff]
    %v307 = vld [vmem:[#allocation8 + $0x410] sm:$0xff]
    %v308 = vld [vmem:[#allocation8 + $0x418] sm:$0xff]
    %v309 = vld [vmem:[#allocation8 + $0x420] sm:$0xff]
    %v310 = vld [vmem:[#allocation8 + $0x428] sm:$0xff]
    %v311 = vld [vmem:[#allocation8 + $0x430] sm:$0xff]
    %v312 = vld [vmem:[#allocation8 + $0x438] sm:$0xff]
    %v313 = vld [vmem:[#allocation8 + $0x440] sm:$0xff]
    %v314 = vld [vmem:[#allocation8 + $0x448] sm:$0xff]
    %v315 = vld [vmem:[#allocation8 + $0x450] sm:$0xff]
    %v316 = vld [vmem:[#allocation8 + $0x458] sm:$0xff]
    %v317 = vld [vmem:[#allocation8 + $0x460] sm:$0xff]
    %v318 = vld [vmem:[#allocation8 + $0x468] sm:$0xff]
    %v319 = vld [vmem:[#allocation8 + $0x470] sm:$0xff]
    %v320 = vld [vmem:[#allocation8 + $0x478] sm:$0xff]
    %v321 = vld [vmem:[#allocation8 + $0x480] sm:$0xff]
    %v322 = vld [vmem:[#allocation8 + $0x488] sm:$0xff]
    %v323 = vld [vmem:[#allocation8 + $0x490] sm:$0xff]
    %v324 = vld [vmem:[#allocation8 + $0x498] sm:$0xff]
    %v325 = vld [vmem:[#allocation8 + $0x4a0] sm:$0xff]
    %v326 = vld [vmem:[#allocation8 + $0x4a8] sm:$0xff]
    %v327 = vld [vmem:[#allocation8 + $0x4b0] sm:$0xff]
    %v328 = vld [vmem:[#allocation8 + $0x4b8] sm:$0xff]
    %v329 = vld [vmem:[#allocation8 + $0x4c0] sm:$0xff]
    %v330 = vld [vmem:[#allocation8 + $0x4c8] sm:$0xff]
    %v331 = vld [vmem:[#allocation8 + $0x4d0] sm:$0xff]
    %v332 = vld [vmem:[#allocation8 + $0x4d8] sm:$0xff]
    %v333 = vld [vmem:[#allocation8 + $0x4e0] sm:$0xff]
    %v334 = vld [vmem:[#allocation8 + $0x4e8] sm:$0xff]
    %v335 = vld [vmem:[#allocation8 + $0x4f0] sm:$0xff]
    %v336 = vld [vmem:[#allocation8 + $0x4f8] sm:$0xff]
    %v337 = vld [vmem:[#allocation8 + $0x500] sm:$0xff]
    %v338 = vld [vmem:[#allocation8 + $0x508] sm:$0xff]
    %v339 = vld [vmem:[#allocation8 + $0x510] sm:$0xff]
    %v340 = vld [vmem:[#allocation8 + $0x518] sm:$0xff]
    %v341 = vld [vmem:[#allocation8 + $0x520] sm:$0xff]
    %v342 = vld [vmem:[#allocation8 + $0x528] sm:$0xff]
    %v343 = vld [vmem:[#allocation8 + $0x530] sm:$0xff]
    %v344 = vld [vmem:[#allocation8 + $0x538] sm:$0xff]
    %v345 = vld [vmem:[#allocation8 + $0x540] sm:$0xff]
    %v346 = vld [vmem:[#allocation8 + $0x548] sm:$0xff]
    %v347 = vld [vmem:[#allocation8 + $0x550] sm:$0xff]
    %v348 = vld [vmem:[#allocation8 + $0x558] sm:$0xff]
    %v349 = vld [vmem:[#allocation8 + $0x560] sm:$0xff]
    %v350 = vld [vmem:[#allocation8 + $0x568] sm:$0xff]
    %v351 = vld [vmem:[#allocation8 + $0x570] sm:$0xff]
    %v352 = vld [vmem:[#allocation8 + $0x578] sm:$0xff]
    %v353 = vld [vmem:[#allocation8 + $0x580] sm:$0xff]
    %v354 = vld [vmem:[#allocation8 + $0x588] sm:$0xff]
    %v355 = vld [vmem:[#allocation8 + $0x590] sm:$0xff]
    %v356 = vld [vmem:[#allocation8 + $0x598] sm:$0xff]
    %v357 = vld [vmem:[#allocation8 + $0x5a0] sm:$0xff]
    %v358 = vld [vmem:[#allocation8 + $0x5a8] sm:$0xff]
    %v359 = vld [vmem:[#allocation8 + $0x5b0] sm:$0xff]
    %v360 = vld [vmem:[#allocation8 + $0x5b8] sm:$0xff]
    %v361 = vld [vmem:[#allocation8 + $0x5c0] sm:$0xff]
    %v362 = vld [vmem:[#allocation8 + $0x5c8] sm:$0xff]
    %v363 = vld [vmem:[#allocation8 + $0x5d0] sm:$0xff]
    %v364 = vld [vmem:[#allocation8 + $0x5d8] sm:$0xff]
    %v365 = vld [vmem:[#allocation8 + $0x5e0] sm:$0xff]
    %v366 = vld [vmem:[#allocation8 + $0x5e8] sm:$0xff]
    %v367 = vld [vmem:[#allocation8 + $0x5f0] sm:$0xff]
    %v368 = vld [vmem:[#allocation8 + $0x5f8] sm:$0xff]
    %v369 = vld [vmem:[#allocation8 + $0x600] sm:$0xff]
    %v370 = vld [vmem:[#allocation8 + $0x608] sm:$0xff]
    %v371 = vld [vmem:[#allocation8 + $0x610] sm:$0xff]
    %v372 = vld [vmem:[#allocation8 + $0x618] sm:$0xff]
    %v373 = vld [vmem:[#allocation8 + $0x620] sm:$0xff]
    %v374 = vld [vmem:[#allocation8 + $0x628] sm:$0xff]
    %v375 = vld [vmem:[#allocation8 + $0x630] sm:$0xff]
    %v376 = vld [vmem:[#allocation8 + $0x638] sm:$0xff]
    %v377 = vld [vmem:[#allocation8 + $0x640] sm:$0xff]
    %v378 = vld [vmem:[#allocation8 + $0x648] sm:$0xff]
    %v379 = vld [vmem:[#allocation8 + $0x650] sm:$0xff]
    %v380 = vld [vmem:[#allocation8 + $0x658] sm:$0xff]
    %v381 = vld [vmem:[#allocation8 + $0x660] sm:$0xff]
    %v382 = vld [vmem:[#allocation8 + $0x668] sm:$0xff]
    %v383 = vld [vmem:[#allocation8 + $0x670] sm:$0xff]
    %v384 = vld [vmem:[#allocation8 + $0x678] sm:$0xff]
    %v385 = vld [vmem:[#allocation8 + $0x680] sm:$0xff]
    %v386 = vld [vmem:[#allocation8 + $0x688] sm:$0xff]
    %v387 = vld [vmem:[#allocation8 + $0x690] sm:$0xff]
    %v388 = vld [vmem:[#allocation8 + $0x698] sm:$0xff]
    %v389 = vld [vmem:[#allocation8 + $0x6a0] sm:$0xff]
    %v390 = vld [vmem:[#allocation8 + $0x6a8] sm:$0xff]
    %v391 = vld [vmem:[#allocation8 + $0x6b0] sm:$0xff]
    %v392 = vld [vmem:[#allocation8 + $0x6b8] sm:$0xff]
    %v393 = vld [vmem:[#allocation8 + $0x6c0] sm:$0xff]
    %v394 = vld [vmem:[#allocation8 + $0x6c8] sm:$0xff]
    %v395 = vld [vmem:[#allocation8 + $0x6d0] sm:$0xff]
    %v396 = vld [vmem:[#allocation8 + $0x6d8] sm:$0xff]
    %v397 = vld [vmem:[#allocation8 + $0x6e0] sm:$0xff]
    %v398 = vld [vmem:[#allocation8 + $0x6e8] sm:$0xff]
    %v399 = vld [vmem:[#allocation8 + $0x6f0] sm:$0xff]
    %v400 = vld [vmem:[#allocation8 + $0x6f8] sm:$0xff]
    %v401 = vld [vmem:[#allocation8 + $0x700] sm:$0xff]
    %v402 = vld [vmem:[#allocation8 + $0x708] sm:$0xff]
    %v403 = vld [vmem:[#allocation8 + $0x710] sm:$0xff]
    %v404 = vld [vmem:[#allocation8 + $0x718] sm:$0xff]
    %v405 = vld [vmem:[#allocation8 + $0x720] sm:$0xff]
    %v406 = vld [vmem:[#allocation8 + $0x728] sm:$0xff]
    %v407 = vld [vmem:[#allocation8 + $0x730] sm:$0xff]
    %v408 = vld [vmem:[#allocation8 + $0x738] sm:$0xff]
    %v409 = vld [vmem:[#allocation8 + $0x740] sm:$0xff]
    %v410 = vld [vmem:[#allocation8 + $0x748] sm:$0xff]
    %v411 = vld [vmem:[#allocation8 + $0x750] sm:$0xff]
    %v412 = vld [vmem:[#allocation8 + $0x758] sm:$0xff]
    %v413 = vld [vmem:[#allocation8 + $0x760] sm:$0xff]
    %v414 = vld [vmem:[#allocation8 + $0x768] sm:$0xff]
    %v415 = vld [vmem:[#allocation8 + $0x770] sm:$0xff]
    %v416 = vld [vmem:[#allocation8 + $0x778] sm:$0xff]
    %v417 = vld [vmem:[#allocation8 + $0x780] sm:$0xff]
    %v418 = vld [vmem:[#allocation8 + $0x788] sm:$0xff]
    %v419 = vld [vmem:[#allocation8 + $0x790] sm:$0xff]
    %v420 = vld [vmem:[#allocation8 + $0x798] sm:$0xff]
    %v421 = vld [vmem:[#allocation8 + $0x7a0] sm:$0xff]
    %v422 = vld [vmem:[#allocation8 + $0x7a8] sm:$0xff]
    %v423 = vld [vmem:[#allocation8 + $0x7b0] sm:$0xff]
    %v424 = vld [vmem:[#allocation8 + $0x7b8] sm:$0xff]
    %v425 = vld [vmem:[#allocation8 + $0x7c0] sm:$0xff]
    %v426 = vld [vmem:[#allocation8 + $0x7c8] sm:$0xff]
    %v427 = vld [vmem:[#allocation8 + $0x7d0] sm:$0xff]
    %v428 = vld [vmem:[#allocation8 + $0x7d8] sm:$0xff]
    %v429 = vld [vmem:[#allocation8 + $0x7e0] sm:$0xff]
    %v430 = vld [vmem:[#allocation8 + $0x7e8] sm:$0xff]
    %v431 = vld [vmem:[#allocation8 + $0x7f0] sm:$0xff]
    %v432 = vld [vmem:[#allocation8 + $0x7f8] sm:$0xff]
    %v433 = vld [vmem:[#allocation10] sm:$0xff]
    %v434 = vld [vmem:[#allocation10 + $0x8] sm:$0xff]
    %v435 = vld [vmem:[#allocation10 + $0x10] sm:$0x11]
    %v436 = vld [vmem:[#allocation10 + $0x18] sm:$0x11]
    %v441 = vunpack.c.l.b16 %v433
    %v442 = vunpack.c.h.b16 %v433
    %v443 = vunpack.c.l.b16 %v434
    %v444 = vunpack.c.h.b16 %v434
    %v445 = vunpack.c.l.b16 %v435
    %v446 = vunpack.c.h.b16 %v435
    %v447 = vunpack.c.l.b16 %v436
    %v448 = vunpack.c.h.b16 %v436
    %v449 = vpack.c.b16 %v445, %v441
    %v450 = vpack.c.b16 %v446, %v442
    %v451 = vpack.c.b16 %v447, %v443
    %v452 = vpack.c.b16 %v448, %v444
    %vm453 = vcmask 72704
    %v455 = vsel %vm453, %v176, 0
    %vm457 = vcmask 1043456
    %vm458 = vcmask 1044480
    %v459 = vsel %vm457, 4294967295, 65535
    %v460 = vsel %vm458, %v459, 0
    %v462 = vand.u32 %v449, %v460
    %v465 = vand.u32 %v450, %v460
    %v468 = vand.u32 %v451, %v460
    %v471 = vand.u32 %v452, %v460
    %473 = vmatprep.subr.bf16.mxu0 %v465
    %474 = vmatpush1.bf16.msra.mxu0 %v462
    %475 = vmatprep.subr.bf16.mxu0 0
    %476 = vmatpush1.bf16.msra.mxu0 0
    %477 = vmatprep.subr.bf16.mxu0 0
    %478 = vmatpush1.bf16.msra.mxu0 0
    %479 = vmatprep.subr.bf16.mxu0 0
    %480 = vmatpush1.bf16.msra.mxu0 0
    %481 = vmatprep.subr.bf16.mxu0 0
    %482 = vmatpush1.bf16.msra.mxu0 0
    %483 = vmatprep.subr.bf16.mxu0 0
    %484 = vmatpush1.bf16.msra.mxu0 0
    %485 = vmatprep.subr.bf16.mxu0 0
    %486 = vmatpush1.bf16.msra.mxu0 0
    %487 = vmatprep.subr.bf16.mxu0 0
    %488 = vmatpush1.bf16.msra.mxu0 0
    %489 = vmatprep.subr.bf16.mxu0 0
    %490 = vmatpush1.bf16.msra.mxu0 0
    %491 = vmatprep.subr.bf16.mxu0 0
    %492 = vmatpush1.bf16.msra.mxu0 0
    %493 = vmatprep.subr.bf16.mxu0 0
    %494 = vmatpush1.bf16.msra.mxu0 0
    %495 = vmatprep.subr.bf16.mxu0 0
    %496 = vmatpush1.bf16.msra.mxu0 0
    %497 = vmatprep.subr.bf16.mxu0 0
    %498 = vmatpush1.bf16.msra.mxu0 0
    %499 = vmatprep.subr.bf16.mxu0 0
    %500 = vmatpush1.bf16.msra.mxu0 0
    %501 = vmatprep.subr.bf16.mxu0 0
    %502 = vmatpush1.bf16.msra.mxu0 0
    %503 = vmatprep.subr.bf16.mxu0 0
    %504 = vmatpush1.bf16.msra.mxu0 0
    %505 = vmatprep.mubr.bf16.mxu0 0
    %506 = vmatmul.mubr.bf16.gmra.mrb[0].mxu0 %v455
    %v507 = vpop.f32.mrb[0].mxu0
    %v508 = vadd.f32 0.0, %v507
    %v509 = vpop.f32.mrb[0].mxu0
    %v510 = vadd.f32 0.0, %v509
    %v511 = vpop.f32.mrb[0].mxu0
    %v512 = vpop.f32.mrb[0].mxu0
    %513 = vdwg.mxu0
    %514 = vmatprep.subr.bf16.mxu0 %v471
    %515 = vmatpush1.bf16.msra.mxu0 %v468
    %516 = vmatprep.subr.bf16.mxu0 0
    %517 = vmatpush1.bf16.msra.mxu0 0
    %518 = vmatprep.subr.bf16.mxu0 0
    %519 = vmatpush1.bf16.msra.mxu0 0
    %520 = vmatprep.subr.bf16.mxu0 0
    %521 = vmatpush1.bf16.msra.mxu0 0
    %522 = vmatprep.subr.bf16.mxu0 0
    %523 = vmatpush1.bf16.msra.mxu0 0
    %524 = vmatprep.subr.bf16.mxu0 0
    %525 = vmatpush1.bf16.msra.mxu0 0
    %526 = vmatprep.subr.bf16.mxu0 0
    %527 = vmatpush1.bf16.msra.mxu0 0
    %528 = vmatprep.subr.bf16.mxu0 0
    %529 = vmatpush1.bf16.msra.mxu0 0
    %530 = vmatprep.subr.bf16.mxu0 0
    %531 = vmatpush1.bf16.msra.mxu0 0
    %532 = vmatprep.subr.bf16.mxu0 0
    %533 = vmatpush1.bf16.msra.mxu0 0
    %534 = vmatprep.subr.bf16.mxu0 0
    %535 = vmatpush1.bf16.msra.mxu0 0
    %536 = vmatprep.subr.bf16.mxu0 0
    %537 = vmatpush1.bf16.msra.mxu0 0
    %538 = vmatprep.subr.bf16.mxu0 0
    %539 = vmatpush1.bf16.msra.mxu0 0
    %540 = vmatprep.subr.bf16.mxu0 0
    %541 = vmatpush1.bf16.msra.mxu0 0
    %542 = vmatprep.subr.bf16.mxu0 0
    %543 = vmatpush1.bf16.msra.mxu0 0
    %544 = vmatprep.subr.bf16.mxu0 0
    %545 = vmatpush1.bf16.msra.mxu0 0
    %546 = vmatprep.mubr.bf16.mxu0 0
    %547 = vmatmul.mubr.bf16.gmra.mrb[0].mxu0 %v455
    %v548 = vpop.f32.mrb[0].mxu0
    %v549 = vadd.f32 0.0, %v548
    %v550 = vpop.f32.mrb[0].mxu0
    %v551 = vadd.f32 0.0, %v550
    %v552 = vpop.f32.mrb[0].mxu0
    %v553 = vpop.f32.mrb[0].mxu0
    %554 = vdwg.mxu0
    %v811 = vunpack.c.l.b16 %v177
    %v812 = vunpack.c.h.b16 %v177
    %v813 = vunpack.c.l.b16 %v178
    %v814 = vunpack.c.h.b16 %v178
    %v815 = vunpack.c.l.b16 %v179
    %v816 = vunpack.c.h.b16 %v179
    %v817 = vunpack.c.l.b16 %v180
    %v818 = vunpack.c.h.b16 %v180
    %v819 = vunpack.c.l.b16 %v181
    %v820 = vunpack.c.h.b16 %v181
    %v821 = vunpack.c.l.b16 %v182
    %v822 = vunpack.c.h.b16 %v182
    %v823 = vunpack.c.l.b16 %v183
    %v824 = vunpack.c.h.b16 %v183
    %v825 = vunpack.c.l.b16 %v184
    %v826 = vunpack.c.h.b16 %v184
    %v827 = vunpack.c.l.b16 %v185
    %v828 = vunpack.c.h.b16 %v185
    %v829 = vunpack.c.l.b16 %v186
    %v830 = vunpack.c.h.b16 %v186
    %v831 = vunpack.c.l.b16 %v187
    %v832 = vunpack.c.h.b16 %v187
    %v833 = vunpack.c.l.b16 %v188
    %v834 = vunpack.c.h.b16 %v188
    %v835 = vunpack.c.l.b16 %v189
    %v836 = vunpack.c.h.b16 %v189
    %v837 = vunpack.c.l.b16 %v190
    %v838 = vunpack.c.h.b16 %v190
    %v839 = vunpack.c.l.b16 %v191
    %v840 = vunpack.c.h.b16 %v191
    %v841 = vunpack.c.l.b16 %v192
    %v842 = vunpack.c.h.b16 %v192
    %v843 = vunpack.c.l.b16 %v193
    %v844 = vunpack.c.h.b16 %v193
    %v845 = vunpack.c.l.b16 %v194
    %v846 = vunpack.c.h.b16 %v194
    %v847 = vunpack.c.l.b16 %v195
    %v848 = vunpack.c.h.b16 %v195
    %v849 = vunpack.c.l.b16 %v196
    %v850 = vunpack.c.h.b16 %v196
    %v851 = vunpack.c.l.b16 %v197
    %v852 = vunpack.c.h.b16 %v197
    %v853 = vunpack.c.l.b16 %v198
    %v854 = vunpack.c.h.b16 %v198
    %v855 = vunpack.c.l.b16 %v199
    %v856 = vunpack.c.h.b16 %v199
    %v857 = vunpack.c.l.b16 %v200
    %v858 = vunpack.c.h.b16 %v200
    %v859 = vunpack.c.l.b16 %v201
    %v860 = vunpack.c.h.b16 %v201
    %v861 = vunpack.c.l.b16 %v202
    %v862 = vunpack.c.h.b16 %v202
    %v863 = vunpack.c.l.b16 %v203
    %v864 = vunpack.c.h.b16 %v203
    %v865 = vunpack.c.l.b16 %v204
    %v866 = vunpack.c.h.b16 %v204
    %v867 = vunpack.c.l.b16 %v205
    %v868 = vunpack.c.h.b16 %v205
    %v869 = vunpack.c.l.b16 %v206
    %v870 = vunpack.c.h.b16 %v206
    %v871 = vunpack.c.l.b16 %v207
    %v872 = vunpack.c.h.b16 %v207
    %v873 = vunpack.c.l.b16 %v208
    %v874 = vunpack.c.h.b16 %v208
    %v875 = vunpack.c.l.b16 %v209
    %v876 = vunpack.c.h.b16 %v209
    %v877 = vunpack.c.l.b16 %v210
    %v878 = vunpack.c.h.b16 %v210
    %v879 = vunpack.c.l.b16 %v211
    %v880 = vunpack.c.h.b16 %v211
    %v881 = vunpack.c.l.b16 %v212
    %v882 = vunpack.c.h.b16 %v212
    %v883 = vunpack.c.l.b16 %v213
    %v884 = vunpack.c.h.b16 %v213
    %v885 = vunpack.c.l.b16 %v214
    %v886 = vunpack.c.h.b16 %v214
    %v887 = vunpack.c.l.b16 %v215
    %v888 = vunpack.c.h.b16 %v215
    %v889 = vunpack.c.l.b16 %v216
    %v890 = vunpack.c.h.b16 %v216
    %v891 = vunpack.c.l.b16 %v217
    %v892 = vunpack.c.h.b16 %v217
    %v893 = vunpack.c.l.b16 %v218
    %v894 = vunpack.c.h.b16 %v218
    %v895 = vunpack.c.l.b16 %v219
    %v896 = vunpack.c.h.b16 %v219
    %v897 = vunpack.c.l.b16 %v220
    %v898 = vunpack.c.h.b16 %v220
    %v899 = vunpack.c.l.b16 %v221
    %v900 = vunpack.c.h.b16 %v221
    %v901 = vunpack.c.l.b16 %v222
    %v902 = vunpack.c.h.b16 %v222
    %v903 = vunpack.c.l.b16 %v223
    %v904 = vunpack.c.h.b16 %v223
    %v905 = vunpack.c.l.b16 %v224
    %v906 = vunpack.c.h.b16 %v224
    %v907 = vunpack.c.l.b16 %v225
    %v908 = vunpack.c.h.b16 %v225
    %v909 = vunpack.c.l.b16 %v226
    %v910 = vunpack.c.h.b16 %v226
    %v911 = vunpack.c.l.b16 %v227
    %v912 = vunpack.c.h.b16 %v227
    %v913 = vunpack.c.l.b16 %v228
    %v914 = vunpack.c.h.b16 %v228
    %v915 = vunpack.c.l.b16 %v229
    %v916 = vunpack.c.h.b16 %v229
    %v917 = vunpack.c.l.b16 %v230
    %v918 = vunpack.c.h.b16 %v230
    %v919 = vunpack.c.l.b16 %v231
    %v920 = vunpack.c.h.b16 %v231
    %v921 = vunpack.c.l.b16 %v232
    %v922 = vunpack.c.h.b16 %v232
    %v923 = vunpack.c.l.b16 %v233
    %v924 = vunpack.c.h.b16 %v233
    %v925 = vunpack.c.l.b16 %v234
    %v926 = vunpack.c.h.b16 %v234
    %v927 = vunpack.c.l.b16 %v235
    %v928 = vunpack.c.h.b16 %v235
    %v929 = vunpack.c.l.b16 %v236
    %v930 = vunpack.c.h.b16 %v236
    %v931 = vunpack.c.l.b16 %v237
    %v932 = vunpack.c.h.b16 %v237
    %v933 = vunpack.c.l.b16 %v238
    %v934 = vunpack.c.h.b16 %v238
    %v935 = vunpack.c.l.b16 %v239
    %v936 = vunpack.c.h.b16 %v239
    %v937 = vunpack.c.l.b16 %v240
    %v938 = vunpack.c.h.b16 %v240
    %v939 = vunpack.c.l.b16 %v241
    %v940 = vunpack.c.h.b16 %v241
    %v941 = vunpack.c.l.b16 %v242
    %v942 = vunpack.c.h.b16 %v242
    %v943 = vunpack.c.l.b16 %v243
    %v944 = vunpack.c.h.b16 %v243
    %v945 = vunpack.c.l.b16 %v244
    %v946 = vunpack.c.h.b16 %v244
    %v947 = vunpack.c.l.b16 %v245
    %v948 = vunpack.c.h.b16 %v245
    %v949 = vunpack.c.l.b16 %v246
    %v950 = vunpack.c.h.b16 %v246
    %v951 = vunpack.c.l.b16 %v247
    %v952 = vunpack.c.h.b16 %v247
    %v953 = vunpack.c.l.b16 %v248
    %v954 = vunpack.c.h.b16 %v248
    %v955 = vunpack.c.l.b16 %v249
    %v956 = vunpack.c.h.b16 %v249
    %v957 = vunpack.c.l.b16 %v250
    %v958 = vunpack.c.h.b16 %v250
    %v959 = vunpack.c.l.b16 %v251
    %v960 = vunpack.c.h.b16 %v251
    %v961 = vunpack.c.l.b16 %v252
    %v962 = vunpack.c.h.b16 %v252
    %v963 = vunpack.c.l.b16 %v253
    %v964 = vunpack.c.h.b16 %v253
    %v965 = vunpack.c.l.b16 %v254
    %v966 = vunpack.c.h.b16 %v254
    %v967 = vunpack.c.l.b16 %v255
    %v968 = vunpack.c.h.b16 %v255
    %v969 = vunpack.c.l.b16 %v256
    %v970 = vunpack.c.h.b16 %v256
    %v971 = vunpack.c.l.b16 %v257
    %v972 = vunpack.c.h.b16 %v257
    %v973 = vunpack.c.l.b16 %v258
    %v974 = vunpack.c.h.b16 %v258
    %v975 = vunpack.c.l.b16 %v259
    %v976 = vunpack.c.h.b16 %v259
    %v977 = vunpack.c.l.b16 %v260
    %v978 = vunpack.c.h.b16 %v260
    %v979 = vunpack.c.l.b16 %v261
    %v980 = vunpack.c.h.b16 %v261
    %v981 = vunpack.c.l.b16 %v262
    %v982 = vunpack.c.h.b16 %v262
    %v983 = vunpack.c.l.b16 %v263
    %v984 = vunpack.c.h.b16 %v263
    %v985 = vunpack.c.l.b16 %v264
    %v986 = vunpack.c.h.b16 %v264
    %v987 = vunpack.c.l.b16 %v265
    %v988 = vunpack.c.h.b16 %v265
    %v989 = vunpack.c.l.b16 %v266
    %v990 = vunpack.c.h.b16 %v266
    %v991 = vunpack.c.l.b16 %v267
    %v992 = vunpack.c.h.b16 %v267
    %v993 = vunpack.c.l.b16 %v268
    %v994 = vunpack.c.h.b16 %v268
    %v995 = vunpack.c.l.b16 %v269
    %v996 = vunpack.c.h.b16 %v269
    %v997 = vunpack.c.l.b16 %v270
    %v998 = vunpack.c.h.b16 %v270
    %v999 = vunpack.c.l.b16 %v271
    %v1000 = vunpack.c.h.b16 %v271
    %v1001 = vunpack.c.l.b16 %v272
    %v1002 = vunpack.c.h.b16 %v272
    %v1003 = vunpack.c.l.b16 %v273
    %v1004 = vunpack.c.h.b16 %v273
    %v1005 = vunpack.c.l.b16 %v274
    %v1006 = vunpack.c.h.b16 %v274
    %v1007 = vunpack.c.l.b16 %v275
    %v1008 = vunpack.c.h.b16 %v275
    %v1009 = vunpack.c.l.b16 %v276
    %v1010 = vunpack.c.h.b16 %v276
    %v1011 = vunpack.c.l.b16 %v277
    %v1012 = vunpack.c.h.b16 %v277
    %v1013 = vunpack.c.l.b16 %v278
    %v1014 = vunpack.c.h.b16 %v278
    %v1015 = vunpack.c.l.b16 %v279
    %v1016 = vunpack.c.h.b16 %v279
    %v1017 = vunpack.c.l.b16 %v280
    %v1018 = vunpack.c.h.b16 %v280
    %v1019 = vunpack.c.l.b16 %v281
    %v1020 = vunpack.c.h.b16 %v281
    %v1021 = vunpack.c.l.b16 %v282
    %v1022 = vunpack.c.h.b16 %v282
    %v1023 = vunpack.c.l.b16 %v283
    %v1024 = vunpack.c.h.b16 %v283
    %v1025 = vunpack.c.l.b16 %v284
    %v1026 = vunpack.c.h.b16 %v284
    %v1027 = vunpack.c.l.b16 %v285
    %v1028 = vunpack.c.h.b16 %v285
    %v1029 = vunpack.c.l.b16 %v286
    %v1030 = vunpack.c.h.b16 %v286
    %v1031 = vunpack.c.l.b16 %v287
    %v1032 = vunpack.c.h.b16 %v287
    %v1033 = vunpack.c.l.b16 %v288
    %v1034 = vunpack.c.h.b16 %v288
    %v1035 = vunpack.c.l.b16 %v289
    %v1036 = vunpack.c.h.b16 %v289
    %v1037 = vunpack.c.l.b16 %v290
    %v1038 = vunpack.c.h.b16 %v290
    %v1039 = vunpack.c.l.b16 %v291
    %v1040 = vunpack.c.h.b16 %v291
    %v1041 = vunpack.c.l.b16 %v292
    %v1042 = vunpack.c.h.b16 %v292
    %v1043 = vunpack.c.l.b16 %v293
    %v1044 = vunpack.c.h.b16 %v293
    %v1045 = vunpack.c.l.b16 %v294
    %v1046 = vunpack.c.h.b16 %v294
    %v1047 = vunpack.c.l.b16 %v295
    %v1048 = vunpack.c.h.b16 %v295
    %v1049 = vunpack.c.l.b16 %v296
    %v1050 = vunpack.c.h.b16 %v296
    %v1051 = vunpack.c.l.b16 %v297
    %v1052 = vunpack.c.h.b16 %v297
    %v1053 = vunpack.c.l.b16 %v298
    %v1054 = vunpack.c.h.b16 %v298
    %v1055 = vunpack.c.l.b16 %v299
    %v1056 = vunpack.c.h.b16 %v299
    %v1057 = vunpack.c.l.b16 %v300
    %v1058 = vunpack.c.h.b16 %v300
    %v1059 = vunpack.c.l.b16 %v301
    %v1060 = vunpack.c.h.b16 %v301
    %v1061 = vunpack.c.l.b16 %v302
    %v1062 = vunpack.c.h.b16 %v302
    %v1063 = vunpack.c.l.b16 %v303
    %v1064 = vunpack.c.h.b16 %v303
    %v1065 = vunpack.c.l.b16 %v304
    %v1066 = vunpack.c.h.b16 %v304
    %v1067 = vunpack.c.l.b16 %v305
    %v1068 = vunpack.c.h.b16 %v305
    %v1069 = vunpack.c.l.b16 %v306
    %v1070 = vunpack.c.h.b16 %v306
    %v1071 = vunpack.c.l.b16 %v307
    %v1072 = vunpack.c.h.b16 %v307
    %v1073 = vunpack.c.l.b16 %v308
    %v1074 = vunpack.c.h.b16 %v308
    %v1075 = vunpack.c.l.b16 %v309
    %v1076 = vunpack.c.h.b16 %v309
    %v1077 = vunpack.c.l.b16 %v310
    %v1078 = vunpack.c.h.b16 %v310
    %v1079 = vunpack.c.l.b16 %v311
    %v1080 = vunpack.c.h.b16 %v311
    %v1081 = vunpack.c.l.b16 %v312
    %v1082 = vunpack.c.h.b16 %v312
    %v1083 = vunpack.c.l.b16 %v313
    %v1084 = vunpack.c.h.b16 %v313
    %v1085 = vunpack.c.l.b16 %v314
    %v1086 = vunpack.c.h.b16 %v314
    %v1087 = vunpack.c.l.b16 %v315
    %v1088 = vunpack.c.h.b16 %v315
    %v1089 = vunpack.c.l.b16 %v316
    %v1090 = vunpack.c.h.b16 %v316
    %v1091 = vunpack.c.l.b16 %v317
    %v1092 = vunpack.c.h.b16 %v317
    %v1093 = vunpack.c.l.b16 %v318
    %v1094 = vunpack.c.h.b16 %v318
    %v1095 = vunpack.c.l.b16 %v319
    %v1096 = vunpack.c.h.b16 %v319
    %v1097 = vunpack.c.l.b16 %v320
    %v1098 = vunpack.c.h.b16 %v320
    %v1099 = vunpack.c.l.b16 %v321
    %v1100 = vunpack.c.h.b16 %v321
    %v1101 = vunpack.c.l.b16 %v322
    %v1102 = vunpack.c.h.b16 %v322
    %v1103 = vunpack.c.l.b16 %v323
    %v1104 = vunpack.c.h.b16 %v323
    %v1105 = vunpack.c.l.b16 %v324
    %v1106 = vunpack.c.h.b16 %v324
    %v1107 = vunpack.c.l.b16 %v325
    %v1108 = vunpack.c.h.b16 %v325
    %v1109 = vunpack.c.l.b16 %v326
    %v1110 = vunpack.c.h.b16 %v326
    %v1111 = vunpack.c.l.b16 %v327
    %v1112 = vunpack.c.h.b16 %v327
    %v1113 = vunpack.c.l.b16 %v328
    %v1114 = vunpack.c.h.b16 %v328
    %v1115 = vunpack.c.l.b16 %v329
    %v1116 = vunpack.c.h.b16 %v329
    %v1117 = vunpack.c.l.b16 %v330
    %v1118 = vunpack.c.h.b16 %v330
    %v1119 = vunpack.c.l.b16 %v331
    %v1120 = vunpack.c.h.b16 %v331
    %v1121 = vunpack.c.l.b16 %v332
    %v1122 = vunpack.c.h.b16 %v332
    %v1123 = vunpack.c.l.b16 %v333
    %v1124 = vunpack.c.h.b16 %v333
    %v1125 = vunpack.c.l.b16 %v334
    %v1126 = vunpack.c.h.b16 %v334
    %v1127 = vunpack.c.l.b16 %v335
    %v1128 = vunpack.c.h.b16 %v335
    %v1129 = vunpack.c.l.b16 %v336
    %v1130 = vunpack.c.h.b16 %v336
    %v1131 = vunpack.c.l.b16 %v337
    %v1132 = vunpack.c.h.b16 %v337
    %v1133 = vunpack.c.l.b16 %v338
    %v1134 = vunpack.c.h.b16 %v338
    %v1135 = vunpack.c.l.b16 %v339
    %v1136 = vunpack.c.h.b16 %v339
    %v1137 = vunpack.c.l.b16 %v340
    %v1138 = vunpack.c.h.b16 %v340
    %v1139 = vunpack.c.l.b16 %v341
    %v1140 = vunpack.c.h.b16 %v341
    %v1141 = vunpack.c.l.b16 %v342
    %v1142 = vunpack.c.h.b16 %v342
    %v1143 = vunpack.c.l.b16 %v343
    %v1144 = vunpack.c.h.b16 %v343
    %v1145 = vunpack.c.l.b16 %v344
    %v1146 = vunpack.c.h.b16 %v344
    %v1147 = vunpack.c.l.b16 %v345
    %v1148 = vunpack.c.h.b16 %v345
    %v1149 = vunpack.c.l.b16 %v346
    %v1150 = vunpack.c.h.b16 %v346
    %v1151 = vunpack.c.l.b16 %v347
    %v1152 = vunpack.c.h.b16 %v347
    %v1153 = vunpack.c.l.b16 %v348
    %v1154 = vunpack.c.h.b16 %v348
    %v1155 = vunpack.c.l.b16 %v349
    %v1156 = vunpack.c.h.b16 %v349
    %v1157 = vunpack.c.l.b16 %v350
    %v1158 = vunpack.c.h.b16 %v350
    %v1159 = vunpack.c.l.b16 %v351
    %v1160 = vunpack.c.h.b16 %v351
    %v1161 = vunpack.c.l.b16 %v352
    %v1162 = vunpack.c.h.b16 %v352
    %v1163 = vunpack.c.l.b16 %v353
    %v1164 = vunpack.c.h.b16 %v353
    %v1165 = vunpack.c.l.b16 %v354
    %v1166 = vunpack.c.h.b16 %v354
    %v1167 = vunpack.c.l.b16 %v355
    %v1168 = vunpack.c.h.b16 %v355
    %v1169 = vunpack.c.l.b16 %v356
    %v1170 = vunpack.c.h.b16 %v356
    %v1171 = vunpack.c.l.b16 %v357
    %v1172 = vunpack.c.h.b16 %v357
    %v1173 = vunpack.c.l.b16 %v358
    %v1174 = vunpack.c.h.b16 %v358
    %v1175 = vunpack.c.l.b16 %v359
    %v1176 = vunpack.c.h.b16 %v359
    %v1177 = vunpack.c.l.b16 %v360
    %v1178 = vunpack.c.h.b16 %v360
    %v1179 = vunpack.c.l.b16 %v361
    %v1180 = vunpack.c.h.b16 %v361
    %v1181 = vunpack.c.l.b16 %v362
    %v1182 = vunpack.c.h.b16 %v362
    %v1183 = vunpack.c.l.b16 %v363
    %v1184 = vunpack.c.h.b16 %v363
    %v1185 = vunpack.c.l.b16 %v364
    %v1186 = vunpack.c.h.b16 %v364
    %v1187 = vunpack.c.l.b16 %v365
    %v1188 = vunpack.c.h.b16 %v365
    %v1189 = vunpack.c.l.b16 %v366
    %v1190 = vunpack.c.h.b16 %v366
    %v1191 = vunpack.c.l.b16 %v367
    %v1192 = vunpack.c.h.b16 %v367
    %v1193 = vunpack.c.l.b16 %v368
    %v1194 = vunpack.c.h.b16 %v368
    %v1195 = vunpack.c.l.b16 %v369
    %v1196 = vunpack.c.h.b16 %v369
    %v1197 = vunpack.c.l.b16 %v370
    %v1198 = vunpack.c.h.b16 %v370
    %v1199 = vunpack.c.l.b16 %v371
    %v1200 = vunpack.c.h.b16 %v371
    %v1201 = vunpack.c.l.b16 %v372
    %v1202 = vunpack.c.h.b16 %v372
    %v1203 = vunpack.c.l.b16 %v373
    %v1204 = vunpack.c.h.b16 %v373
    %v1205 = vunpack.c.l.b16 %v374
    %v1206 = vunpack.c.h.b16 %v374
    %v1207 = vunpack.c.l.b16 %v375
    %v1208 = vunpack.c.h.b16 %v375
    %v1209 = vunpack.c.l.b16 %v376
    %v1210 = vunpack.c.h.b16 %v376
    %v1211 = vunpack.c.l.b16 %v377
    %v1212 = vunpack.c.h.b16 %v377
    %v1213 = vunpack.c.l.b16 %v378
    %v1214 = vunpack.c.h.b16 %v378
    %v1215 = vunpack.c.l.b16 %v379
    %v1216 = vunpack.c.h.b16 %v379
    %v1217 = vunpack.c.l.b16 %v380
    %v1218 = vunpack.c.h.b16 %v380
    %v1219 = vunpack.c.l.b16 %v381
    %v1220 = vunpack.c.h.b16 %v381
    %v1221 = vunpack.c.l.b16 %v382
    %v1222 = vunpack.c.h.b16 %v382
    %v1223 = vunpack.c.l.b16 %v383
    %v1224 = vunpack.c.h.b16 %v383
    %v1225 = vunpack.c.l.b16 %v384
    %v1226 = vunpack.c.h.b16 %v384
    %v1227 = vunpack.c.l.b16 %v385
    %v1228 = vunpack.c.h.b16 %v385
    %v1229 = vunpack.c.l.b16 %v386
    %v1230 = vunpack.c.h.b16 %v386
    %v1231 = vunpack.c.l.b16 %v387
    %v1232 = vunpack.c.h.b16 %v387
    %v1233 = vunpack.c.l.b16 %v388
    %v1234 = vunpack.c.h.b16 %v388
    %v1235 = vunpack.c.l.b16 %v389
    %v1236 = vunpack.c.h.b16 %v389
    %v1237 = vunpack.c.l.b16 %v390
    %v1238 = vunpack.c.h.b16 %v390
    %v1239 = vunpack.c.l.b16 %v391
    %v1240 = vunpack.c.h.b16 %v391
    %v1241 = vunpack.c.l.b16 %v392
    %v1242 = vunpack.c.h.b16 %v392
    %v1243 = vunpack.c.l.b16 %v393
    %v1244 = vunpack.c.h.b16 %v393
    %v1245 = vunpack.c.l.b16 %v394
    %v1246 = vunpack.c.h.b16 %v394
    %v1247 = vunpack.c.l.b16 %v395
    %v1248 = vunpack.c.h.b16 %v395
    %v1249 = vunpack.c.l.b16 %v396
    %v1250 = vunpack.c.h.b16 %v396
    %v1251 = vunpack.c.l.b16 %v397
    %v1252 = vunpack.c.h.b16 %v397
    %v1253 = vunpack.c.l.b16 %v398
    %v1254 = vunpack.c.h.b16 %v398
    %v1255 = vunpack.c.l.b16 %v399
    %v1256 = vunpack.c.h.b16 %v399
    %v1257 = vunpack.c.l.b16 %v400
    %v1258 = vunpack.c.h.b16 %v400
    %v1259 = vunpack.c.l.b16 %v401
    %v1260 = vunpack.c.h.b16 %v401
    %v1261 = vunpack.c.l.b16 %v402
    %v1262 = vunpack.c.h.b16 %v402
    %v1263 = vunpack.c.l.b16 %v403
    %v1264 = vunpack.c.h.b16 %v403
    %v1265 = vunpack.c.l.b16 %v404
    %v1266 = vunpack.c.h.b16 %v404
    %v1267 = vunpack.c.l.b16 %v405
    %v1268 = vunpack.c.h.b16 %v405
    %v1269 = vunpack.c.l.b16 %v406
    %v1270 = vunpack.c.h.b16 %v406
    %v1271 = vunpack.c.l.b16 %v407
    %v1272 = vunpack.c.h.b16 %v407
    %v1273 = vunpack.c.l.b16 %v408
    %v1274 = vunpack.c.h.b16 %v408
    %v1275 = vunpack.c.l.b16 %v409
    %v1276 = vunpack.c.h.b16 %v409
    %v1277 = vunpack.c.l.b16 %v410
    %v1278 = vunpack.c.h.b16 %v410
    %v1279 = vunpack.c.l.b16 %v411
    %v1280 = vunpack.c.h.b16 %v411
    %v1281 = vunpack.c.l.b16 %v412
    %v1282 = vunpack.c.h.b16 %v412
    %v1283 = vunpack.c.l.b16 %v413
    %v1284 = vunpack.c.h.b16 %v413
    %v1285 = vunpack.c.l.b16 %v414
    %v1286 = vunpack.c.h.b16 %v414
    %v1287 = vunpack.c.l.b16 %v415
    %v1288 = vunpack.c.h.b16 %v415
    %v1289 = vunpack.c.l.b16 %v416
    %v1290 = vunpack.c.h.b16 %v416
    %v1291 = vunpack.c.l.b16 %v417
    %v1292 = vunpack.c.h.b16 %v417
    %v1293 = vunpack.c.l.b16 %v418
    %v1294 = vunpack.c.h.b16 %v418
    %v1295 = vunpack.c.l.b16 %v419
    %v1296 = vunpack.c.h.b16 %v419
    %v1297 = vunpack.c.l.b16 %v420
    %v1298 = vunpack.c.h.b16 %v420
    %v1299 = vunpack.c.l.b16 %v421
    %v1300 = vunpack.c.h.b16 %v421
    %v1301 = vunpack.c.l.b16 %v422
    %v1302 = vunpack.c.h.b16 %v422
    %v1303 = vunpack.c.l.b16 %v423
    %v1304 = vunpack.c.h.b16 %v423
    %v1305 = vunpack.c.l.b16 %v424
    %v1306 = vunpack.c.h.b16 %v424
    %v1307 = vunpack.c.l.b16 %v425
    %v1308 = vunpack.c.h.b16 %v425
    %v1309 = vunpack.c.l.b16 %v426
    %v1310 = vunpack.c.h.b16 %v426
    %v1311 = vunpack.c.l.b16 %v427
    %v1312 = vunpack.c.h.b16 %v427
    %v1313 = vunpack.c.l.b16 %v428
    %v1314 = vunpack.c.h.b16 %v428
    %v1315 = vunpack.c.l.b16 %v429
    %v1316 = vunpack.c.h.b16 %v429
    %v1317 = vunpack.c.l.b16 %v430
    %v1318 = vunpack.c.h.b16 %v430
    %v1319 = vunpack.c.l.b16 %v431
    %v1320 = vunpack.c.h.b16 %v431
    %v1321 = vunpack.c.l.b16 %v432
    %v1322 = vunpack.c.h.b16 %v432
    %v1323 = vpack.c.b16 %v815, %v811
    %v1324 = vpack.c.b16 %v816, %v812
    %v1325 = vpack.c.b16 %v817, %v813
    %v1326 = vpack.c.b16 %v818, %v814
    %v1327 = vpack.c.b16 %v823, %v819
    %v1328 = vpack.c.b16 %v824, %v820
    %v1329 = vpack.c.b16 %v825, %v821
    %v1330 = vpack.c.b16 %v826, %v822
    %v1331 = vpack.c.b16 %v831, %v827
    %v1332 = vpack.c.b16 %v832, %v828
    %v1333 = vpack.c.b16 %v833, %v829
    %v1334 = vpack.c.b16 %v834, %v830
    %v1335 = vpack.c.b16 %v839, %v835
    %v1336 = vpack.c.b16 %v840, %v836
    %v1337 = vpack.c.b16 %v841, %v837
    %v1338 = vpack.c.b16 %v842, %v838
    %v1339 = vpack.c.b16 %v847, %v843
    %v1340 = vpack.c.b16 %v848, %v844
    %v1341 = vpack.c.b16 %v849, %v845
    %v1342 = vpack.c.b16 %v850, %v846
    %v1343 = vpack.c.b16 %v855, %v851
    %v1344 = vpack.c.b16 %v856, %v852
    %v1345 = vpack.c.b16 %v857, %v853
    %v1346 = vpack.c.b16 %v858, %v854
    %v1347 = vpack.c.b16 %v863, %v859
    %v1348 = vpack.c.b16 %v864, %v860
    %v1349 = vpack.c.b16 %v865, %v861
    %v1350 = vpack.c.b16 %v866, %v862
    %v1351 = vpack.c.b16 %v871, %v867
    %v1352 = vpack.c.b16 %v872, %v868
    %v1353 = vpack.c.b16 %v873, %v869
    %v1354 = vpack.c.b16 %v874, %v870
    %v1355 = vpack.c.b16 %v879, %v875
    %v1356 = vpack.c.b16 %v880, %v876
    %v1357 = vpack.c.b16 %v881, %v877
    %v1358 = vpack.c.b16 %v882, %v878
    %v1359 = vpack.c.b16 %v887, %v883
    %v1360 = vpack.c.b16 %v888, %v884
    %v1361 = vpack.c.b16 %v889, %v885
    %v1362 = vpack.c.b16 %v890, %v886
    %v1363 = vpack.c.b16 %v895, %v891
    %v1364 = vpack.c.b16 %v896, %v892
    %v1365 = vpack.c.b16 %v897, %v893
    %v1366 = vpack.c.b16 %v898, %v894
    %v1367 = vpack.c.b16 %v903, %v899
    %v1368 = vpack.c.b16 %v904, %v900
    %v1369 = vpack.c.b16 %v905, %v901
    %v1370 = vpack.c.b16 %v906, %v902
    %v1371 = vpack.c.b16 %v911, %v907
    %v1372 = vpack.c.b16 %v912, %v908
    %v1373 = vpack.c.b16 %v913, %v909
    %v1374 = vpack.c.b16 %v914, %v910
    %v1375 = vpack.c.b16 %v919, %v915
    %v1376 = vpack.c.b16 %v920, %v916
    %v1377 = vpack.c.b16 %v921, %v917
    %v1378 = vpack.c.b16 %v922, %v918
    %v1379 = vpack.c.b16 %v927, %v923
    %v1380 = vpack.c.b16 %v928, %v924
    %v1381 = vpack.c.b16 %v929, %v925
    %v1382 = vpack.c.b16 %v930, %v926
    %v1383 = vpack.c.b16 %v935, %v931
    %v1384 = vpack.c.b16 %v936, %v932
    %v1385 = vpack.c.b16 %v937, %v933
    %v1386 = vpack.c.b16 %v938, %v934
    %v1387 = vpack.c.b16 %v943, %v939
    %v1388 = vpack.c.b16 %v944, %v940
    %v1389 = vpack.c.b16 %v945, %v941
    %v1390 = vpack.c.b16 %v946, %v942
    %v1391 = vpack.c.b16 %v951, %v947
    %v1392 = vpack.c.b16 %v952, %v948
    %v1393 = vpack.c.b16 %v953, %v949
    %v1394 = vpack.c.b16 %v954, %v950
    %v1395 = vpack.c.b16 %v959, %v955
    %v1396 = vpack.c.b16 %v960, %v956
    %v1397 = vpack.c.b16 %v961, %v957
    %v1398 = vpack.c.b16 %v962, %v958
    %v1399 = vpack.c.b16 %v967, %v963
    %v1400 = vpack.c.b16 %v968, %v964
    %v1401 = vpack.c.b16 %v969, %v965
    %v1402 = vpack.c.b16 %v970, %v966
    %v1403 = vpack.c.b16 %v975, %v971
    %v1404 = vpack.c.b16 %v976, %v972
    %v1405 = vpack.c.b16 %v977, %v973
    %v1406 = vpack.c.b16 %v978, %v974
    %v1407 = vpack.c.b16 %v983, %v979
    %v1408 = vpack.c.b16 %v984, %v980
    %v1409 = vpack.c.b16 %v985, %v981
    %v1410 = vpack.c.b16 %v986, %v982
    %v1411 = vpack.c.b16 %v991, %v987
    %v1412 = vpack.c.b16 %v992, %v988
    %v1413 = vpack.c.b16 %v993, %v989
    %v1414 = vpack.c.b16 %v994, %v990
    %v1415 = vpack.c.b16 %v999, %v995
    %v1416 = vpack.c.b16 %v1000, %v996
    %v1417 = vpack.c.b16 %v1001, %v997
    %v1418 = vpack.c.b16 %v1002, %v998
    %v1419 = vpack.c.b16 %v1007, %v1003
    %v1420 = vpack.c.b16 %v1008, %v1004
    %v1421 = vpack.c.b16 %v1009, %v1005
    %v1422 = vpack.c.b16 %v1010, %v1006
    %v1423 = vpack.c.b16 %v1015, %v1011
    %v1424 = vpack.c.b16 %v1016, %v1012
    %v1425 = vpack.c.b16 %v1017, %v1013
    %v1426 = vpack.c.b16 %v1018, %v1014
    %v1427 = vpack.c.b16 %v1023, %v1019
    %v1428 = vpack.c.b16 %v1024, %v1020
    %v1429 = vpack.c.b16 %v1025, %v1021
    %v1430 = vpack.c.b16 %v1026, %v1022
    %v1431 = vpack.c.b16 %v1031, %v1027
    %v1432 = vpack.c.b16 %v1032, %v1028
    %v1433 = vpack.c.b16 %v1033, %v1029
    %v1434 = vpack.c.b16 %v1034, %v1030
    %v1435 = vpack.c.b16 %v1039, %v1035
    %v1436 = vpack.c.b16 %v1040, %v1036
    %v1437 = vpack.c.b16 %v1041, %v1037
    %v1438 = vpack.c.b16 %v1042, %v1038
    %v1439 = vpack.c.b16 %v1047, %v1043
    %v1440 = vpack.c.b16 %v1048, %v1044
    %v1441 = vpack.c.b16 %v1049, %v1045
    %v1442 = vpack.c.b16 %v1050, %v1046
    %v1443 = vpack.c.b16 %v1055, %v1051
    %v1444 = vpack.c.b16 %v1056, %v1052
    %v1445 = vpack.c.b16 %v1057, %v1053
    %v1446 = vpack.c.b16 %v1058, %v1054
    %v1447 = vpack.c.b16 %v1063, %v1059
    %v1448 = vpack.c.b16 %v1064, %v1060
    %v1449 = vpack.c.b16 %v1065, %v1061
    %v1450 = vpack.c.b16 %v1066, %v1062
    %v1451 = vpack.c.b16 %v1071, %v1067
    %v1452 = vpack.c.b16 %v1072, %v1068
    %v1453 = vpack.c.b16 %v1073, %v1069
    %v1454 = vpack.c.b16 %v1074, %v1070
    %v1455 = vpack.c.b16 %v1079, %v1075
    %v1456 = vpack.c.b16 %v1080, %v1076
    %v1457 = vpack.c.b16 %v1081, %v1077
    %v1458 = vpack.c.b16 %v1082, %v1078
    %v1459 = vpack.c.b16 %v1087, %v1083
    %v1460 = vpack.c.b16 %v1088, %v1084
    %v1461 = vpack.c.b16 %v1089, %v1085
    %v1462 = vpack.c.b16 %v1090, %v1086
    %v1463 = vpack.c.b16 %v1095, %v1091
    %v1464 = vpack.c.b16 %v1096, %v1092
    %v1465 = vpack.c.b16 %v1097, %v1093
    %v1466 = vpack.c.b16 %v1098, %v1094
    %v1467 = vpack.c.b16 %v1103, %v1099
    %v1468 = vpack.c.b16 %v1104, %v1100
    %v1469 = vpack.c.b16 %v1105, %v1101
    %v1470 = vpack.c.b16 %v1106, %v1102
    %v1471 = vpack.c.b16 %v1111, %v1107
    %v1472 = vpack.c.b16 %v1112, %v1108
    %v1473 = vpack.c.b16 %v1113, %v1109
    %v1474 = vpack.c.b16 %v1114, %v1110
    %v1475 = vpack.c.b16 %v1119, %v1115
    %v1476 = vpack.c.b16 %v1120, %v1116
    %v1477 = vpack.c.b16 %v1121, %v1117
    %v1478 = vpack.c.b16 %v1122, %v1118
    %v1479 = vpack.c.b16 %v1127, %v1123
    %v1480 = vpack.c.b16 %v1128, %v1124
    %v1481 = vpack.c.b16 %v1129, %v1125
    %v1482 = vpack.c.b16 %v1130, %v1126
    %v1483 = vpack.c.b16 %v1135, %v1131
    %v1484 = vpack.c.b16 %v1136, %v1132
    %v1485 = vpack.c.b16 %v1137, %v1133
    %v1486 = vpack.c.b16 %v1138, %v1134
    %v1487 = vpack.c.b16 %v1143, %v1139
    %v1488 = vpack.c.b16 %v1144, %v1140
    %v1489 = vpack.c.b16 %v1145, %v1141
    %v1490 = vpack.c.b16 %v1146, %v1142
    %v1491 = vpack.c.b16 %v1151, %v1147
    %v1492 = vpack.c.b16 %v1152, %v1148
    %v1493 = vpack.c.b16 %v1153, %v1149
    %v1494 = vpack.c.b16 %v1154, %v1150
    %v1495 = vpack.c.b16 %v1159, %v1155
    %v1496 = vpack.c.b16 %v1160, %v1156
    %v1497 = vpack.c.b16 %v1161, %v1157
    %v1498 = vpack.c.b16 %v1162, %v1158
    %v1499 = vpack.c.b16 %v1167, %v1163
    %v1500 = vpack.c.b16 %v1168, %v1164
    %v1501 = vpack.c.b16 %v1169, %v1165
    %v1502 = vpack.c.b16 %v1170, %v1166
    %v1503 = vpack.c.b16 %v1175, %v1171
    %v1504 = vpack.c.b16 %v1176, %v1172
    %v1505 = vpack.c.b16 %v1177, %v1173
    %v1506 = vpack.c.b16 %v1178, %v1174
    %v1507 = vpack.c.b16 %v1183, %v1179
    %v1508 = vpack.c.b16 %v1184, %v1180
    %v1509 = vpack.c.b16 %v1185, %v1181
    %v1510 = vpack.c.b16 %v1186, %v1182
    %v1511 = vpack.c.b16 %v1191, %v1187
    %v1512 = vpack.c.b16 %v1192, %v1188
    %v1513 = vpack.c.b16 %v1193, %v1189
    %v1514 = vpack.c.b16 %v1194, %v1190
    %v1515 = vpack.c.b16 %v1199, %v1195
    %v1516 = vpack.c.b16 %v1200, %v1196
    %v1517 = vpack.c.b16 %v1201, %v1197
    %v1518 = vpack.c.b16 %v1202, %v1198
    %v1519 = vpack.c.b16 %v1207, %v1203
    %v1520 = vpack.c.b16 %v1208, %v1204
    %v1521 = vpack.c.b16 %v1209, %v1205
    %v1522 = vpack.c.b16 %v1210, %v1206
    %v1523 = vpack.c.b16 %v1215, %v1211
    %v1524 = vpack.c.b16 %v1216, %v1212
    %v1525 = vpack.c.b16 %v1217, %v1213
    %v1526 = vpack.c.b16 %v1218, %v1214
    %v1527 = vpack.c.b16 %v1223, %v1219
    %v1528 = vpack.c.b16 %v1224, %v1220
    %v1529 = vpack.c.b16 %v1225, %v1221
    %v1530 = vpack.c.b16 %v1226, %v1222
    %v1531 = vpack.c.b16 %v1231, %v1227
    %v1532 = vpack.c.b16 %v1232, %v1228
    %v1533 = vpack.c.b16 %v1233, %v1229
    %v1534 = vpack.c.b16 %v1234, %v1230
    %v1535 = vpack.c.b16 %v1239, %v1235
    %v1536 = vpack.c.b16 %v1240, %v1236
    %v1537 = vpack.c.b16 %v1241, %v1237
    %v1538 = vpack.c.b16 %v1242, %v1238
    %v1539 = vpack.c.b16 %v1247, %v1243
    %v1540 = vpack.c.b16 %v1248, %v1244
    %v1541 = vpack.c.b16 %v1249, %v1245
    %v1542 = vpack.c.b16 %v1250, %v1246
    %v1543 = vpack.c.b16 %v1255, %v1251
    %v1544 = vpack.c.b16 %v1256, %v1252
    %v1545 = vpack.c.b16 %v1257, %v1253
    %v1546 = vpack.c.b16 %v1258, %v1254
    %v1547 = vpack.c.b16 %v1263, %v1259
    %v1548 = vpack.c.b16 %v1264, %v1260
    %v1549 = vpack.c.b16 %v1265, %v1261
    %v1550 = vpack.c.b16 %v1266, %v1262
    %v1551 = vpack.c.b16 %v1271, %v1267
    %v1552 = vpack.c.b16 %v1272, %v1268
    %v1553 = vpack.c.b16 %v1273, %v1269
    %v1554 = vpack.c.b16 %v1274, %v1270
    %v1555 = vpack.c.b16 %v1279, %v1275
    %v1556 = vpack.c.b16 %v1280, %v1276
    %v1557 = vpack.c.b16 %v1281, %v1277
    %v1558 = vpack.c.b16 %v1282, %v1278
    %v1559 = vpack.c.b16 %v1287, %v1283
    %v1560 = vpack.c.b16 %v1288, %v1284
    %v1561 = vpack.c.b16 %v1289, %v1285
    %v1562 = vpack.c.b16 %v1290, %v1286
    %v1563 = vpack.c.b16 %v1295, %v1291
    %v1564 = vpack.c.b16 %v1296, %v1292
    %v1565 = vpack.c.b16 %v1297, %v1293
    %v1566 = vpack.c.b16 %v1298, %v1294
    %v1567 = vpack.c.b16 %v1303, %v1299
    %v1568 = vpack.c.b16 %v1304, %v1300
    %v1569 = vpack.c.b16 %v1305, %v1301
    %v1570 = vpack.c.b16 %v1306, %v1302
    %v1571 = vpack.c.b16 %v1311, %v1307
    %v1572 = vpack.c.b16 %v1312, %v1308
    %v1573 = vpack.c.b16 %v1313, %v1309
    %v1574 = vpack.c.b16 %v1314, %v1310
    %v1575 = vpack.c.b16 %v1319, %v1315
    %v1576 = vpack.c.b16 %v1320, %v1316
    %v1577 = vpack.c.b16 %v1321, %v1317
    %v1578 = vpack.c.b16 %v1322, %v1318
    %1835 = vmatprep.subr.bf16.mxu0 %v1324
    %1836 = vmatpush1.bf16.msra.mxu0 %v1323
    %1837 = vmatprep.subr.bf16.mxu0 %v1328
    %1838 = vmatpush1.bf16.msra.mxu0 %v1327
    %1839 = vmatprep.subr.bf16.mxu0 %v1332
    %1840 = vmatpush1.bf16.msra.mxu0 %v1331
    %1841 = vmatprep.subr.bf16.mxu0 %v1336
    %1842 = vmatpush1.bf16.msra.mxu0 %v1335
    %1843 = vmatprep.subr.bf16.mxu0 %v1340
    %1844 = vmatpush1.bf16.msra.mxu0 %v1339
    %1845 = vmatprep.subr.bf16.mxu0 %v1344
    %1846 = vmatpush1.bf16.msra.mxu0 %v1343
    %1847 = vmatprep.subr.bf16.mxu0 %v1348
    %1848 = vmatpush1.bf16.msra.mxu0 %v1347
    %1849 = vmatprep.subr.bf16.mxu0 %v1352
    %1850 = vmatpush1.bf16.msra.mxu0 %v1351
    %1851 = vmatprep.subr.bf16.mxu0 %v1356
    %1852 = vmatpush1.bf16.msra.mxu0 %v1355
    %1853 = vmatprep.subr.bf16.mxu0 %v1360
    %1854 = vmatpush1.bf16.msra.mxu0 %v1359
    %1855 = vmatprep.subr.bf16.mxu0 %v1364
    %1856 = vmatpush1.bf16.msra.mxu0 %v1363
    %1857 = vmatprep.subr.bf16.mxu0 %v1368
    %1858 = vmatpush1.bf16.msra.mxu0 %v1367
    %1859 = vmatprep.subr.bf16.mxu0 %v1372
    %1860 = vmatpush1.bf16.msra.mxu0 %v1371
    %1861 = vmatprep.subr.bf16.mxu0 %v1376
    %1862 = vmatpush1.bf16.msra.mxu0 %v1375
    %1863 = vmatprep.subr.bf16.mxu0 %v1380
    %1864 = vmatpush1.bf16.msra.mxu0 %v1379
    %1865 = vmatprep.subr.bf16.mxu0 %v1384
    %1866 = vmatpush1.bf16.msra.mxu0 %v1383
    %1867 = vmatprep.mubr.bf16.mxu0 %v168
    %1868 = vmatmul.mubr.bf16.gmra.mrb[0].mxu0 %v167
    %v1869 = vpop.f32.mrb[0].mxu0
    %v1870 = vadd.f32 %v508, %v1869
    %v1871 = vpop.f32.mrb[0].mxu0
    %v1872 = vadd.f32 %v510, %v1871
    %v1873 = vpop.f32.mrb[0].mxu0
    %v1874 = vpop.f32.mrb[0].mxu0
    %1875 = vdwg.mxu0
    %1876 = vmatprep.subr.bf16.mxu0 %v1388
    %1877 = vmatpush1.bf16.msra.mxu0 %v1387
    %1878 = vmatprep.subr.bf16.mxu0 %v1392
    %1879 = vmatpush1.bf16.msra.mxu0 %v1391
    %1880 = vmatprep.subr.bf16.mxu0 %v1396
    %1881 = vmatpush1.bf16.msra.mxu0 %v1395
    %1882 = vmatprep.subr.bf16.mxu0 %v1400
    %1883 = vmatpush1.bf16.msra.mxu0 %v1399
    %1884 = vmatprep.subr.bf16.mxu0 %v1404
    %1885 = vmatpush1.bf16.msra.mxu0 %v1403
    %1886 = vmatprep.subr.bf16.mxu0 %v1408
    %1887 = vmatpush1.bf16.msra.mxu0 %v1407
    %1888 = vmatprep.subr.bf16.mxu0 %v1412
    %1889 = vmatpush1.bf16.msra.mxu0 %v1411
    %1890 = vmatprep.subr.bf16.mxu0 %v1416
    %1891 = vmatpush1.bf16.msra.mxu0 %v1415
    %1892 = vmatprep.subr.bf16.mxu0 %v1420
    %1893 = vmatpush1.bf16.msra.mxu0 %v1419
    %1894 = vmatprep.subr.bf16.mxu0 %v1424
    %1895 = vmatpush1.bf16.msra.mxu0 %v1423
    %1896 = vmatprep.subr.bf16.mxu0 %v1428
    %1897 = vmatpush1.bf16.msra.mxu0 %v1427
    %1898 = vmatprep.subr.bf16.mxu0 %v1432
    %1899 = vmatpush1.bf16.msra.mxu0 %v1431
    %1900 = vmatprep.subr.bf16.mxu0 %v1436
    %1901 = vmatpush1.bf16.msra.mxu0 %v1435
    %1902 = vmatprep.subr.bf16.mxu0 %v1440
    %1903 = vmatpush1.bf16.msra.mxu0 %v1439
    %1904 = vmatprep.subr.bf16.mxu0 %v1444
    %1905 = vmatpush1.bf16.msra.mxu0 %v1443
    %1906 = vmatprep.subr.bf16.mxu0 %v1448
    %1907 = vmatpush1.bf16.msra.mxu0 %v1447
    %1908 = vmatprep.mubr.bf16.mxu0 %v170
    %1909 = vmatmul.mubr.bf16.gmra.mrb[0].mxu0 %v169
    %v1910 = vpop.f32.mrb[0].mxu0
    %v1911 = vadd.f32 %v1870, %v1910
    %v1912 = vpop.f32.mrb[0].mxu0
    %v1913 = vadd.f32 %v1872, %v1912
    %v1914 = vpop.f32.mrb[0].mxu0
    %v1915 = vpop.f32.mrb[0].mxu0
    %1916 = vdwg.mxu0
    %1917 = vmatprep.subr.bf16.mxu0 %v1452
    %1918 = vmatpush1.bf16.msra.mxu0 %v1451
    %1919 = vmatprep.subr.bf16.mxu0 %v1456
    %1920 = vmatpush1.bf16.msra.mxu0 %v1455
    %1921 = vmatprep.subr.bf16.mxu0 %v1460
    %1922 = vmatpush1.bf16.msra.mxu0 %v1459
    %1923 = vmatprep.subr.bf16.mxu0 %v1464
    %1924 = vmatpush1.bf16.msra.mxu0 %v1463
    %1925 = vmatprep.subr.bf16.mxu0 %v1468
    %1926 = vmatpush1.bf16.msra.mxu0 %v1467
    %1927 = vmatprep.subr.bf16.mxu0 %v1472
    %1928 = vmatpush1.bf16.msra.mxu0 %v1471
    %1929 = vmatprep.subr.bf16.mxu0 %v1476
    %1930 = vmatpush1.bf16.msra.mxu0 %v1475
    %1931 = vmatprep.subr.bf16.mxu0 %v1480
    %1932 = vmatpush1.bf16.msra.mxu0 %v1479
    %1933 = vmatprep.subr.bf16.mxu0 %v1484
    %1934 = vmatpush1.bf16.msra.mxu0 %v1483
    %1935 = vmatprep.subr.bf16.mxu0 %v1488
    %1936 = vmatpush1.bf16.msra.mxu0 %v1487
    %1937 = vmatprep.subr.bf16.mxu0 %v1492
    %1938 = vmatpush1.bf16.msra.mxu0 %v1491
    %1939 = vmatprep.subr.bf16.mxu0 %v1496
    %1940 = vmatpush1.bf16.msra.mxu0 %v1495
    %1941 = vmatprep.subr.bf16.mxu0 %v1500
    %1942 = vmatpush1.bf16.msra.mxu0 %v1499
    %1943 = vmatprep.subr.bf16.mxu0 %v1504
    %1944 = vmatpush1.bf16.msra.mxu0 %v1503
    %1945 = vmatprep.subr.bf16.mxu0 %v1508
    %1946 = vmatpush1.bf16.msra.mxu0 %v1507
    %1947 = vmatprep.subr.bf16.mxu0 %v1512
    %1948 = vmatpush1.bf16.msra.mxu0 %v1511
    %1949 = vmatprep.mubr.bf16.mxu0 %v172
    %1950 = vmatmul.mubr.bf16.gmra.mrb[0].mxu0 %v171
    %v1951 = vpop.f32.mrb[0].mxu0
    %v1952 = vadd.f32 %v1911, %v1951
    %v1953 = vpop.f32.mrb[0].mxu0
    %v1954 = vadd.f32 %v1913, %v1953
    %v1955 = vpop.f32.mrb[0].mxu0
    %v1956 = vpop.f32.mrb[0].mxu0
    %1957 = vdwg.mxu0
    %1958 = vmatprep.subr.bf16.mxu0 %v1516
    %1959 = vmatpush1.bf16.msra.mxu0 %v1515
    %1960 = vmatprep.subr.bf16.mxu0 %v1520
    %1961 = vmatpush1.bf16.msra.mxu0 %v1519
    %1962 = vmatprep.subr.bf16.mxu0 %v1524
    %1963 = vmatpush1.bf16.msra.mxu0 %v1523
    %1964 = vmatprep.subr.bf16.mxu0 %v1528
    %1965 = vmatpush1.bf16.msra.mxu0 %v1527
    %1966 = vmatprep.subr.bf16.mxu0 %v1532
    %1967 = vmatpush1.bf16.msra.mxu0 %v1531
    %1968 = vmatprep.subr.bf16.mxu0 %v1536
    %1969 = vmatpush1.bf16.msra.mxu0 %v1535
    %1970 = vmatprep.subr.bf16.mxu0 %v1540
    %1971 = vmatpush1.bf16.msra.mxu0 %v1539
    %1972 = vmatprep.subr.bf16.mxu0 %v1544
    %1973 = vmatpush1.bf16.msra.mxu0 %v1543
    %1974 = vmatprep.subr.bf16.mxu0 %v1548
    %1975 = vmatpush1.bf16.msra.mxu0 %v1547
    %1976 = vmatprep.subr.bf16.mxu0 %v1552
    %1977 = vmatpush1.bf16.msra.mxu0 %v1551
    %1978 = vmatprep.subr.bf16.mxu0 %v1556
    %1979 = vmatpush1.bf16.msra.mxu0 %v1555
    %1980 = vmatprep.subr.bf16.mxu0 %v1560
    %1981 = vmatpush1.bf16.msra.mxu0 %v1559
    %1982 = vmatprep.subr.bf16.mxu0 %v1564
    %1983 = vmatpush1.bf16.msra.mxu0 %v1563
    %1984 = vmatprep.subr.bf16.mxu0 %v1568
    %1985 = vmatpush1.bf16.msra.mxu0 %v1567
    %1986 = vmatprep.subr.bf16.mxu0 %v1572
    %1987 = vmatpush1.bf16.msra.mxu0 %v1571
    %1988 = vmatprep.subr.bf16.mxu0 %v1576
    %1989 = vmatpush1.bf16.msra.mxu0 %v1575
    %1990 = vmatprep.mubr.bf16.mxu0 %v174
    %1991 = vmatmul.mubr.bf16.gmra.mrb[0].mxu0 %v173
    %v1992 = vpop.f32.mrb[0].mxu0
    %v1993 = vadd.f32 %v1952, %v1992
    %v1994 = vpop.f32.mrb[0].mxu0
    %v1995 = vadd.f32 %v1954, %v1994
    %v1996 = vpop.f32.mrb[0].mxu0
    %v1997 = vpop.f32.mrb[0].mxu0
    %1998 = vdwg.mxu0
    %1999 = vmatprep.subr.bf16.mxu0 %v1326
    %2000 = vmatpush1.bf16.msra.mxu0 %v1325
    %2001 = vmatprep.subr.bf16.mxu0 %v1330
    %2002 = vmatpush1.bf16.msra.mxu0 %v1329
    %2003 = vmatprep.subr.bf16.mxu0 %v1334
    %2004 = vmatpush1.bf16.msra.mxu0 %v1333
    %2005 = vmatprep.subr.bf16.mxu0 %v1338
    %2006 = vmatpush1.bf16.msra.mxu0 %v1337
    %2007 = vmatprep.subr.bf16.mxu0 %v1342
    %2008 = vmatpush1.bf16.msra.mxu0 %v1341
    %2009 = vmatprep.subr.bf16.mxu0 %v1346
    %2010 = vmatpush1.bf16.msra.mxu0 %v1345
    %2011 = vmatprep.subr.bf16.mxu0 %v1350
    %2012 = vmatpush1.bf16.msra.mxu0 %v1349
    %2013 = vmatprep.subr.bf16.mxu0 %v1354
    %2014 = vmatpush1.bf16.msra.mxu0 %v1353
    %2015 = vmatprep.subr.bf16.mxu0 %v1358
    %2016 = vmatpush1.bf16.msra.mxu0 %v1357
    %2017 = vmatprep.subr.bf16.mxu0 %v1362
    %2018 = vmatpush1.bf16.msra.mxu0 %v1361
    %2019 = vmatprep.subr.bf16.mxu0 %v1366
    %2020 = vmatpush1.bf16.msra.mxu0 %v1365
    %2021 = vmatprep.subr.bf16.mxu0 %v1370
    %2022 = vmatpush1.bf16.msra.mxu0 %v1369
    %2023 = vmatprep.subr.bf16.mxu0 %v1374
    %2024 = vmatpush1.bf16.msra.mxu0 %v1373
    %2025 = vmatprep.subr.bf16.mxu0 %v1378
    %2026 = vmatpush1.bf16.msra.mxu0 %v1377
    %2027 = vmatprep.subr.bf16.mxu0 %v1382
    %2028 = vmatpush1.bf16.msra.mxu0 %v1381
    %2029 = vmatprep.subr.bf16.mxu0 %v1386
    %2030 = vmatpush1.bf16.msra.mxu0 %v1385
    %2031 = vmatprep.mubr.bf16.mxu0 %v168
    %2032 = vmatmul.mubr.bf16.gmra.mrb[0].mxu0 %v167
    %v2033 = vpop.f32.mrb[0].mxu0
    %v2034 = vadd.f32 %v549, %v2033
    %v2035 = vpop.f32.mrb[0].mxu0
    %v2036 = vadd.f32 %v551, %v2035
    %v2037 = vpop.f32.mrb[0].mxu0
    %v2038 = vpop.f32.mrb[0].mxu0
    %2039 = vdwg.mxu0
    %2040 = vmatprep.subr.bf16.mxu0 %v1390
    %2041 = vmatpush1.bf16.msra.mxu0 %v1389
    %2042 = vmatprep.subr.bf16.mxu0 %v1394
    %2043 = vmatpush1.bf16.msra.mxu0 %v1393
    %2044 = vmatprep.subr.bf16.mxu0 %v1398
    %2045 = vmatpush1.bf16.msra.mxu0 %v1397
    %2046 = vmatprep.subr.bf16.mxu0 %v1402
    %2047 = vmatpush1.bf16.msra.mxu0 %v1401
    %2048 = vmatprep.subr.bf16.mxu0 %v1406
    %2049 = vmatpush1.bf16.msra.mxu0 %v1405
    %2050 = vmatprep.subr.bf16.mxu0 %v1410
    %2051 = vmatpush1.bf16.msra.mxu0 %v1409
    %2052 = vmatprep.subr.bf16.mxu0 %v1414
    %2053 = vmatpush1.bf16.msra.mxu0 %v1413
    %2054 = vmatprep.subr.bf16.mxu0 %v1418
    %2055 = vmatpush1.bf16.msra.mxu0 %v1417
    %2056 = vmatprep.subr.bf16.mxu0 %v1422
    %2057 = vmatpush1.bf16.msra.mxu0 %v1421
    %2058 = vmatprep.subr.bf16.mxu0 %v1426
    %2059 = vmatpush1.bf16.msra.mxu0 %v1425
    %2060 = vmatprep.subr.bf16.mxu0 %v1430
    %2061 = vmatpush1.bf16.msra.mxu0 %v1429
    %2062 = vmatprep.subr.bf16.mxu0 %v1434
    %2063 = vmatpush1.bf16.msra.mxu0 %v1433
    %2064 = vmatprep.subr.bf16.mxu0 %v1438
    %2065 = vmatpush1.bf16.msra.mxu0 %v1437
    %2066 = vmatprep.subr.bf16.mxu0 %v1442
    %2067 = vmatpush1.bf16.msra.mxu0 %v1441
    %2068 = vmatprep.subr.bf16.mxu0 %v1446
    %2069 = vmatpush1.bf16.msra.mxu0 %v1445
    %2070 = vmatprep.subr.bf16.mxu0 %v1450
    %2071 = vmatpush1.bf16.msra.mxu0 %v1449
    %2072 = vmatprep.mubr.bf16.mxu0 %v170
    %2073 = vmatmul.mubr.bf16.gmra.mrb[0].mxu0 %v169
    %v2074 = vpop.f32.mrb[0].mxu0
    %v2075 = vadd.f32 %v2034, %v2074
    %v2076 = vpop.f32.mrb[0].mxu0
    %v2077 = vadd.f32 %v2036, %v2076
    %v2078 = vpop.f32.mrb[0].mxu0
    %v2079 = vpop.f32.mrb[0].mxu0
    %2080 = vdwg.mxu0
    %2081 = vmatprep.subr.bf16.mxu0 %v1454
    %2082 = vmatpush1.bf16.msra.mxu0 %v1453
    %2083 = vmatprep.subr.bf16.mxu0 %v1458
    %2084 = vmatpush1.bf16.msra.mxu0 %v1457
    %2085 = vmatprep.subr.bf16.mxu0 %v1462
    %2086 = vmatpush1.bf16.msra.mxu0 %v1461
    %2087 = vmatprep.subr.bf16.mxu0 %v1466
    %2088 = vmatpush1.bf16.msra.mxu0 %v1465
    %2089 = vmatprep.subr.bf16.mxu0 %v1470
    %2090 = vmatpush1.bf16.msra.mxu0 %v1469
    %2091 = vmatprep.subr.bf16.mxu0 %v1474
    %2092 = vmatpush1.bf16.msra.mxu0 %v1473
    %2093 = vmatprep.subr.bf16.mxu0 %v1478
    %2094 = vmatpush1.bf16.msra.mxu0 %v1477
    %2095 = vmatprep.subr.bf16.mxu0 %v1482
    %2096 = vmatpush1.bf16.msra.mxu0 %v1481
    %2097 = vmatprep.subr.bf16.mxu0 %v1486
    %2098 = vmatpush1.bf16.msra.mxu0 %v1485
    %2099 = vmatprep.subr.bf16.mxu0 %v1490
    %2100 = vmatpush1.bf16.msra.mxu0 %v1489
    %2101 = vmatprep.subr.bf16.mxu0 %v1494
    %2102 = vmatpush1.bf16.msra.mxu0 %v1493
    %2103 = vmatprep.subr.bf16.mxu0 %v1498
    %2104 = vmatpush1.bf16.msra.mxu0 %v1497
    %2105 = vmatprep.subr.bf16.mxu0 %v1502
    %2106 = vmatpush1.bf16.msra.mxu0 %v1501
    %2107 = vmatprep.subr.bf16.mxu0 %v1506
    %2108 = vmatpush1.bf16.msra.mxu0 %v1505
    %2109 = vmatprep.subr.bf16.mxu0 %v1510
    %2110 = vmatpush1.bf16.msra.mxu0 %v1509
    %2111 = vmatprep.subr.bf16.mxu0 %v1514
    %2112 = vmatpush1.bf16.msra.mxu0 %v1513
    %2113 = vmatprep.mubr.bf16.mxu0 %v172
    %2114 = vmatmul.mubr.bf16.gmra.mrb[0].mxu0 %v171
    %v2115 = vpop.f32.mrb[0].mxu0
    %v2116 = vadd.f32 %v2075, %v2115
    %v2117 = vpop.f32.mrb[0].mxu0
    %v2118 = vadd.f32 %v2077, %v2117
    %v2119 = vpop.f32.mrb[0].mxu0
    %v2120 = vpop.f32.mrb[0].mxu0
    %2121 = vdwg.mxu0
    %2122 = vmatprep.subr.bf16.mxu0 %v1518
    %2123 = vmatpush1.bf16.msra.mxu0 %v1517
    %2124 = vmatprep.subr.bf16.mxu0 %v1522
    %2125 = vmatpush1.bf16.msra.mxu0 %v1521
    %2126 = vmatprep.subr.bf16.mxu0 %v1526
    %2127 = vmatpush1.bf16.msra.mxu0 %v1525
    %2128 = vmatprep.subr.bf16.mxu0 %v1530
    %2129 = vmatpush1.bf16.msra.mxu0 %v1529
    %2130 = vmatprep.subr.bf16.mxu0 %v1534
    %2131 = vmatpush1.bf16.msra.mxu0 %v1533
    %2132 = vmatprep.subr.bf16.mxu0 %v1538
    %2133 = vmatpush1.bf16.msra.mxu0 %v1537
    %2134 = vmatprep.subr.bf16.mxu0 %v1542
    %2135 = vmatpush1.bf16.msra.mxu0 %v1541
    %2136 = vmatprep.subr.bf16.mxu0 %v1546
    %2137 = vmatpush1.bf16.msra.mxu0 %v1545
    %2138 = vmatprep.subr.bf16.mxu0 %v1550
    %2139 = vmatpush1.bf16.msra.mxu0 %v1549
    %2140 = vmatprep.subr.bf16.mxu0 %v1554
    %2141 = vmatpush1.bf16.msra.mxu0 %v1553
    %2142 = vmatprep.subr.bf16.mxu0 %v1558
    %2143 = vmatpush1.bf16.msra.mxu0 %v1557
    %2144 = vmatprep.subr.bf16.mxu0 %v1562
    %2145 = vmatpush1.bf16.msra.mxu0 %v1561
    %2146 = vmatprep.subr.bf16.mxu0 %v1566
    %2147 = vmatpush1.bf16.msra.mxu0 %v1565
    %2148 = vmatprep.subr.bf16.mxu0 %v1570
    %2149 = vmatpush1.bf16.msra.mxu0 %v1569
    %2150 = vmatprep.subr.bf16.mxu0 %v1574
    %2151 = vmatpush1.bf16.msra.mxu0 %v1573
    %2152 = vmatprep.subr.bf16.mxu0 %v1578
    %2153 = vmatpush1.bf16.msra.mxu0 %v1577
    %2154 = vmatprep.mubr.bf16.mxu0 %v174
    %2155 = vmatmul.mubr.bf16.gmra.mrb[0].mxu0 %v173
    %v2156 = vpop.f32.mrb[0].mxu0
    %v2157 = vadd.f32 %v2116, %v2156
    %v2158 = vpop.f32.mrb[0].mxu0
    %v2159 = vadd.f32 %v2118, %v2158
    %v2160 = vpop.f32.mrb[0].mxu0
    %v2161 = vpop.f32.mrb[0].mxu0
    %2162 = vdwg.mxu0
    %v2163 = vmax.f32 %v1993, 0.0
    %v2164 = vmax.f32 %v1995, 0.0
    %v2165 = vmax.f32 %v2157, 0.0
    %v2166 = vmax.f32 %v2159, 0.0
    %v2167 = vpack.c.bf16 %v2163, %v2163
    %v2168 = vpack.c.bf16 %v2164, %v2164
    %v2169 = vpack.c.bf16 %v2165, %v2165
    %v2170 = vpack.c.bf16 %v2166, %v2166
    %v2171 = vld [vmem:[#allocation11] sm:$0xf]
    %v2172 = vld [vmem:[#allocation11 + $0x4] sm:$0xf]
    %v2173 = vld [vmem:[#allocation11 + $0x8] sm:$0xf]
    %v2174 = vld [vmem:[#allocation11 + $0xc] sm:$0xf]
    %v2175 = vld [vmem:[#allocation11 + $0x10] sm:$0xf]
    %v2176 = vld [vmem:[#allocation11 + $0x14] sm:$0xf]
    %v2177 = vld [vmem:[#allocation11 + $0x18] sm:$0xf]
    %v2178 = vld [vmem:[#allocation11 + $0x1c] sm:$0xf]
    %v2179 = vld [vmem:[#allocation11 + $0x20] sm:$0xf]
    %v2180 = vld [vmem:[#allocation11 + $0x24] sm:$0xf]
    %v2181 = vld [vmem:[#allocation11 + $0x28] sm:$0xf]
    %v2182 = vld [vmem:[#allocation11 + $0x2c] sm:$0xf]
    %v2183 = vld [vmem:[#allocation11 + $0x30] sm:$0xf]
    %v2184 = vld [vmem:[#allocation11 + $0x34] sm:$0xf]
    %v2185 = vld [vmem:[#allocation11 + $0x38] sm:$0xf]
    %v2186 = vld [vmem:[#allocation11 + $0x3c] sm:$0xf]
    %v2187 = vld [vmem:[#allocation11 + $0x40] sm:$0xf]
    %v2188 = vld [vmem:[#allocation11 + $0x44] sm:$0xf]
    %v2189 = vld [vmem:[#allocation11 + $0x48] sm:$0xf]
    %v2190 = vld [vmem:[#allocation11 + $0x4c] sm:$0xf]
    %v2191 = vld [vmem:[#allocation11 + $0x50] sm:$0xf]
    %v2192 = vld [vmem:[#allocation11 + $0x54] sm:$0xf]
    %v2193 = vld [vmem:[#allocation11 + $0x58] sm:$0xf]
    %v2194 = vld [vmem:[#allocation11 + $0x5c] sm:$0xf]
    %v2195 = vld [vmem:[#allocation11 + $0x60] sm:$0xf]
    %v2196 = vld [vmem:[#allocation11 + $0x64] sm:$0xf]
    %v2197 = vld [vmem:[#allocation11 + $0x68] sm:$0xf]
    %v2198 = vld [vmem:[#allocation11 + $0x6c] sm:$0xf]
    %v2199 = vld [vmem:[#allocation11 + $0x70] sm:$0xf]
    %v2200 = vld [vmem:[#allocation11 + $0x74] sm:$0xf]
    %v2201 = vld [vmem:[#allocation11 + $0x78] sm:$0xf]
    %v2202 = vld [vmem:[#allocation11 + $0x7c] sm:$0xf]
    %v2203 = vld [vmem:[#allocation11 + $0x80] sm:$0xf]
    %v2204 = vld [vmem:[#allocation11 + $0x84] sm:$0xf]
    %v2205 = vld [vmem:[#allocation11 + $0x88] sm:$0xf]
    %v2206 = vld [vmem:[#allocation11 + $0x8c] sm:$0xf]
    %v2207 = vld [vmem:[#allocation11 + $0x90] sm:$0xf]
    %v2208 = vld [vmem:[#allocation11 + $0x94] sm:$0xf]
    %v2209 = vld [vmem:[#allocation11 + $0x98] sm:$0xf]
    %v2210 = vld [vmem:[#allocation11 + $0x9c] sm:$0xf]
    %v2211 = vld [vmem:[#allocation11 + $0xa0] sm:$0xf]
    %v2212 = vld [vmem:[#allocation11 + $0xa4] sm:$0xf]
    %v2213 = vld [vmem:[#allocation11 + $0xa8] sm:$0xf]
    %v2214 = vld [vmem:[#allocation11 + $0xac] sm:$0xf]
    %v2215 = vld [vmem:[#allocation11 + $0xb0] sm:$0xf]
    %v2216 = vld [vmem:[#allocation11 + $0xb4] sm:$0xf]
    %v2217 = vld [vmem:[#allocation11 + $0xb8] sm:$0xf]
    %v2218 = vld [vmem:[#allocation11 + $0xbc] sm:$0xf]
    %v2219 = vld [vmem:[#allocation11 + $0xc0] sm:$0xf]
    %v2220 = vld [vmem:[#allocation11 + $0xc4] sm:$0xf]
    %v2221 = vld [vmem:[#allocation11 + $0xc8] sm:$0xf]
    %v2222 = vld [vmem:[#allocation11 + $0xcc] sm:$0xf]
    %v2223 = vld [vmem:[#allocation11 + $0xd0] sm:$0xf]
    %v2224 = vld [vmem:[#allocation11 + $0xd4] sm:$0xf]
    %v2225 = vld [vmem:[#allocation11 + $0xd8] sm:$0xf]
    %v2226 = vld [vmem:[#allocation11 + $0xdc] sm:$0xf]
    %v2227 = vld [vmem:[#allocation11 + $0xe0] sm:$0xf]
    %v2228 = vld [vmem:[#allocation11 + $0xe4] sm:$0xf]
    %v2229 = vld [vmem:[#allocation11 + $0xe8] sm:$0xf]
    %v2230 = vld [vmem:[#allocation11 + $0xec] sm:$0xf]
    %v2231 = vld [vmem:[#allocation11 + $0xf0] sm:$0xf]
    %v2232 = vld [vmem:[#allocation11 + $0xf4] sm:$0xf]
    %v2233 = vld [vmem:[#allocation11 + $0xf8] sm:$0xf]
    %v2234 = vld [vmem:[#allocation11 + $0xfc] sm:$0xf]
    %v2235 = vld [vmem:[%s6] sm:$0x1]
    %v2237 = vlaneseq
    %v2238 = vshrl.u32 %v2237, 7
    %v2239 = vsub.s32 0, %v2238
    %v2240 = vrot.slane %v2235, %v2239
    %v2306 = vunpack.c.l.b16 %v2171
    %v2307 = vunpack.c.l.b16 %v2172
    %v2308 = vunpack.c.l.b16 %v2173
    %v2309 = vunpack.c.l.b16 %v2174
    %v2310 = vunpack.c.l.b16 %v2175
    %v2311 = vunpack.c.l.b16 %v2176
    %v2312 = vunpack.c.l.b16 %v2177
    %v2313 = vunpack.c.l.b16 %v2178
    %v2314 = vunpack.c.l.b16 %v2179
    %v2315 = vunpack.c.l.b16 %v2180
    %v2316 = vunpack.c.l.b16 %v2181
    %v2317 = vunpack.c.l.b16 %v2182
    %v2318 = vunpack.c.l.b16 %v2183
    %v2319 = vunpack.c.l.b16 %v2184
    %v2320 = vunpack.c.l.b16 %v2185
    %v2321 = vunpack.c.l.b16 %v2186
    %v2322 = vunpack.c.l.b16 %v2187
    %v2323 = vunpack.c.l.b16 %v2188
    %v2324 = vunpack.c.l.b16 %v2189
    %v2325 = vunpack.c.l.b16 %v2190
    %v2326 = vunpack.c.l.b16 %v2191
    %v2327 = vunpack.c.l.b16 %v2192
    %v2328 = vunpack.c.l.b16 %v2193
    %v2329 = vunpack.c.l.b16 %v2194
    %v2330 = vunpack.c.l.b16 %v2195
    %v2331 = vunpack.c.l.b16 %v2196
    %v2332 = vunpack.c.l.b16 %v2197
    %v2333 = vunpack.c.l.b16 %v2198
    %v2334 = vunpack.c.l.b16 %v2199
    %v2335 = vunpack.c.l.b16 %v2200
    %v2336 = vunpack.c.l.b16 %v2201
    %v2337 = vunpack.c.l.b16 %v2202
    %v2338 = vunpack.c.l.b16 %v2203
    %v2339 = vunpack.c.l.b16 %v2204
    %v2340 = vunpack.c.l.b16 %v2205
    %v2341 = vunpack.c.l.b16 %v2206
    %v2342 = vunpack.c.l.b16 %v2207
    %v2343 = vunpack.c.l.b16 %v2208
    %v2344 = vunpack.c.l.b16 %v2209
    %v2345 = vunpack.c.l.b16 %v2210
    %v2346 = vunpack.c.l.b16 %v2211
    %v2347 = vunpack.c.l.b16 %v2212
    %v2348 = vunpack.c.l.b16 %v2213
    %v2349 = vunpack.c.l.b16 %v2214
    %v2350 = vunpack.c.l.b16 %v2215
    %v2351 = vunpack.c.l.b16 %v2216
    %v2352 = vunpack.c.l.b16 %v2217
    %v2353 = vunpack.c.l.b16 %v2218
    %v2354 = vunpack.c.l.b16 %v2219
    %v2355 = vunpack.c.l.b16 %v2220
    %v2356 = vunpack.c.l.b16 %v2221
    %v2357 = vunpack.c.l.b16 %v2222
    %v2358 = vunpack.c.l.b16 %v2223
    %v2359 = vunpack.c.l.b16 %v2224
    %v2360 = vunpack.c.l.b16 %v2225
    %v2361 = vunpack.c.l.b16 %v2226
    %v2362 = vunpack.c.l.b16 %v2227
    %v2363 = vunpack.c.l.b16 %v2228
    %v2364 = vunpack.c.l.b16 %v2229
    %v2365 = vunpack.c.l.b16 %v2230
    %v2366 = vunpack.c.l.b16 %v2231
    %v2367 = vunpack.c.l.b16 %v2232
    %v2368 = vunpack.c.l.b16 %v2233
    %v2369 = vunpack.c.l.b16 %v2234
    %v2370 = vpack.c.b16 %v2307, %v2306
    %v2371 = vpack.c.b16 %v2309, %v2308
    %v2372 = vpack.c.b16 %v2311, %v2310
    %v2373 = vpack.c.b16 %v2313, %v2312
    %v2374 = vpack.c.b16 %v2315, %v2314
    %v2375 = vpack.c.b16 %v2317, %v2316
    %v2376 = vpack.c.b16 %v2319, %v2318
    %v2377 = vpack.c.b16 %v2321, %v2320
    %v2378 = vpack.c.b16 %v2323, %v2322
    %v2379 = vpack.c.b16 %v2325, %v2324
    %v2380 = vpack.c.b16 %v2327, %v2326
    %v2381 = vpack.c.b16 %v2329, %v2328
    %v2382 = vpack.c.b16 %v2331, %v2330
    %v2383 = vpack.c.b16 %v2333, %v2332
    %v2384 = vpack.c.b16 %v2335, %v2334
    %v2385 = vpack.c.b16 %v2337, %v2336
    %v2386 = vpack.c.b16 %v2339, %v2338
    %v2387 = vpack.c.b16 %v2341, %v2340
    %v2388 = vpack.c.b16 %v2343, %v2342
    %v2389 = vpack.c.b16 %v2345, %v2344
    %v2390 = vpack.c.b16 %v2347, %v2346
    %v2391 = vpack.c.b16 %v2349, %v2348
    %v2392 = vpack.c.b16 %v2351, %v2350
    %v2393 = vpack.c.b16 %v2353, %v2352
    %v2394 = vpack.c.b16 %v2355, %v2354
    %v2395 = vpack.c.b16 %v2357, %v2356
    %v2396 = vpack.c.b16 %v2359, %v2358
    %v2397 = vpack.c.b16 %v2361, %v2360
    %v2398 = vpack.c.b16 %v2363, %v2362
    %v2399 = vpack.c.b16 %v2365, %v2364
    %v2400 = vpack.c.b16 %v2367, %v2366
    %v2401 = vpack.c.b16 %v2369, %v2368
    %2434 = vmatprep.subr.bf16.mxu0 0
    %2435 = vmatpush1.bf16.msra.mxu0 %v2370
    %2436 = vmatprep.subr.bf16.mxu0 0
    %2437 = vmatpush1.bf16.msra.mxu0 %v2371
    %2438 = vmatprep.subr.bf16.mxu0 0
    %2439 = vmatpush1.bf16.msra.mxu0 %v2372
    %2440 = vmatprep.subr.bf16.mxu0 0
    %2441 = vmatpush1.bf16.msra.mxu0 %v2373
    %2442 = vmatprep.subr.bf16.mxu0 0
    %2443 = vmatpush1.bf16.msra.mxu0 %v2374
    %2444 = vmatprep.subr.bf16.mxu0 0
    %2445 = vmatpush1.bf16.msra.mxu0 %v2375
    %2446 = vmatprep.subr.bf16.mxu0 0
    %2447 = vmatpush1.bf16.msra.mxu0 %v2376
    %2448 = vmatprep.subr.bf16.mxu0 0
    %2449 = vmatpush1.bf16.msra.mxu0 %v2377
    %2450 = vmatprep.subr.bf16.mxu0 0
    %2451 = vmatpush1.bf16.msra.mxu0 %v2378
    %2452 = vmatprep.subr.bf16.mxu0 0
    %2453 = vmatpush1.bf16.msra.mxu0 %v2379
    %2454 = vmatprep.subr.bf16.mxu0 0
    %2455 = vmatpush1.bf16.msra.mxu0 %v2380
    %2456 = vmatprep.subr.bf16.mxu0 0
    %2457 = vmatpush1.bf16.msra.mxu0 %v2381
    %2458 = vmatprep.subr.bf16.mxu0 0
    %2459 = vmatpush1.bf16.msra.mxu0 %v2382
    %2460 = vmatprep.subr.bf16.mxu0 0
    %2461 = vmatpush1.bf16.msra.mxu0 %v2383
    %2462 = vmatprep.subr.bf16.mxu0 0
    %2463 = vmatpush1.bf16.msra.mxu0 %v2384
    %2464 = vmatprep.subr.bf16.mxu0 0
    %2465 = vmatpush1.bf16.msra.mxu0 %v2385
    %2466 = vmatprep.mubr.bf16.mxu0 %v2168
    %2467 = vmatmul.mubr.bf16.gmra.mrb[0].mxu0 %v2167
    %v2468 = vpop.f32.mrb[0].mxu0
    %v2469 = vadd.f32 %v2240, %v2468
    %v2470 = vpop.f32.mrb[0].mxu0
    %v2471 = vpop.f32.mrb[0].mxu0
    %v2472 = vpop.f32.mrb[0].mxu0
    %2473 = vdwg.mxu0
    %2474 = vmatprep.subr.bf16.mxu0 0
    %2475 = vmatpush1.bf16.msra.mxu0 %v2386
    %2476 = vmatprep.subr.bf16.mxu0 0
    %2477 = vmatpush1.bf16.msra.mxu0 %v2387
    %2478 = vmatprep.subr.bf16.mxu0 0
    %2479 = vmatpush1.bf16.msra.mxu0 %v2388
    %2480 = vmatprep.subr.bf16.mxu0 0
    %2481 = vmatpush1.bf16.msra.mxu0 %v2389
    %2482 = vmatprep.subr.bf16.mxu0 0
    %2483 = vmatpush1.bf16.msra.mxu0 %v2390
    %2484 = vmatprep.subr.bf16.mxu0 0
    %2485 = vmatpush1.bf16.msra.mxu0 %v2391
    %2486 = vmatprep.subr.bf16.mxu0 0
    %2487 = vmatpush1.bf16.msra.mxu0 %v2392
    %2488 = vmatprep.subr.bf16.mxu0 0
    %2489 = vmatpush1.bf16.msra.mxu0 %v2393
    %2490 = vmatprep.subr.bf16.mxu0 0
    %2491 = vmatpush1.bf16.msra.mxu0 %v2394
    %2492 = vmatprep.subr.bf16.mxu0 0
    %2493 = vmatpush1.bf16.msra.mxu0 %v2395
    %2494 = vmatprep.subr.bf16.mxu0 0
    %2495 = vmatpush1.bf16.msra.mxu0 %v2396
    %2496 = vmatprep.subr.bf16.mxu0 0
    %2497 = vmatpush1.bf16.msra.mxu0 %v2397
    %2498 = vmatprep.subr.bf16.mxu0 0
    %2499 = vmatpush1.bf16.msra.mxu0 %v2398
    %2500 = vmatprep.subr.bf16.mxu0 0
    %2501 = vmatpush1.bf16.msra.mxu0 %v2399
    %2502 = vmatprep.subr.bf16.mxu0 0
    %2503 = vmatpush1.bf16.msra.mxu0 %v2400
    %2504 = vmatprep.subr.bf16.mxu0 0
    %2505 = vmatpush1.bf16.msra.mxu0 %v2401
    %2506 = vmatprep.mubr.bf16.mxu0 %v2170
    %2507 = vmatmul.mubr.bf16.gmra.mrb[0].mxu0 %v2169
    %v2508 = vpop.f32.mrb[0].mxu0
    %v2509 = vadd.f32 %v2469, %v2508
    %v2510 = vpop.f32.mrb[0].mxu0
    %v2511 = vpop.f32.mrb[0].mxu0
    %v2512 = vpop.f32.mrb[0].mxu0
    %2513 = vdwg.mxu0
    %2514 = vst [vmem:[#allocation18] sm:$0xff] %v2509
    %v2515 = vld [vmem:[#allocation7] sm:$0xff]
    %v2516 = vmul.f32 %v2509, 0.5
    %v2517 = vmul.f32 %v2516, 1.442695
    %v2518 = vpow.pop %v2517
    %2520 = vrot.lane.b32.xlu0 %v2518, 96
    %v2521 = vpop.permute.xlu0 %2520
    %v2523 = vmul.f32 %v2515, %v2521
    %v2524 = vadd.f32 %v2509, %v2523
    %v2525 = vpack.c.bf16 %v2524, %v2524
    %v2526 = vld [vmem:[#allocation13] sm:$0xff]
    %v2527 = vld [vmem:[#allocation13 + $0x8] sm:$0xff]
    %v2528 = vld [vmem:[#allocation13 + $0x10] sm:$0xff]
    %v2529 = vld [vmem:[#allocation13 + $0x18] sm:$0xff]
    %v2530 = vld [vmem:[#allocation13 + $0x20] sm:$0xff]
    %v2531 = vld [vmem:[#allocation13 + $0x28] sm:$0xff]
    %v2532 = vld [vmem:[#allocation13 + $0x30] sm:$0xff]
    %v2533 = vld [vmem:[#allocation13 + $0x38] sm:$0xff]
    %v2534 = vld [vmem:[#allocation14] sm:$0xff]
    %v2535 = vld [vmem:[#allocation14 + $0x8] sm:$0xff]
    %v2536 = vld [vmem:[#allocation14 + $0x10] sm:$0x11]
    %v2537 = vld [vmem:[#allocation14 + $0x18] sm:$0x11]
    %v2542 = vunpack.c.l.b16 %v2534
    %v2543 = vunpack.c.h.b16 %v2534
    %v2544 = vunpack.c.l.b16 %v2535
    %v2545 = vunpack.c.h.b16 %v2535
    %v2546 = vunpack.c.l.b16 %v2536
    %v2547 = vunpack.c.h.b16 %v2536
    %v2548 = vunpack.c.l.b16 %v2537
    %v2549 = vunpack.c.h.b16 %v2537
    %v2550 = vpack.c.b16 %v2546, %v2542
    %v2551 = vpack.c.b16 %v2547, %v2543
    %v2552 = vpack.c.b16 %v2548, %v2544
    %v2553 = vpack.c.b16 %v2549, %v2545
    %v2555 = vand.u32 %v2550, %v460
    %v2558 = vand.u32 %v2551, %v460
    %v2561 = vand.u32 %v2552, %v460
    %v2564 = vand.u32 %v2553, %v460
    %2566 = vmatprep.subr.bf16.mxu0 %v2558
    %2567 = vmatpush1.bf16.msra.mxu0 %v2555
    %2568 = vmatprep.subr.bf16.mxu0 0
    %2569 = vmatpush1.bf16.msra.mxu0 0
    %2570 = vmatprep.subr.bf16.mxu0 0
    %2571 = vmatpush1.bf16.msra.mxu0 0
    %2572 = vmatprep.subr.bf16.mxu0 0
    %2573 = vmatpush1.bf16.msra.mxu0 0
    %2574 = vmatprep.subr.bf16.mxu0 0
    %2575 = vmatpush1.bf16.msra.mxu0 0
    %2576 = vmatprep.subr.bf16.mxu0 0
    %2577 = vmatpush1.bf16.msra.mxu0 0
    %2578 = vmatprep.subr.bf16.mxu0 0
    %2579 = vmatpush1.bf16.msra.mxu0 0
    %2580 = vmatprep.subr.bf16.mxu0 0
    %2581 = vmatpush1.bf16.msra.mxu0 0
    %2582 = vmatprep.subr.bf16.mxu0 0
    %2583 = vmatpush1.bf16.msra.mxu0 0
    %2584 = vmatprep.subr.bf16.mxu0 0
    %2585 = vmatpush1.bf16.msra.mxu0 0
    %2586 = vmatprep.subr.bf16.mxu0 0
    %2587 = vmatpush1.bf16.msra.mxu0 0
    %2588 = vmatprep.subr.bf16.mxu0 0
    %2589 = vmatpush1.bf16.msra.mxu0 0
    %2590 = vmatprep.subr.bf16.mxu0 0
    %2591 = vmatpush1.bf16.msra.mxu0 0
    %2592 = vmatprep.subr.bf16.mxu0 0
    %2593 = vmatpush1.bf16.msra.mxu0 0
    %2594 = vmatprep.subr.bf16.mxu0 0
    %2595 = vmatpush1.bf16.msra.mxu0 0
    %2596 = vmatprep.subr.bf16.mxu0 0
    %2597 = vmatpush1.bf16.msra.mxu0 0
    %2598 = vmatprep.mubr.bf16.mxu0 0
    %2599 = vmatmul.mubr.bf16.gmra.mrb[0].mxu0 %v455
    %v2600 = vpop.f32.mrb[0].mxu0
    %v2601 = vadd.f32 0.0, %v2600
    %v2602 = vpop.f32.mrb[0].mxu0
    %v2603 = vadd.f32 0.0, %v2602
    %v2604 = vpop.f32.mrb[0].mxu0
    %v2605 = vpop.f32.mrb[0].mxu0
    %2606 = vdwg.mxu0
    %2607 = vmatprep.subr.bf16.mxu0 %v2564
    %2608 = vmatpush1.bf16.msra.mxu0 %v2561
    %2609 = vmatprep.subr.bf16.mxu0 0
    %2610 = vmatpush1.bf16.msra.mxu0 0
    %2611 = vmatprep.subr.bf16.mxu0 0
    %2612 = vmatpush1.bf16.msra.mxu0 0
    %2613 = vmatprep.subr.bf16.mxu0 0
    %2614 = vmatpush1.bf16.msra.mxu0 0
    %2615 = vmatprep.subr.bf16.mxu0 0
    %2616 = vmatpush1.bf16.msra.mxu0 0
    %2617 = vmatprep.subr.bf16.mxu0 0
    %2618 = vmatpush1.bf16.msra.mxu0 0
    %2619 = vmatprep.subr.bf16.mxu0 0
    %2620 = vmatpush1.bf16.msra.mxu0 0
    %2621 = vmatprep.subr.bf16.mxu0 0
    %2622 = vmatpush1.bf16.msra.mxu0 0
    %2623 = vmatprep.subr.bf16.mxu0 0
    %2624 = vmatpush1.bf16.msra.mxu0 0
    %2625 = vmatprep.subr.bf16.mxu0 0
    %2626 = vmatpush1.bf16.msra.mxu0 0
    %2627 = vmatprep.subr.bf16.mxu0 0
    %2628 = vmatpush1.bf16.msra.mxu0 0
    %2629 = vmatprep.subr.bf16.mxu0 0
    %2630 = vmatpush1.bf16.msra.mxu0 0
    %2631 = vmatprep.subr.bf16.mxu0 0
    %2632 = vmatpush1.bf16.msra.mxu0 0
    %2633 = vmatprep.subr.bf16.mxu0 0
    %2634 = vmatpush1.bf16.msra.mxu0 0
    %2635 = vmatprep.subr.bf16.mxu0 0
    %2636 = vmatpush1.bf16.msra.mxu0 0
    %2637 = vmatprep.subr.bf16.mxu0 0
    %2638 = vmatpush1.bf16.msra.mxu0 0
    %2639 = vmatprep.mubr.bf16.mxu0 0
    %2640 = vmatmul.mubr.bf16.gmra.mrb[0].mxu0 %v455
    %v2641 = vpop.f32.mrb[0].mxu0
    %v2642 = vadd.f32 0.0, %v2641
    %v2643 = vpop.f32.mrb[0].mxu0
    %v2644 = vadd.f32 0.0, %v2643
    %v2645 = vpop.f32.mrb[0].mxu0
    %v2646 = vpop.f32.mrb[0].mxu0
    %2647 = vdwg.mxu0
    %v2656 = vunpack.c.l.b16 %v2526
    %v2657 = vunpack.c.h.b16 %v2526
    %v2658 = vunpack.c.l.b16 %v2527
    %v2659 = vunpack.c.h.b16 %v2527
    %v2660 = vunpack.c.l.b16 %v2528
    %v2661 = vunpack.c.h.b16 %v2528
    %v2662 = vunpack.c.l.b16 %v2529
    %v2663 = vunpack.c.h.b16 %v2529
    %v2664 = vunpack.c.l.b16 %v2530
    %v2665 = vunpack.c.h.b16 %v2530
    %v2666 = vunpack.c.l.b16 %v2531
    %v2667 = vunpack.c.h.b16 %v2531
    %v2668 = vunpack.c.l.b16 %v2532
    %v2669 = vunpack.c.h.b16 %v2532
    %v2670 = vunpack.c.l.b16 %v2533
    %v2671 = vunpack.c.h.b16 %v2533
    %v2672 = vpack.c.b16 %v2660, %v2656
    %v2673 = vpack.c.b16 %v2661, %v2657
    %v2674 = vpack.c.b16 %v2662, %v2658
    %v2675 = vpack.c.b16 %v2663, %v2659
    %v2676 = vpack.c.b16 %v2668, %v2664
    %v2677 = vpack.c.b16 %v2669, %v2665
    %v2678 = vpack.c.b16 %v2670, %v2666
    %v2679 = vpack.c.b16 %v2671, %v2667
    %vm2688 = vcmask 261120
    %v2690 = vsel %vm2688, %v2525, 0
    %2692 = vmatprep.subr.bf16.mxu0 %v2673
    %2693 = vmatpush1.bf16.msra.mxu0 %v2672
    %2694 = vmatprep.subr.bf16.mxu0 %v2677
    %2695 = vmatpush1.bf16.msra.mxu0 %v2676
    %2696 = vmatprep.subr.bf16.mxu0 0
    %2697 = vmatpush1.bf16.msra.mxu0 0
    %2698 = vmatprep.subr.bf16.mxu0 0
    %2699 = vmatpush1.bf16.msra.mxu0 0
    %2700 = vmatprep.subr.bf16.mxu0 0
    %2701 = vmatpush1.bf16.msra.mxu0 0
    %2702 = vmatprep.subr.bf16.mxu0 0
    %2703 = vmatpush1.bf16.msra.mxu0 0
    %2704 = vmatprep.subr.bf16.mxu0 0
    %2705 = vmatpush1.bf16.msra.mxu0 0
    %2706 = vmatprep.subr.bf16.mxu0 0
    %2707 = vmatpush1.bf16.msra.mxu0 0
    %2708 = vmatprep.subr.bf16.mxu0 0
    %2709 = vmatpush1.bf16.msra.mxu0 0
    %2710 = vmatprep.subr.bf16.mxu0 0
    %2711 = vmatpush1.bf16.msra.mxu0 0
    %2712 = vmatprep.subr.bf16.mxu0 0
    %2713 = vmatpush1.bf16.msra.mxu0 0
    %2714 = vmatprep.subr.bf16.mxu0 0
    %2715 = vmatpush1.bf16.msra.mxu0 0
    %2716 = vmatprep.subr.bf16.mxu0 0
    %2717 = vmatpush1.bf16.msra.mxu0 0
    %2718 = vmatprep.subr.bf16.mxu0 0
    %2719 = vmatpush1.bf16.msra.mxu0 0
    %2720 = vmatprep.subr.bf16.mxu0 0
    %2721 = vmatpush1.bf16.msra.mxu0 0
    %2722 = vmatprep.subr.bf16.mxu0 0
    %2723 = vmatpush1.bf16.msra.mxu0 0
    %2724 = vmatprep.mubr.bf16.mxu0 0
    %2725 = vmatmul.mubr.bf16.gmra.mrb[0].mxu0 %v2690
    %v2726 = vpop.f32.mrb[0].mxu0
    %v2727 = vadd.f32 %v2601, %v2726
    %v2728 = vpop.f32.mrb[0].mxu0
    %v2729 = vadd.f32 %v2603, %v2728
    %v2730 = vpop.f32.mrb[0].mxu0
    %v2731 = vpop.f32.mrb[0].mxu0
    %2732 = vdwg.mxu0
    %2733 = vmatprep.subr.bf16.mxu0 %v2675
    %2734 = vmatpush1.bf16.msra.mxu0 %v2674
    %2735 = vmatprep.subr.bf16.mxu0 %v2679
    %2736 = vmatpush1.bf16.msra.mxu0 %v2678
    %2737 = vmatprep.subr.bf16.mxu0 0
    %2738 = vmatpush1.bf16.msra.mxu0 0
    %2739 = vmatprep.subr.bf16.mxu0 0
    %2740 = vmatpush1.bf16.msra.mxu0 0
    %2741 = vmatprep.subr.bf16.mxu0 0
    %2742 = vmatpush1.bf16.msra.mxu0 0
    %2743 = vmatprep.subr.bf16.mxu0 0
    %2744 = vmatpush1.bf16.msra.mxu0 0
    %2745 = vmatprep.subr.bf16.mxu0 0
    %2746 = vmatpush1.bf16.msra.mxu0 0
    %2747 = vmatprep.subr.bf16.mxu0 0
    %2748 = vmatpush1.bf16.msra.mxu0 0
    %2749 = vmatprep.subr.bf16.mxu0 0
    %2750 = vmatpush1.bf16.msra.mxu0 0
    %2751 = vmatprep.subr.bf16.mxu0 0
    %2752 = vmatpush1.bf16.msra.mxu0 0
    %2753 = vmatprep.subr.bf16.mxu0 0
    %2754 = vmatpush1.bf16.msra.mxu0 0
    %2755 = vmatprep.subr.bf16.mxu0 0
    %2756 = vmatpush1.bf16.msra.mxu0 0
    %2757 = vmatprep.subr.bf16.mxu0 0
    %2758 = vmatpush1.bf16.msra.mxu0 0
    %2759 = vmatprep.subr.bf16.mxu0 0
    %2760 = vmatpush1.bf16.msra.mxu0 0
    %2761 = vmatprep.subr.bf16.mxu0 0
    %2762 = vmatpush1.bf16.msra.mxu0 0
    %2763 = vmatprep.subr.bf16.mxu0 0
    %2764 = vmatpush1.bf16.msra.mxu0 0
    %2765 = vmatprep.mubr.bf16.mxu0 0
    %2766 = vmatmul.mubr.bf16.gmra.mrb[0].mxu0 %v2690
    %v2767 = vpop.f32.mrb[0].mxu0
    %v2768 = vadd.f32 %v2642, %v2767
    %v2769 = vpop.f32.mrb[0].mxu0
    %v2770 = vadd.f32 %v2644, %v2769
    %v2771 = vpop.f32.mrb[0].mxu0
    %v2772 = vpop.f32.mrb[0].mxu0
    %2773 = vdwg.mxu0
    %vm2774 = vcmp.gt.f32.partialorder %v2727, 0.0
    %vm2775 = vcmp.gt.f32.partialorder %v2729, 0.0
    %vm2776 = vcmp.gt.f32.partialorder %v2768, 0.0
    %vm2777 = vcmp.gt.f32.partialorder %v2770, 0.0
    %v2778 = vmin.f32 %v2727, 0.0
    %v2779 = vmin.f32 %v2729, 0.0
    %v2780 = vmin.f32 %v2768, 0.0
    %v2781 = vmin.f32 %v2770, 0.0
    %v2782 = vmul.f32 %v2778, 1.442695
    %v2783 = vpow.pop %v2782
    %v2784 = vmul.f32 %v2779, 1.442695
    %v2785 = vpow.pop %v2784
    %v2786 = vmul.f32 %v2780, 1.442695
    %v2787 = vpow.pop %v2786
    %v2788 = vmul.f32 %v2781, 1.442695
    %v2789 = vpow.pop %v2788
    %v2790 = vsub.f32 %v2783, 1.0
    %v2791 = vsub.f32 %v2785, 1.0
    %v2792 = vsub.f32 %v2787, 1.0
    %v2793 = vsub.f32 %v2789, 1.0
    %v2794 = vsel %vm2774, %v2727, %v2790
    %v2795 = vsel %vm2775, %v2729, %v2791
    %v2796 = vsel %vm2776, %v2768, %v2792
    %v2797 = vsel %vm2777, %v2770, %v2793
    %v2798 = vpack.c.bf16 %v2794, %v2794
    %v2799 = vpack.c.bf16 %v2795, %v2795
    %v2800 = vpack.c.bf16 %v2796, %v2796
    %v2801 = vpack.c.bf16 %v2797, %v2797
    %v2802 = vld [vmem:[#allocation16] sm:$0xff]
    %v2803 = vld [vmem:[#allocation16 + $0x8] sm:$0xff]
    %v2804 = vld [vmem:[#allocation16 + $0x10] sm:$0xff]
    %v2805 = vld [vmem:[#allocation16 + $0x18] sm:$0xff]
    %v2806 = vld [vmem:[#allocation16 + $0x20] sm:$0xff]
    %v2807 = vld [vmem:[#allocation16 + $0x28] sm:$0xff]
    %v2808 = vld [vmem:[#allocation16 + $0x30] sm:$0xff]
    %v2809 = vld [vmem:[#allocation16 + $0x38] sm:$0xff]
    %v2810 = vld [vmem:[#allocation16 + $0x40] sm:$0xff]
    %v2811 = vld [vmem:[#allocation16 + $0x48] sm:$0xff]
    %v2812 = vld [vmem:[#allocation16 + $0x50] sm:$0xff]
    %v2813 = vld [vmem:[#allocation16 + $0x58] sm:$0xff]
    %v2814 = vld [vmem:[#allocation16 + $0x60] sm:$0xff]
    %v2815 = vld [vmem:[#allocation16 + $0x68] sm:$0xff]
    %v2816 = vld [vmem:[#allocation16 + $0x70] sm:$0xff]
    %v2817 = vld [vmem:[#allocation16 + $0x78] sm:$0xff]
    %v2818 = vld [vmem:[#allocation16 + $0x80] sm:$0xff]
    %v2819 = vld [vmem:[#allocation16 + $0x88] sm:$0xff]
    %v2820 = vld [vmem:[#allocation16 + $0x90] sm:$0xff]
    %v2821 = vld [vmem:[#allocation16 + $0x98] sm:$0xff]
    %v2822 = vld [vmem:[#allocation16 + $0xa0] sm:$0xff]
    %v2823 = vld [vmem:[#allocation16 + $0xa8] sm:$0xff]
    %v2824 = vld [vmem:[#allocation16 + $0xb0] sm:$0xff]
    %v2825 = vld [vmem:[#allocation16 + $0xb8] sm:$0xff]
    %v2826 = vld [vmem:[#allocation16 + $0xc0] sm:$0xff]
    %v2827 = vld [vmem:[#allocation16 + $0xc8] sm:$0xff]
    %v2828 = vld [vmem:[#allocation16 + $0xd0] sm:$0xff]
    %v2829 = vld [vmem:[#allocation16 + $0xd8] sm:$0xff]
    %v2830 = vld [vmem:[#allocation16 + $0xe0] sm:$0xff]
    %v2831 = vld [vmem:[#allocation16 + $0xe8] sm:$0xff]
    %v2832 = vld [vmem:[#allocation16 + $0xf0] sm:$0xff]
    %v2833 = vld [vmem:[#allocation16 + $0xf8] sm:$0xff]
    %v2834 = vld [vmem:[#allocation16 + $0x100] sm:$0xff]
    %v2835 = vld [vmem:[#allocation16 + $0x108] sm:$0xff]
    %v2836 = vld [vmem:[#allocation16 + $0x110] sm:$0xff]
    %v2837 = vld [vmem:[#allocation16 + $0x118] sm:$0xff]
    %v2838 = vld [vmem:[#allocation16 + $0x120] sm:$0xff]
    %v2839 = vld [vmem:[#allocation16 + $0x128] sm:$0xff]
    %v2840 = vld [vmem:[#allocation16 + $0x130] sm:$0xff]
    %v2841 = vld [vmem:[#allocation16 + $0x138] sm:$0xff]
    %v2842 = vld [vmem:[#allocation16 + $0x140] sm:$0xff]
    %v2843 = vld [vmem:[#allocation16 + $0x148] sm:$0xff]
    %v2844 = vld [vmem:[#allocation16 + $0x150] sm:$0xff]
    %v2845 = vld [vmem:[#allocation16 + $0x158] sm:$0xff]
    %v2846 = vld [vmem:[#allocation16 + $0x160] sm:$0xff]
    %v2847 = vld [vmem:[#allocation16 + $0x168] sm:$0xff]
    %v2848 = vld [vmem:[#allocation16 + $0x170] sm:$0xff]
    %v2849 = vld [vmem:[#allocation16 + $0x178] sm:$0xff]
    %v2850 = vld [vmem:[#allocation16 + $0x180] sm:$0xff]
    %v2851 = vld [vmem:[#allocation16 + $0x188] sm:$0xff]
    %v2852 = vld [vmem:[#allocation16 + $0x190] sm:$0xff]
    %v2853 = vld [vmem:[#allocation16 + $0x198] sm:$0xff]
    %v2854 = vld [vmem:[#allocation16 + $0x1a0] sm:$0xff]
    %v2855 = vld [vmem:[#allocation16 + $0x1a8] sm:$0xff]
    %v2856 = vld [vmem:[#allocation16 + $0x1b0] sm:$0xff]
    %v2857 = vld [vmem:[#allocation16 + $0x1b8] sm:$0xff]
    %v2858 = vld [vmem:[#allocation16 + $0x1c0] sm:$0xff]
    %v2859 = vld [vmem:[#allocation16 + $0x1c8] sm:$0xff]
    %v2860 = vld [vmem:[#allocation16 + $0x1d0] sm:$0xff]
    %v2861 = vld [vmem:[#allocation16 + $0x1d8] sm:$0xff]
    %v2862 = vld [vmem:[#allocation16 + $0x1e0] sm:$0xff]
    %v2863 = vld [vmem:[#allocation16 + $0x1e8] sm:$0xff]
    %v2864 = vld [vmem:[#allocation16 + $0x1f0] sm:$0xff]
    %v2865 = vld [vmem:[#allocation16 + $0x1f8] sm:$0xff]
    %v2866 = vld [vmem:[#allocation16 + $0x200] sm:$0xff]
    %v2867 = vld [vmem:[#allocation16 + $0x208] sm:$0xff]
    %v2868 = vld [vmem:[#allocation16 + $0x210] sm:$0xff]
    %v2869 = vld [vmem:[#allocation16 + $0x218] sm:$0xff]
    %v2870 = vld [vmem:[#allocation16 + $0x220] sm:$0xff]
    %v2871 = vld [vmem:[#allocation16 + $0x228] sm:$0xff]
    %v2872 = vld [vmem:[#allocation16 + $0x230] sm:$0xff]
    %v2873 = vld [vmem:[#allocation16 + $0x238] sm:$0xff]
    %v2874 = vld [vmem:[#allocation16 + $0x240] sm:$0xff]
    %v2875 = vld [vmem:[#allocation16 + $0x248] sm:$0xff]
    %v2876 = vld [vmem:[#allocation16 + $0x250] sm:$0xff]
    %v2877 = vld [vmem:[#allocation16 + $0x258] sm:$0xff]
    %v2878 = vld [vmem:[#allocation16 + $0x260] sm:$0xff]
    %v2879 = vld [vmem:[#allocation16 + $0x268] sm:$0xff]
    %v2880 = vld [vmem:[#allocation16 + $0x270] sm:$0xff]
    %v2881 = vld [vmem:[#allocation16 + $0x278] sm:$0xff]
    %v2882 = vld [vmem:[#allocation16 + $0x280] sm:$0xff]
    %v2883 = vld [vmem:[#allocation16 + $0x288] sm:$0xff]
    %v2884 = vld [vmem:[#allocation16 + $0x290] sm:$0xff]
    %v2885 = vld [vmem:[#allocation16 + $0x298] sm:$0xff]
    %v2886 = vld [vmem:[#allocation16 + $0x2a0] sm:$0xff]
    %v2887 = vld [vmem:[#allocation16 + $0x2a8] sm:$0xff]
    %v2888 = vld [vmem:[#allocation16 + $0x2b0] sm:$0xff]
    %v2889 = vld [vmem:[#allocation16 + $0x2b8] sm:$0xff]
    %v2890 = vld [vmem:[#allocation16 + $0x2c0] sm:$0xff]
    %v2891 = vld [vmem:[#allocation16 + $0x2c8] sm:$0xff]
    %v2892 = vld [vmem:[#allocation16 + $0x2d0] sm:$0xff]
    %v2893 = vld [vmem:[#allocation16 + $0x2d8] sm:$0xff]
    %v2894 = vld [vmem:[#allocation16 + $0x2e0] sm:$0xff]
    %v2895 = vld [vmem:[#allocation16 + $0x2e8] sm:$0xff]
    %v2896 = vld [vmem:[#allocation16 + $0x2f0] sm:$0xff]
    %v2897 = vld [vmem:[#allocation16 + $0x2f8] sm:$0xff]
    %v2898 = vld [vmem:[#allocation16 + $0x300] sm:$0xff]
    %v2899 = vld [vmem:[#allocation16 + $0x308] sm:$0xff]
    %v2900 = vld [vmem:[#allocation16 + $0x310] sm:$0xff]
    %v2901 = vld [vmem:[#allocation16 + $0x318] sm:$0xff]
    %v2902 = vld [vmem:[#allocation16 + $0x320] sm:$0xff]
    %v2903 = vld [vmem:[#allocation16 + $0x328] sm:$0xff]
    %v2904 = vld [vmem:[#allocation16 + $0x330] sm:$0xff]
    %v2905 = vld [vmem:[#allocation16 + $0x338] sm:$0xff]
    %v2906 = vld [vmem:[#allocation16 + $0x340] sm:$0xff]
    %v2907 = vld [vmem:[#allocation16 + $0x348] sm:$0xff]
    %v2908 = vld [vmem:[#allocation16 + $0x350] sm:$0xff]
    %v2909 = vld [vmem:[#allocation16 + $0x358] sm:$0xff]
    %v2910 = vld [vmem:[#allocation16 + $0x360] sm:$0xff]
    %v2911 = vld [vmem:[#allocation16 + $0x368] sm:$0xff]
    %v2912 = vld [vmem:[#allocation16 + $0x370] sm:$0xff]
    %v2913 = vld [vmem:[#allocation16 + $0x378] sm:$0xff]
    %v2914 = vld [vmem:[#allocation16 + $0x380] sm:$0xff]
    %v2915 = vld [vmem:[#allocation16 + $0x388] sm:$0xff]
    %v2916 = vld [vmem:[#allocation16 + $0x390] sm:$0xff]
    %v2917 = vld [vmem:[#allocation16 + $0x398] sm:$0xff]
    %v2918 = vld [vmem:[#allocation16 + $0x3a0] sm:$0xff]
    %v2919 = vld [vmem:[#allocation16 + $0x3a8] sm:$0xff]
    %v2920 = vld [vmem:[#allocation16 + $0x3b0] sm:$0xff]
    %v2921 = vld [vmem:[#allocation16 + $0x3b8] sm:$0xff]
    %v2922 = vld [vmem:[#allocation16 + $0x3c0] sm:$0xff]
    %v2923 = vld [vmem:[#allocation16 + $0x3c8] sm:$0xff]
    %v2924 = vld [vmem:[#allocation16 + $0x3d0] sm:$0xff]
    %v2925 = vld [vmem:[#allocation16 + $0x3d8] sm:$0xff]
    %v2926 = vld [vmem:[#allocation16 + $0x3e0] sm:$0xff]
    %v2927 = vld [vmem:[#allocation16 + $0x3e8] sm:$0xff]
    %v2928 = vld [vmem:[#allocation16 + $0x3f0] sm:$0xff]
    %v2929 = vld [vmem:[#allocation16 + $0x3f8] sm:$0xff]
    %v2930 = vld [vmem:[#allocation16 + $0x400] sm:$0xff]
    %v2931 = vld [vmem:[#allocation16 + $0x408] sm:$0xff]
    %v2932 = vld [vmem:[#allocation16 + $0x410] sm:$0xff]
    %v2933 = vld [vmem:[#allocation16 + $0x418] sm:$0xff]
    %v2934 = vld [vmem:[#allocation16 + $0x420] sm:$0xff]
    %v2935 = vld [vmem:[#allocation16 + $0x428] sm:$0xff]
    %v2936 = vld [vmem:[#allocation16 + $0x430] sm:$0xff]
    %v2937 = vld [vmem:[#allocation16 + $0x438] sm:$0xff]
    %v2938 = vld [vmem:[#allocation16 + $0x440] sm:$0xff]
    %v2939 = vld [vmem:[#allocation16 + $0x448] sm:$0xff]
    %v2940 = vld [vmem:[#allocation16 + $0x450] sm:$0xff]
    %v2941 = vld [vmem:[#allocation16 + $0x458] sm:$0xff]
    %v2942 = vld [vmem:[#allocation16 + $0x460] sm:$0xff]
    %v2943 = vld [vmem:[#allocation16 + $0x468] sm:$0xff]
    %v2944 = vld [vmem:[#allocation16 + $0x470] sm:$0xff]
    %v2945 = vld [vmem:[#allocation16 + $0x478] sm:$0xff]
    %v2946 = vld [vmem:[#allocation16 + $0x480] sm:$0xff]
    %v2947 = vld [vmem:[#allocation16 + $0x488] sm:$0xff]
    %v2948 = vld [vmem:[#allocation16 + $0x490] sm:$0xff]
    %v2949 = vld [vmem:[#allocation16 + $0x498] sm:$0xff]
    %v2950 = vld [vmem:[#allocation16 + $0x4a0] sm:$0xff]
    %v2951 = vld [vmem:[#allocation16 + $0x4a8] sm:$0xff]
    %v2952 = vld [vmem:[#allocation16 + $0x4b0] sm:$0xff]
    %v2953 = vld [vmem:[#allocation16 + $0x4b8] sm:$0xff]
    %v2954 = vld [vmem:[#allocation16 + $0x4c0] sm:$0xff]
    %v2955 = vld [vmem:[#allocation16 + $0x4c8] sm:$0xff]
    %v2956 = vld [vmem:[#allocation16 + $0x4d0] sm:$0xff]
    %v2957 = vld [vmem:[#allocation16 + $0x4d8] sm:$0xff]
    %v2958 = vld [vmem:[#allocation16 + $0x4e0] sm:$0xff]
    %v2959 = vld [vmem:[#allocation16 + $0x4e8] sm:$0xff]
    %v2960 = vld [vmem:[#allocation16 + $0x4f0] sm:$0xff]
    %v2961 = vld [vmem:[#allocation16 + $0x4f8] sm:$0xff]
    %v2962 = vld [vmem:[#allocation16 + $0x500] sm:$0xff]
    %v2963 = vld [vmem:[#allocation16 + $0x508] sm:$0xff]
    %v2964 = vld [vmem:[#allocation16 + $0x510] sm:$0xff]
    %v2965 = vld [vmem:[#allocation16 + $0x518] sm:$0xff]
    %v2966 = vld [vmem:[#allocation16 + $0x520] sm:$0xff]
    %v2967 = vld [vmem:[#allocation16 + $0x528] sm:$0xff]
    %v2968 = vld [vmem:[#allocation16 + $0x530] sm:$0xff]
    %v2969 = vld [vmem:[#allocation16 + $0x538] sm:$0xff]
    %v2970 = vld [vmem:[#allocation16 + $0x540] sm:$0xff]
    %v2971 = vld [vmem:[#allocation16 + $0x548] sm:$0xff]
    %v2972 = vld [vmem:[#allocation16 + $0x550] sm:$0xff]
    %v2973 = vld [vmem:[#allocation16 + $0x558] sm:$0xff]
    %v2974 = vld [vmem:[#allocation16 + $0x560] sm:$0xff]
    %v2975 = vld [vmem:[#allocation16 + $0x568] sm:$0xff]
    %v2976 = vld [vmem:[#allocation16 + $0x570] sm:$0xff]
    %v2977 = vld [vmem:[#allocation16 + $0x578] sm:$0xff]
    %v2978 = vld [vmem:[#allocation16 + $0x580] sm:$0xff]
    %v2979 = vld [vmem:[#allocation16 + $0x588] sm:$0xff]
    %v2980 = vld [vmem:[#allocation16 + $0x590] sm:$0xff]
    %v2981 = vld [vmem:[#allocation16 + $0x598] sm:$0xff]
    %v2982 = vld [vmem:[#allocation16 + $0x5a0] sm:$0xff]
    %v2983 = vld [vmem:[#allocation16 + $0x5a8] sm:$0xff]
    %v2984 = vld [vmem:[#allocation16 + $0x5b0] sm:$0xff]
    %v2985 = vld [vmem:[#allocation16 + $0x5b8] sm:$0xff]
    %v2986 = vld [vmem:[#allocation16 + $0x5c0] sm:$0xff]
    %v2987 = vld [vmem:[#allocation16 + $0x5c8] sm:$0xff]
    %v2988 = vld [vmem:[#allocation16 + $0x5d0] sm:$0xff]
    %v2989 = vld [vmem:[#allocation16 + $0x5d8] sm:$0xff]
    %v2990 = vld [vmem:[#allocation16 + $0x5e0] sm:$0xff]
    %v2991 = vld [vmem:[#allocation16 + $0x5e8] sm:$0xff]
    %v2992 = vld [vmem:[#allocation16 + $0x5f0] sm:$0xff]
    %v2993 = vld [vmem:[#allocation16 + $0x5f8] sm:$0xff]
    %v2994 = vld [vmem:[#allocation16 + $0x600] sm:$0xff]
    %v2995 = vld [vmem:[#allocation16 + $0x608] sm:$0xff]
    %v2996 = vld [vmem:[#allocation16 + $0x610] sm:$0xff]
    %v2997 = vld [vmem:[#allocation16 + $0x618] sm:$0xff]
    %v2998 = vld [vmem:[#allocation16 + $0x620] sm:$0xff]
    %v2999 = vld [vmem:[#allocation16 + $0x628] sm:$0xff]
    %v3000 = vld [vmem:[#allocation16 + $0x630] sm:$0xff]
    %v3001 = vld [vmem:[#allocation16 + $0x638] sm:$0xff]
    %v3002 = vld [vmem:[#allocation16 + $0x640] sm:$0xff]
    %v3003 = vld [vmem:[#allocation16 + $0x648] sm:$0xff]
    %v3004 = vld [vmem:[#allocation16 + $0x650] sm:$0xff]
    %v3005 = vld [vmem:[#allocation16 + $0x658] sm:$0xff]
    %v3006 = vld [vmem:[#allocation16 + $0x660] sm:$0xff]
    %v3007 = vld [vmem:[#allocation16 + $0x668] sm:$0xff]
    %v3008 = vld [vmem:[#allocation16 + $0x670] sm:$0xff]
    %v3009 = vld [vmem:[#allocation16 + $0x678] sm:$0xff]
    %v3010 = vld [vmem:[#allocation16 + $0x680] sm:$0xff]
    %v3011 = vld [vmem:[#allocation16 + $0x688] sm:$0xff]
    %v3012 = vld [vmem:[#allocation16 + $0x690] sm:$0xff]
    %v3013 = vld [vmem:[#allocation16 + $0x698] sm:$0xff]
    %v3014 = vld [vmem:[#allocation16 + $0x6a0] sm:$0xff]
    %v3015 = vld [vmem:[#allocation16 + $0x6a8] sm:$0xff]
    %v3016 = vld [vmem:[#allocation16 + $0x6b0] sm:$0xff]
    %v3017 = vld [vmem:[#allocation16 + $0x6b8] sm:$0xff]
    %v3018 = vld [vmem:[#allocation16 + $0x6c0] sm:$0xff]
    %v3019 = vld [vmem:[#allocation16 + $0x6c8] sm:$0xff]
    %v3020 = vld [vmem:[#allocation16 + $0x6d0] sm:$0xff]
    %v3021 = vld [vmem:[#allocation16 + $0x6d8] sm:$0xff]
    %v3022 = vld [vmem:[#allocation16 + $0x6e0] sm:$0xff]
    %v3023 = vld [vmem:[#allocation16 + $0x6e8] sm:$0xff]
    %v3024 = vld [vmem:[#allocation16 + $0x6f0] sm:$0xff]
    %v3025 = vld [vmem:[#allocation16 + $0x6f8] sm:$0xff]
    %v3026 = vld [vmem:[#allocation16 + $0x700] sm:$0xff]
    %v3027 = vld [vmem:[#allocation16 + $0x708] sm:$0xff]
    %v3028 = vld [vmem:[#allocation16 + $0x710] sm:$0xff]
    %v3029 = vld [vmem:[#allocation16 + $0x718] sm:$0xff]
    %v3030 = vld [vmem:[#allocation16 + $0x720] sm:$0xff]
    %v3031 = vld [vmem:[#allocation16 + $0x728] sm:$0xff]
    %v3032 = vld [vmem:[#allocation16 + $0x730] sm:$0xff]
    %v3033 = vld [vmem:[#allocation16 + $0x738] sm:$0xff]
    %v3034 = vld [vmem:[#allocation16 + $0x740] sm:$0xff]
    %v3035 = vld [vmem:[#allocation16 + $0x748] sm:$0xff]
    %v3036 = vld [vmem:[#allocation16 + $0x750] sm:$0xff]
    %v3037 = vld [vmem:[#allocation16 + $0x758] sm:$0xff]
    %v3038 = vld [vmem:[#allocation16 + $0x760] sm:$0xff]
    %v3039 = vld [vmem:[#allocation16 + $0x768] sm:$0xff]
    %v3040 = vld [vmem:[#allocation16 + $0x770] sm:$0xff]
    %v3041 = vld [vmem:[#allocation16 + $0x778] sm:$0xff]
    %v3042 = vld [vmem:[#allocation16 + $0x780] sm:$0xff]
    %v3043 = vld [vmem:[#allocation16 + $0x788] sm:$0xff]
    %v3044 = vld [vmem:[#allocation16 + $0x790] sm:$0xff]
    %v3045 = vld [vmem:[#allocation16 + $0x798] sm:$0xff]
    %v3046 = vld [vmem:[#allocation16 + $0x7a0] sm:$0xff]
    %v3047 = vld [vmem:[#allocation16 + $0x7a8] sm:$0xff]
    %v3048 = vld [vmem:[#allocation16 + $0x7b0] sm:$0xff]
    %v3049 = vld [vmem:[#allocation16 + $0x7b8] sm:$0xff]
    %v3050 = vld [vmem:[#allocation16 + $0x7c0] sm:$0xff]
    %v3051 = vld [vmem:[#allocation16 + $0x7c8] sm:$0xff]
    %v3052 = vld [vmem:[#allocation16 + $0x7d0] sm:$0xff]
    %v3053 = vld [vmem:[#allocation16 + $0x7d8] sm:$0xff]
    %v3054 = vld [vmem:[#allocation16 + $0x7e0] sm:$0xff]
    %v3055 = vld [vmem:[#allocation16 + $0x7e8] sm:$0xff]
    %v3056 = vld [vmem:[#allocation16 + $0x7f0] sm:$0xff]
    %v3057 = vld [vmem:[#allocation16 + $0x7f8] sm:$0xff]
    %v3058 = vld [vmem:[%s10] sm:$0xff]
    %v3060 = vlaneseq
    %v3061 = vshrl.u32 %v3060, 7
    %v3062 = vsub.s32 0, %v3061
    %v3063 = vrot.slane %v3058, %v3062
    %v3064 = vlaneseq
    %v3065 = vshrl.u32 %v3064, 7
    %v3066 = vsub.s32 1, %v3065
    %v3067 = vrot.slane %v3058, %v3066
    %v3068 = vlaneseq
    %v3069 = vshrl.u32 %v3068, 7
    %v3070 = vsub.s32 2, %v3069
    %v3071 = vrot.slane %v3058, %v3070
    %v3072 = vlaneseq
    %v3073 = vshrl.u32 %v3072, 7
    %v3074 = vsub.s32 3, %v3073
    %v3075 = vrot.slane %v3058, %v3074
    %v3076 = vlaneseq
    %v3077 = vshrl.u32 %v3076, 7
    %v3078 = vsub.s32 4, %v3077
    %v3079 = vrot.slane %v3058, %v3078
    %v3080 = vlaneseq
    %v3081 = vshrl.u32 %v3080, 7
    %v3082 = vsub.s32 5, %v3081
    %v3083 = vrot.slane %v3058, %v3082
    %v3084 = vlaneseq
    %v3085 = vshrl.u32 %v3084, 7
    %v3086 = vsub.s32 6, %v3085
    %v3087 = vrot.slane %v3058, %v3086
    %v3088 = vlaneseq
    %v3089 = vshrl.u32 %v3088, 7
    %v3090 = vsub.s32 7, %v3089
    %v3091 = vrot.slane %v3058, %v3090
    %v3356 = vunpack.c.l.b16 %v2802
    %v3357 = vunpack.c.h.b16 %v2802
    %v3358 = vunpack.c.l.b16 %v2803
    %v3359 = vunpack.c.h.b16 %v2803
    %v3360 = vunpack.c.l.b16 %v2804
    %v3361 = vunpack.c.h.b16 %v2804
    %v3362 = vunpack.c.l.b16 %v2805
    %v3363 = vunpack.c.h.b16 %v2805
    %v3364 = vunpack.c.l.b16 %v2806
    %v3365 = vunpack.c.h.b16 %v2806
    %v3366 = vunpack.c.l.b16 %v2807
    %v3367 = vunpack.c.h.b16 %v2807
    %v3368 = vunpack.c.l.b16 %v2808
    %v3369 = vunpack.c.h.b16 %v2808
    %v3370 = vunpack.c.l.b16 %v2809
    %v3371 = vunpack.c.h.b16 %v2809
    %v3372 = vunpack.c.l.b16 %v2810
    %v3373 = vunpack.c.h.b16 %v2810
    %v3374 = vunpack.c.l.b16 %v2811
    %v3375 = vunpack.c.h.b16 %v2811
    %v3376 = vunpack.c.l.b16 %v2812
    %v3377 = vunpack.c.h.b16 %v2812
    %v3378 = vunpack.c.l.b16 %v2813
    %v3379 = vunpack.c.h.b16 %v2813
    %v3380 = vunpack.c.l.b16 %v2814
    %v3381 = vunpack.c.h.b16 %v2814
    %v3382 = vunpack.c.l.b16 %v2815
    %v3383 = vunpack.c.h.b16 %v2815
    %v3384 = vunpack.c.l.b16 %v2816
    %v3385 = vunpack.c.h.b16 %v2816
    %v3386 = vunpack.c.l.b16 %v2817
    %v3387 = vunpack.c.h.b16 %v2817
    %v3388 = vunpack.c.l.b16 %v2818
    %v3389 = vunpack.c.h.b16 %v2818
    %v3390 = vunpack.c.l.b16 %v2819
    %v3391 = vunpack.c.h.b16 %v2819
    %v3392 = vunpack.c.l.b16 %v2820
    %v3393 = vunpack.c.h.b16 %v2820
    %v3394 = vunpack.c.l.b16 %v2821
    %v3395 = vunpack.c.h.b16 %v2821
    %v3396 = vunpack.c.l.b16 %v2822
    %v3397 = vunpack.c.h.b16 %v2822
    %v3398 = vunpack.c.l.b16 %v2823
    %v3399 = vunpack.c.h.b16 %v2823
    %v3400 = vunpack.c.l.b16 %v2824
    %v3401 = vunpack.c.h.b16 %v2824
    %v3402 = vunpack.c.l.b16 %v2825
    %v3403 = vunpack.c.h.b16 %v2825
    %v3404 = vunpack.c.l.b16 %v2826
    %v3405 = vunpack.c.h.b16 %v2826
    %v3406 = vunpack.c.l.b16 %v2827
    %v3407 = vunpack.c.h.b16 %v2827
    %v3408 = vunpack.c.l.b16 %v2828
    %v3409 = vunpack.c.h.b16 %v2828
    %v3410 = vunpack.c.l.b16 %v2829
    %v3411 = vunpack.c.h.b16 %v2829
    %v3412 = vunpack.c.l.b16 %v2830
    %v3413 = vunpack.c.h.b16 %v2830
    %v3414 = vunpack.c.l.b16 %v2831
    %v3415 = vunpack.c.h.b16 %v2831
    %v3416 = vunpack.c.l.b16 %v2832
    %v3417 = vunpack.c.h.b16 %v2832
    %v3418 = vunpack.c.l.b16 %v2833
    %v3419 = vunpack.c.h.b16 %v2833
    %v3420 = vunpack.c.l.b16 %v2834
    %v3421 = vunpack.c.h.b16 %v2834
    %v3422 = vunpack.c.l.b16 %v2835
    %v3423 = vunpack.c.h.b16 %v2835
    %v3424 = vunpack.c.l.b16 %v2836
    %v3425 = vunpack.c.h.b16 %v2836
    %v3426 = vunpack.c.l.b16 %v2837
    %v3427 = vunpack.c.h.b16 %v2837
    %v3428 = vunpack.c.l.b16 %v2838
    %v3429 = vunpack.c.h.b16 %v2838
    %v3430 = vunpack.c.l.b16 %v2839
    %v3431 = vunpack.c.h.b16 %v2839
    %v3432 = vunpack.c.l.b16 %v2840
    %v3433 = vunpack.c.h.b16 %v2840
    %v3434 = vunpack.c.l.b16 %v2841
    %v3435 = vunpack.c.h.b16 %v2841
    %v3436 = vunpack.c.l.b16 %v2842
    %v3437 = vunpack.c.h.b16 %v2842
    %v3438 = vunpack.c.l.b16 %v2843
    %v3439 = vunpack.c.h.b16 %v2843
    %v3440 = vunpack.c.l.b16 %v2844
    %v3441 = vunpack.c.h.b16 %v2844
    %v3442 = vunpack.c.l.b16 %v2845
    %v3443 = vunpack.c.h.b16 %v2845
    %v3444 = vunpack.c.l.b16 %v2846
    %v3445 = vunpack.c.h.b16 %v2846
    %v3446 = vunpack.c.l.b16 %v2847
    %v3447 = vunpack.c.h.b16 %v2847
    %v3448 = vunpack.c.l.b16 %v2848
    %v3449 = vunpack.c.h.b16 %v2848
    %v3450 = vunpack.c.l.b16 %v2849
    %v3451 = vunpack.c.h.b16 %v2849
    %v3452 = vunpack.c.l.b16 %v2850
    %v3453 = vunpack.c.h.b16 %v2850
    %v3454 = vunpack.c.l.b16 %v2851
    %v3455 = vunpack.c.h.b16 %v2851
    %v3456 = vunpack.c.l.b16 %v2852
    %v3457 = vunpack.c.h.b16 %v2852
    %v3458 = vunpack.c.l.b16 %v2853
    %v3459 = vunpack.c.h.b16 %v2853
    %v3460 = vunpack.c.l.b16 %v2854
    %v3461 = vunpack.c.h.b16 %v2854
    %v3462 = vunpack.c.l.b16 %v2855
    %v3463 = vunpack.c.h.b16 %v2855
    %v3464 = vunpack.c.l.b16 %v2856
    %v3465 = vunpack.c.h.b16 %v2856
    %v3466 = vunpack.c.l.b16 %v2857
    %v3467 = vunpack.c.h.b16 %v2857
    %v3468 = vunpack.c.l.b16 %v2858
    %v3469 = vunpack.c.h.b16 %v2858
    %v3470 = vunpack.c.l.b16 %v2859
    %v3471 = vunpack.c.h.b16 %v2859
    %v3472 = vunpack.c.l.b16 %v2860
    %v3473 = vunpack.c.h.b16 %v2860
    %v3474 = vunpack.c.l.b16 %v2861
    %v3475 = vunpack.c.h.b16 %v2861
    %v3476 = vunpack.c.l.b16 %v2862
    %v3477 = vunpack.c.h.b16 %v2862
    %v3478 = vunpack.c.l.b16 %v2863
    %v3479 = vunpack.c.h.b16 %v2863
    %v3480 = vunpack.c.l.b16 %v2864
    %v3481 = vunpack.c.h.b16 %v2864
    %v3482 = vunpack.c.l.b16 %v2865
    %v3483 = vunpack.c.h.b16 %v2865
    %v3484 = vunpack.c.l.b16 %v2866
    %v3485 = vunpack.c.h.b16 %v2866
    %v3486 = vunpack.c.l.b16 %v2867
    %v3487 = vunpack.c.h.b16 %v2867
    %v3488 = vunpack.c.l.b16 %v2868
    %v3489 = vunpack.c.h.b16 %v2868
    %v3490 = vunpack.c.l.b16 %v2869
    %v3491 = vunpack.c.h.b16 %v2869
    %v3492 = vunpack.c.l.b16 %v2870
    %v3493 = vunpack.c.h.b16 %v2870
    %v3494 = vunpack.c.l.b16 %v2871
    %v3495 = vunpack.c.h.b16 %v2871
    %v3496 = vunpack.c.l.b16 %v2872
    %v3497 = vunpack.c.h.b16 %v2872
    %v3498 = vunpack.c.l.b16 %v2873
    %v3499 = vunpack.c.h.b16 %v2873
    %v3500 = vunpack.c.l.b16 %v2874
    %v3501 = vunpack.c.h.b16 %v2874
    %v3502 = vunpack.c.l.b16 %v2875
    %v3503 = vunpack.c.h.b16 %v2875
    %v3504 = vunpack.c.l.b16 %v2876
    %v3505 = vunpack.c.h.b16 %v2876
    %v3506 = vunpack.c.l.b16 %v2877
    %v3507 = vunpack.c.h.b16 %v2877
    %v3508 = vunpack.c.l.b16 %v2878
    %v3509 = vunpack.c.h.b16 %v2878
    %v3510 = vunpack.c.l.b16 %v2879
    %v3511 = vunpack.c.h.b16 %v2879
    %v3512 = vunpack.c.l.b16 %v2880
    %v3513 = vunpack.c.h.b16 %v2880
    %v3514 = vunpack.c.l.b16 %v2881
    %v3515 = vunpack.c.h.b16 %v2881
    %v3516 = vunpack.c.l.b16 %v2882
    %v3517 = vunpack.c.h.b16 %v2882
    %v3518 = vunpack.c.l.b16 %v2883
    %v3519 = vunpack.c.h.b16 %v2883
    %v3520 = vunpack.c.l.b16 %v2884
    %v3521 = vunpack.c.h.b16 %v2884
    %v3522 = vunpack.c.l.b16 %v2885
    %v3523 = vunpack.c.h.b16 %v2885
    %v3524 = vunpack.c.l.b16 %v2886
    %v3525 = vunpack.c.h.b16 %v2886
    %v3526 = vunpack.c.l.b16 %v2887
    %v3527 = vunpack.c.h.b16 %v2887
    %v3528 = vunpack.c.l.b16 %v2888
    %v3529 = vunpack.c.h.b16 %v2888
    %v3530 = vunpack.c.l.b16 %v2889
    %v3531 = vunpack.c.h.b16 %v2889
    %v3532 = vunpack.c.l.b16 %v2890
    %v3533 = vunpack.c.h.b16 %v2890
    %v3534 = vunpack.c.l.b16 %v2891
    %v3535 = vunpack.c.h.b16 %v2891
    %v3536 = vunpack.c.l.b16 %v2892
    %v3537 = vunpack.c.h.b16 %v2892
    %v3538 = vunpack.c.l.b16 %v2893
    %v3539 = vunpack.c.h.b16 %v2893
    %v3540 = vunpack.c.l.b16 %v2894
    %v3541 = vunpack.c.h.b16 %v2894
    %v3542 = vunpack.c.l.b16 %v2895
    %v3543 = vunpack.c.h.b16 %v2895
    %v3544 = vunpack.c.l.b16 %v2896
    %v3545 = vunpack.c.h.b16 %v2896
    %v3546 = vunpack.c.l.b16 %v2897
    %v3547 = vunpack.c.h.b16 %v2897
    %v3548 = vunpack.c.l.b16 %v2898
    %v3549 = vunpack.c.h.b16 %v2898
    %v3550 = vunpack.c.l.b16 %v2899
    %v3551 = vunpack.c.h.b16 %v2899
    %v3552 = vunpack.c.l.b16 %v2900
    %v3553 = vunpack.c.h.b16 %v2900
    %v3554 = vunpack.c.l.b16 %v2901
    %v3555 = vunpack.c.h.b16 %v2901
    %v3556 = vunpack.c.l.b16 %v2902
    %v3557 = vunpack.c.h.b16 %v2902
    %v3558 = vunpack.c.l.b16 %v2903
    %v3559 = vunpack.c.h.b16 %v2903
    %v3560 = vunpack.c.l.b16 %v2904
    %v3561 = vunpack.c.h.b16 %v2904
    %v3562 = vunpack.c.l.b16 %v2905
    %v3563 = vunpack.c.h.b16 %v2905
    %v3564 = vunpack.c.l.b16 %v2906
    %v3565 = vunpack.c.h.b16 %v2906
    %v3566 = vunpack.c.l.b16 %v2907
    %v3567 = vunpack.c.h.b16 %v2907
    %v3568 = vunpack.c.l.b16 %v2908
    %v3569 = vunpack.c.h.b16 %v2908
    %v3570 = vunpack.c.l.b16 %v2909
    %v3571 = vunpack.c.h.b16 %v2909
    %v3572 = vunpack.c.l.b16 %v2910
    %v3573 = vunpack.c.h.b16 %v2910
    %v3574 = vunpack.c.l.b16 %v2911
    %v3575 = vunpack.c.h.b16 %v2911
    %v3576 = vunpack.c.l.b16 %v2912
    %v3577 = vunpack.c.h.b16 %v2912
    %v3578 = vunpack.c.l.b16 %v2913
    %v3579 = vunpack.c.h.b16 %v2913
    %v3580 = vunpack.c.l.b16 %v2914
    %v3581 = vunpack.c.h.b16 %v2914
    %v3582 = vunpack.c.l.b16 %v2915
    %v3583 = vunpack.c.h.b16 %v2915
    %v3584 = vunpack.c.l.b16 %v2916
    %v3585 = vunpack.c.h.b16 %v2916
    %v3586 = vunpack.c.l.b16 %v2917
    %v3587 = vunpack.c.h.b16 %v2917
    %v3588 = vunpack.c.l.b16 %v2918
    %v3589 = vunpack.c.h.b16 %v2918
    %v3590 = vunpack.c.l.b16 %v2919
    %v3591 = vunpack.c.h.b16 %v2919
    %v3592 = vunpack.c.l.b16 %v2920
    %v3593 = vunpack.c.h.b16 %v2920
    %v3594 = vunpack.c.l.b16 %v2921
    %v3595 = vunpack.c.h.b16 %v2921
    %v3596 = vunpack.c.l.b16 %v2922
    %v3597 = vunpack.c.h.b16 %v2922
    %v3598 = vunpack.c.l.b16 %v2923
    %v3599 = vunpack.c.h.b16 %v2923
    %v3600 = vunpack.c.l.b16 %v2924
    %v3601 = vunpack.c.h.b16 %v2924
    %v3602 = vunpack.c.l.b16 %v2925
    %v3603 = vunpack.c.h.b16 %v2925
    %v3604 = vunpack.c.l.b16 %v2926
    %v3605 = vunpack.c.h.b16 %v2926
    %v3606 = vunpack.c.l.b16 %v2927
    %v3607 = vunpack.c.h.b16 %v2927
    %v3608 = vunpack.c.l.b16 %v2928
    %v3609 = vunpack.c.h.b16 %v2928
    %v3610 = vunpack.c.l.b16 %v2929
    %v3611 = vunpack.c.h.b16 %v2929
    %v3612 = vunpack.c.l.b16 %v2930
    %v3613 = vunpack.c.h.b16 %v2930
    %v3614 = vunpack.c.l.b16 %v2931
    %v3615 = vunpack.c.h.b16 %v2931
    %v3616 = vunpack.c.l.b16 %v2932
    %v3617 = vunpack.c.h.b16 %v2932
    %v3618 = vunpack.c.l.b16 %v2933
    %v3619 = vunpack.c.h.b16 %v2933
    %v3620 = vunpack.c.l.b16 %v2934
    %v3621 = vunpack.c.h.b16 %v2934
    %v3622 = vunpack.c.l.b16 %v2935
    %v3623 = vunpack.c.h.b16 %v2935
    %v3624 = vunpack.c.l.b16 %v2936
    %v3625 = vunpack.c.h.b16 %v2936
    %v3626 = vunpack.c.l.b16 %v2937
    %v3627 = vunpack.c.h.b16 %v2937
    %v3628 = vunpack.c.l.b16 %v2938
    %v3629 = vunpack.c.h.b16 %v2938
    %v3630 = vunpack.c.l.b16 %v2939
    %v3631 = vunpack.c.h.b16 %v2939
    %v3632 = vunpack.c.l.b16 %v2940
    %v3633 = vunpack.c.h.b16 %v2940
    %v3634 = vunpack.c.l.b16 %v2941
    %v3635 = vunpack.c.h.b16 %v2941
    %v3636 = vunpack.c.l.b16 %v2942
    %v3637 = vunpack.c.h.b16 %v2942
    %v3638 = vunpack.c.l.b16 %v2943
    %v3639 = vunpack.c.h.b16 %v2943
    %v3640 = vunpack.c.l.b16 %v2944
    %v3641 = vunpack.c.h.b16 %v2944
    %v3642 = vunpack.c.l.b16 %v2945
    %v3643 = vunpack.c.h.b16 %v2945
    %v3644 = vunpack.c.l.b16 %v2946
    %v3645 = vunpack.c.h.b16 %v2946
    %v3646 = vunpack.c.l.b16 %v2947
    %v3647 = vunpack.c.h.b16 %v2947
    %v3648 = vunpack.c.l.b16 %v2948
    %v3649 = vunpack.c.h.b16 %v2948
    %v3650 = vunpack.c.l.b16 %v2949
    %v3651 = vunpack.c.h.b16 %v2949
    %v3652 = vunpack.c.l.b16 %v2950
    %v3653 = vunpack.c.h.b16 %v2950
    %v3654 = vunpack.c.l.b16 %v2951
    %v3655 = vunpack.c.h.b16 %v2951
    %v3656 = vunpack.c.l.b16 %v2952
    %v3657 = vunpack.c.h.b16 %v2952
    %v3658 = vunpack.c.l.b16 %v2953
    %v3659 = vunpack.c.h.b16 %v2953
    %v3660 = vunpack.c.l.b16 %v2954
    %v3661 = vunpack.c.h.b16 %v2954
    %v3662 = vunpack.c.l.b16 %v2955
    %v3663 = vunpack.c.h.b16 %v2955
    %v3664 = vunpack.c.l.b16 %v2956
    %v3665 = vunpack.c.h.b16 %v2956
    %v3666 = vunpack.c.l.b16 %v2957
    %v3667 = vunpack.c.h.b16 %v2957
    %v3668 = vunpack.c.l.b16 %v2958
    %v3669 = vunpack.c.h.b16 %v2958
    %v3670 = vunpack.c.l.b16 %v2959
    %v3671 = vunpack.c.h.b16 %v2959
    %v3672 = vunpack.c.l.b16 %v2960
    %v3673 = vunpack.c.h.b16 %v2960
    %v3674 = vunpack.c.l.b16 %v2961
    %v3675 = vunpack.c.h.b16 %v2961
    %v3676 = vunpack.c.l.b16 %v2962
    %v3677 = vunpack.c.h.b16 %v2962
    %v3678 = vunpack.c.l.b16 %v2963
    %v3679 = vunpack.c.h.b16 %v2963
    %v3680 = vunpack.c.l.b16 %v2964
    %v3681 = vunpack.c.h.b16 %v2964
    %v3682 = vunpack.c.l.b16 %v2965
    %v3683 = vunpack.c.h.b16 %v2965
    %v3684 = vunpack.c.l.b16 %v2966
    %v3685 = vunpack.c.h.b16 %v2966
    %v3686 = vunpack.c.l.b16 %v2967
    %v3687 = vunpack.c.h.b16 %v2967
    %v3688 = vunpack.c.l.b16 %v2968
    %v3689 = vunpack.c.h.b16 %v2968
    %v3690 = vunpack.c.l.b16 %v2969
    %v3691 = vunpack.c.h.b16 %v2969
    %v3692 = vunpack.c.l.b16 %v2970
    %v3693 = vunpack.c.h.b16 %v2970
    %v3694 = vunpack.c.l.b16 %v2971
    %v3695 = vunpack.c.h.b16 %v2971
    %v3696 = vunpack.c.l.b16 %v2972
    %v3697 = vunpack.c.h.b16 %v2972
    %v3698 = vunpack.c.l.b16 %v2973
    %v3699 = vunpack.c.h.b16 %v2973
    %v3700 = vunpack.c.l.b16 %v2974
    %v3701 = vunpack.c.h.b16 %v2974
    %v3702 = vunpack.c.l.b16 %v2975
    %v3703 = vunpack.c.h.b16 %v2975
    %v3704 = vunpack.c.l.b16 %v2976
    %v3705 = vunpack.c.h.b16 %v2976
    %v3706 = vunpack.c.l.b16 %v2977
    %v3707 = vunpack.c.h.b16 %v2977
    %v3708 = vunpack.c.l.b16 %v2978
    %v3709 = vunpack.c.h.b16 %v2978
    %v3710 = vunpack.c.l.b16 %v2979
    %v3711 = vunpack.c.h.b16 %v2979
    %v3712 = vunpack.c.l.b16 %v2980
    %v3713 = vunpack.c.h.b16 %v2980
    %v3714 = vunpack.c.l.b16 %v2981
    %v3715 = vunpack.c.h.b16 %v2981
    %v3716 = vunpack.c.l.b16 %v2982
    %v3717 = vunpack.c.h.b16 %v2982
    %v3718 = vunpack.c.l.b16 %v2983
    %v3719 = vunpack.c.h.b16 %v2983
    %v3720 = vunpack.c.l.b16 %v2984
    %v3721 = vunpack.c.h.b16 %v2984
    %v3722 = vunpack.c.l.b16 %v2985
    %v3723 = vunpack.c.h.b16 %v2985
    %v3724 = vunpack.c.l.b16 %v2986
    %v3725 = vunpack.c.h.b16 %v2986
    %v3726 = vunpack.c.l.b16 %v2987
    %v3727 = vunpack.c.h.b16 %v2987
    %v3728 = vunpack.c.l.b16 %v2988
    %v3729 = vunpack.c.h.b16 %v2988
    %v3730 = vunpack.c.l.b16 %v2989
    %v3731 = vunpack.c.h.b16 %v2989
    %v3732 = vunpack.c.l.b16 %v2990
    %v3733 = vunpack.c.h.b16 %v2990
    %v3734 = vunpack.c.l.b16 %v2991
    %v3735 = vunpack.c.h.b16 %v2991
    %v3736 = vunpack.c.l.b16 %v2992
    %v3737 = vunpack.c.h.b16 %v2992
    %v3738 = vunpack.c.l.b16 %v2993
    %v3739 = vunpack.c.h.b16 %v2993
    %v3740 = vunpack.c.l.b16 %v2994
    %v3741 = vunpack.c.h.b16 %v2994
    %v3742 = vunpack.c.l.b16 %v2995
    %v3743 = vunpack.c.h.b16 %v2995
    %v3744 = vunpack.c.l.b16 %v2996
    %v3745 = vunpack.c.h.b16 %v2996
    %v3746 = vunpack.c.l.b16 %v2997
    %v3747 = vunpack.c.h.b16 %v2997
    %v3748 = vunpack.c.l.b16 %v2998
    %v3749 = vunpack.c.h.b16 %v2998
    %v3750 = vunpack.c.l.b16 %v2999
    %v3751 = vunpack.c.h.b16 %v2999
    %v3752 = vunpack.c.l.b16 %v3000
    %v3753 = vunpack.c.h.b16 %v3000
    %v3754 = vunpack.c.l.b16 %v3001
    %v3755 = vunpack.c.h.b16 %v3001
    %v3756 = vunpack.c.l.b16 %v3002
    %v3757 = vunpack.c.h.b16 %v3002
    %v3758 = vunpack.c.l.b16 %v3003
    %v3759 = vunpack.c.h.b16 %v3003
    %v3760 = vunpack.c.l.b16 %v3004
    %v3761 = vunpack.c.h.b16 %v3004
    %v3762 = vunpack.c.l.b16 %v3005
    %v3763 = vunpack.c.h.b16 %v3005
    %v3764 = vunpack.c.l.b16 %v3006
    %v3765 = vunpack.c.h.b16 %v3006
    %v3766 = vunpack.c.l.b16 %v3007
    %v3767 = vunpack.c.h.b16 %v3007
    %v3768 = vunpack.c.l.b16 %v3008
    %v3769 = vunpack.c.h.b16 %v3008
    %v3770 = vunpack.c.l.b16 %v3009
    %v3771 = vunpack.c.h.b16 %v3009
    %v3772 = vunpack.c.l.b16 %v3010
    %v3773 = vunpack.c.h.b16 %v3010
    %v3774 = vunpack.c.l.b16 %v3011
    %v3775 = vunpack.c.h.b16 %v3011
    %v3776 = vunpack.c.l.b16 %v3012
    %v3777 = vunpack.c.h.b16 %v3012
    %v3778 = vunpack.c.l.b16 %v3013
    %v3779 = vunpack.c.h.b16 %v3013
    %v3780 = vunpack.c.l.b16 %v3014
    %v3781 = vunpack.c.h.b16 %v3014
    %v3782 = vunpack.c.l.b16 %v3015
    %v3783 = vunpack.c.h.b16 %v3015
    %v3784 = vunpack.c.l.b16 %v3016
    %v3785 = vunpack.c.h.b16 %v3016
    %v3786 = vunpack.c.l.b16 %v3017
    %v3787 = vunpack.c.h.b16 %v3017
    %v3788 = vunpack.c.l.b16 %v3018
    %v3789 = vunpack.c.h.b16 %v3018
    %v3790 = vunpack.c.l.b16 %v3019
    %v3791 = vunpack.c.h.b16 %v3019
    %v3792 = vunpack.c.l.b16 %v3020
    %v3793 = vunpack.c.h.b16 %v3020
    %v3794 = vunpack.c.l.b16 %v3021
    %v3795 = vunpack.c.h.b16 %v3021
    %v3796 = vunpack.c.l.b16 %v3022
    %v3797 = vunpack.c.h.b16 %v3022
    %v3798 = vunpack.c.l.b16 %v3023
    %v3799 = vunpack.c.h.b16 %v3023
    %v3800 = vunpack.c.l.b16 %v3024
    %v3801 = vunpack.c.h.b16 %v3024
    %v3802 = vunpack.c.l.b16 %v3025
    %v3803 = vunpack.c.h.b16 %v3025
    %v3804 = vunpack.c.l.b16 %v3026
    %v3805 = vunpack.c.h.b16 %v3026
    %v3806 = vunpack.c.l.b16 %v3027
    %v3807 = vunpack.c.h.b16 %v3027
    %v3808 = vunpack.c.l.b16 %v3028
    %v3809 = vunpack.c.h.b16 %v3028
    %v3810 = vunpack.c.l.b16 %v3029
    %v3811 = vunpack.c.h.b16 %v3029
    %v3812 = vunpack.c.l.b16 %v3030
    %v3813 = vunpack.c.h.b16 %v3030
    %v3814 = vunpack.c.l.b16 %v3031
    %v3815 = vunpack.c.h.b16 %v3031
    %v3816 = vunpack.c.l.b16 %v3032
    %v3817 = vunpack.c.h.b16 %v3032
    %v3818 = vunpack.c.l.b16 %v3033
    %v3819 = vunpack.c.h.b16 %v3033
    %v3820 = vunpack.c.l.b16 %v3034
    %v3821 = vunpack.c.h.b16 %v3034
    %v3822 = vunpack.c.l.b16 %v3035
    %v3823 = vunpack.c.h.b16 %v3035
    %v3824 = vunpack.c.l.b16 %v3036
    %v3825 = vunpack.c.h.b16 %v3036
    %v3826 = vunpack.c.l.b16 %v3037
    %v3827 = vunpack.c.h.b16 %v3037
    %v3828 = vunpack.c.l.b16 %v3038
    %v3829 = vunpack.c.h.b16 %v3038
    %v3830 = vunpack.c.l.b16 %v3039
    %v3831 = vunpack.c.h.b16 %v3039
    %v3832 = vunpack.c.l.b16 %v3040
    %v3833 = vunpack.c.h.b16 %v3040
    %v3834 = vunpack.c.l.b16 %v3041
    %v3835 = vunpack.c.h.b16 %v3041
    %v3836 = vunpack.c.l.b16 %v3042
    %v3837 = vunpack.c.h.b16 %v3042
    %v3838 = vunpack.c.l.b16 %v3043
    %v3839 = vunpack.c.h.b16 %v3043
    %v3840 = vunpack.c.l.b16 %v3044
    %v3841 = vunpack.c.h.b16 %v3044
    %v3842 = vunpack.c.l.b16 %v3045
    %v3843 = vunpack.c.h.b16 %v3045
    %v3844 = vunpack.c.l.b16 %v3046
    %v3845 = vunpack.c.h.b16 %v3046
    %v3846 = vunpack.c.l.b16 %v3047
    %v3847 = vunpack.c.h.b16 %v3047
    %v3848 = vunpack.c.l.b16 %v3048
    %v3849 = vunpack.c.h.b16 %v3048
    %v3850 = vunpack.c.l.b16 %v3049
    %v3851 = vunpack.c.h.b16 %v3049
    %v3852 = vunpack.c.l.b16 %v3050
    %v3853 = vunpack.c.h.b16 %v3050
    %v3854 = vunpack.c.l.b16 %v3051
    %v3855 = vunpack.c.h.b16 %v3051
    %v3856 = vunpack.c.l.b16 %v3052
    %v3857 = vunpack.c.h.b16 %v3052
    %v3858 = vunpack.c.l.b16 %v3053
    %v3859 = vunpack.c.h.b16 %v3053
    %v3860 = vunpack.c.l.b16 %v3054
    %v3861 = vunpack.c.h.b16 %v3054
    %v3862 = vunpack.c.l.b16 %v3055
    %v3863 = vunpack.c.h.b16 %v3055
    %v3864 = vunpack.c.l.b16 %v3056
    %v3865 = vunpack.c.h.b16 %v3056
    %v3866 = vunpack.c.l.b16 %v3057
    %v3867 = vunpack.c.h.b16 %v3057
    %v3868 = vpack.c.b16 %v3364, %v3356
    %v3869 = vpack.c.b16 %v3365, %v3357
    %v3870 = vpack.c.b16 %v3366, %v3358
    %v3871 = vpack.c.b16 %v3367, %v3359
    %v3872 = vpack.c.b16 %v3368, %v3360
    %v3873 = vpack.c.b16 %v3369, %v3361
    %v3874 = vpack.c.b16 %v3370, %v3362
    %v3875 = vpack.c.b16 %v3371, %v3363
    %v3876 = vpack.c.b16 %v3380, %v3372
    %v3877 = vpack.c.b16 %v3381, %v3373
    %v3878 = vpack.c.b16 %v3382, %v3374
    %v3879 = vpack.c.b16 %v3383, %v3375
    %v3880 = vpack.c.b16 %v3384, %v3376
    %v3881 = vpack.c.b16 %v3385, %v3377
    %v3882 = vpack.c.b16 %v3386, %v3378
    %v3883 = vpack.c.b16 %v3387, %v3379
    %v3884 = vpack.c.b16 %v3396, %v3388
    %v3885 = vpack.c.b16 %v3397, %v3389
    %v3886 = vpack.c.b16 %v3398, %v3390
    %v3887 = vpack.c.b16 %v3399, %v3391
    %v3888 = vpack.c.b16 %v3400, %v3392
    %v3889 = vpack.c.b16 %v3401, %v3393
    %v3890 = vpack.c.b16 %v3402, %v3394
    %v3891 = vpack.c.b16 %v3403, %v3395
    %v3892 = vpack.c.b16 %v3412, %v3404
    %v3893 = vpack.c.b16 %v3413, %v3405
    %v3894 = vpack.c.b16 %v3414, %v3406
    %v3895 = vpack.c.b16 %v3415, %v3407
    %v3896 = vpack.c.b16 %v3416, %v3408
    %v3897 = vpack.c.b16 %v3417, %v3409
    %v3898 = vpack.c.b16 %v3418, %v3410
    %v3899 = vpack.c.b16 %v3419, %v3411
    %v3900 = vpack.c.b16 %v3428, %v3420
    %v3901 = vpack.c.b16 %v3429, %v3421
    %v3902 = vpack.c.b16 %v3430, %v3422
    %v3903 = vpack.c.b16 %v3431, %v3423
    %v3904 = vpack.c.b16 %v3432, %v3424
    %v3905 = vpack.c.b16 %v3433, %v3425
    %v3906 = vpack.c.b16 %v3434, %v3426
    %v3907 = vpack.c.b16 %v3435, %v3427
    %v3908 = vpack.c.b16 %v3444, %v3436
    %v3909 = vpack.c.b16 %v3445, %v3437
    %v3910 = vpack.c.b16 %v3446, %v3438
    %v3911 = vpack.c.b16 %v3447, %v3439
    %v3912 = vpack.c.b16 %v3448, %v3440
    %v3913 = vpack.c.b16 %v3449, %v3441
    %v3914 = vpack.c.b16 %v3450, %v3442
    %v3915 = vpack.c.b16 %v3451, %v3443
    %v3916 = vpack.c.b16 %v3460, %v3452
    %v3917 = vpack.c.b16 %v3461, %v3453
    %v3918 = vpack.c.b16 %v3462, %v3454
    %v3919 = vpack.c.b16 %v3463, %v3455
    %v3920 = vpack.c.b16 %v3464, %v3456
    %v3921 = vpack.c.b16 %v3465, %v3457
    %v3922 = vpack.c.b16 %v3466, %v3458
    %v3923 = vpack.c.b16 %v3467, %v3459
    %v3924 = vpack.c.b16 %v3476, %v3468
    %v3925 = vpack.c.b16 %v3477, %v3469
    %v3926 = vpack.c.b16 %v3478, %v3470
    %v3927 = vpack.c.b16 %v3479, %v3471
    %v3928 = vpack.c.b16 %v3480, %v3472
    %v3929 = vpack.c.b16 %v3481, %v3473
    %v3930 = vpack.c.b16 %v3482, %v3474
    %v3931 = vpack.c.b16 %v3483, %v3475
    %v3932 = vpack.c.b16 %v3492, %v3484
    %v3933 = vpack.c.b16 %v3493, %v3485
    %v3934 = vpack.c.b16 %v3494, %v3486
    %v3935 = vpack.c.b16 %v3495, %v3487
    %v3936 = vpack.c.b16 %v3496, %v3488
    %v3937 = vpack.c.b16 %v3497, %v3489
    %v3938 = vpack.c.b16 %v3498, %v3490
    %v3939 = vpack.c.b16 %v3499, %v3491
    %v3940 = vpack.c.b16 %v3508, %v3500
    %v3941 = vpack.c.b16 %v3509, %v3501
    %v3942 = vpack.c.b16 %v3510, %v3502
    %v3943 = vpack.c.b16 %v3511, %v3503
    %v3944 = vpack.c.b16 %v3512, %v3504
    %v3945 = vpack.c.b16 %v3513, %v3505
    %v3946 = vpack.c.b16 %v3514, %v3506
    %v3947 = vpack.c.b16 %v3515, %v3507
    %v3948 = vpack.c.b16 %v3524, %v3516
    %v3949 = vpack.c.b16 %v3525, %v3517
    %v3950 = vpack.c.b16 %v3526, %v3518
    %v3951 = vpack.c.b16 %v3527, %v3519
    %v3952 = vpack.c.b16 %v3528, %v3520
    %v3953 = vpack.c.b16 %v3529, %v3521
    %v3954 = vpack.c.b16 %v3530, %v3522
    %v3955 = vpack.c.b16 %v3531, %v3523
    %v3956 = vpack.c.b16 %v3540, %v3532
    %v3957 = vpack.c.b16 %v3541, %v3533
    %v3958 = vpack.c.b16 %v3542, %v3534
    %v3959 = vpack.c.b16 %v3543, %v3535
    %v3960 = vpack.c.b16 %v3544, %v3536
    %v3961 = vpack.c.b16 %v3545, %v3537
    %v3962 = vpack.c.b16 %v3546, %v3538
    %v3963 = vpack.c.b16 %v3547, %v3539
    %v3964 = vpack.c.b16 %v3556, %v3548
    %v3965 = vpack.c.b16 %v3557, %v3549
    %v3966 = vpack.c.b16 %v3558, %v3550
    %v3967 = vpack.c.b16 %v3559, %v3551
    %v3968 = vpack.c.b16 %v3560, %v3552
    %v3969 = vpack.c.b16 %v3561, %v3553
    %v3970 = vpack.c.b16 %v3562, %v3554
    %v3971 = vpack.c.b16 %v3563, %v3555
    %v3972 = vpack.c.b16 %v3572, %v3564
    %v3973 = vpack.c.b16 %v3573, %v3565
    %v3974 = vpack.c.b16 %v3574, %v3566
    %v3975 = vpack.c.b16 %v3575, %v3567
    %v3976 = vpack.c.b16 %v3576, %v3568
    %v3977 = vpack.c.b16 %v3577, %v3569
    %v3978 = vpack.c.b16 %v3578, %v3570
    %v3979 = vpack.c.b16 %v3579, %v3571
    %v3980 = vpack.c.b16 %v3588, %v3580
    %v3981 = vpack.c.b16 %v3589, %v3581
    %v3982 = vpack.c.b16 %v3590, %v3582
    %v3983 = vpack.c.b16 %v3591, %v3583
    %v3984 = vpack.c.b16 %v3592, %v3584
    %v3985 = vpack.c.b16 %v3593, %v3585
    %v3986 = vpack.c.b16 %v3594, %v3586
    %v3987 = vpack.c.b16 %v3595, %v3587
    %v3988 = vpack.c.b16 %v3604, %v3596
    %v3989 = vpack.c.b16 %v3605, %v3597
    %v3990 = vpack.c.b16 %v3606, %v3598
    %v3991 = vpack.c.b16 %v3607, %v3599
    %v3992 = vpack.c.b16 %v3608, %v3600
    %v3993 = vpack.c.b16 %v3609, %v3601
    %v3994 = vpack.c.b16 %v3610, %v3602
    %v3995 = vpack.c.b16 %v3611, %v3603
    %v3996 = vpack.c.b16 %v3620, %v3612
    %v3997 = vpack.c.b16 %v3621, %v3613
    %v3998 = vpack.c.b16 %v3622, %v3614
    %v3999 = vpack.c.b16 %v3623, %v3615
    %v4000 = vpack.c.b16 %v3624, %v3616
    %v4001 = vpack.c.b16 %v3625, %v3617
    %v4002 = vpack.c.b16 %v3626, %v3618
    %v4003 = vpack.c.b16 %v3627, %v3619
    %v4004 = vpack.c.b16 %v3636, %v3628
    %v4005 = vpack.c.b16 %v3637, %v3629
    %v4006 = vpack.c.b16 %v3638, %v3630
    %v4007 = vpack.c.b16 %v3639, %v3631
    %v4008 = vpack.c.b16 %v3640, %v3632
    %v4009 = vpack.c.b16 %v3641, %v3633
    %v4010 = vpack.c.b16 %v3642, %v3634
    %v4011 = vpack.c.b16 %v3643, %v3635
    %v4012 = vpack.c.b16 %v3652, %v3644
    %v4013 = vpack.c.b16 %v3653, %v3645
    %v4014 = vpack.c.b16 %v3654, %v3646
    %v4015 = vpack.c.b16 %v3655, %v3647
    %v4016 = vpack.c.b16 %v3656, %v3648
    %v4017 = vpack.c.b16 %v3657, %v3649
    %v4018 = vpack.c.b16 %v3658, %v3650
    %v4019 = vpack.c.b16 %v3659, %v3651
    %v4020 = vpack.c.b16 %v3668, %v3660
    %v4021 = vpack.c.b16 %v3669, %v3661
    %v4022 = vpack.c.b16 %v3670, %v3662
    %v4023 = vpack.c.b16 %v3671, %v3663
    %v4024 = vpack.c.b16 %v3672, %v3664
    %v4025 = vpack.c.b16 %v3673, %v3665
    %v4026 = vpack.c.b16 %v3674, %v3666
    %v4027 = vpack.c.b16 %v3675, %v3667
    %v4028 = vpack.c.b16 %v3684, %v3676
    %v4029 = vpack.c.b16 %v3685, %v3677
    %v4030 = vpack.c.b16 %v3686, %v3678
    %v4031 = vpack.c.b16 %v3687, %v3679
    %v4032 = vpack.c.b16 %v3688, %v3680
    %v4033 = vpack.c.b16 %v3689, %v3681
    %v4034 = vpack.c.b16 %v3690, %v3682
    %v4035 = vpack.c.b16 %v3691, %v3683
    %v4036 = vpack.c.b16 %v3700, %v3692
    %v4037 = vpack.c.b16 %v3701, %v3693
    %v4038 = vpack.c.b16 %v3702, %v3694
    %v4039 = vpack.c.b16 %v3703, %v3695
    %v4040 = vpack.c.b16 %v3704, %v3696
    %v4041 = vpack.c.b16 %v3705, %v3697
    %v4042 = vpack.c.b16 %v3706, %v3698
    %v4043 = vpack.c.b16 %v3707, %v3699
    %v4044 = vpack.c.b16 %v3716, %v3708
    %v4045 = vpack.c.b16 %v3717, %v3709
    %v4046 = vpack.c.b16 %v3718, %v3710
    %v4047 = vpack.c.b16 %v3719, %v3711
    %v4048 = vpack.c.b16 %v3720, %v3712
    %v4049 = vpack.c.b16 %v3721, %v3713
    %v4050 = vpack.c.b16 %v3722, %v3714
    %v4051 = vpack.c.b16 %v3723, %v3715
    %v4052 = vpack.c.b16 %v3732, %v3724
    %v4053 = vpack.c.b16 %v3733, %v3725
    %v4054 = vpack.c.b16 %v3734, %v3726
    %v4055 = vpack.c.b16 %v3735, %v3727
    %v4056 = vpack.c.b16 %v3736, %v3728
    %v4057 = vpack.c.b16 %v3737, %v3729
    %v4058 = vpack.c.b16 %v3738, %v3730
    %v4059 = vpack.c.b16 %v3739, %v3731
    %v4060 = vpack.c.b16 %v3748, %v3740
    %v4061 = vpack.c.b16 %v3749, %v3741
    %v4062 = vpack.c.b16 %v3750, %v3742
    %v4063 = vpack.c.b16 %v3751, %v3743
    %v4064 = vpack.c.b16 %v3752, %v3744
    %v4065 = vpack.c.b16 %v3753, %v3745
    %v4066 = vpack.c.b16 %v3754, %v3746
    %v4067 = vpack.c.b16 %v3755, %v3747
    %v4068 = vpack.c.b16 %v3764, %v3756
    %v4069 = vpack.c.b16 %v3765, %v3757
    %v4070 = vpack.c.b16 %v3766, %v3758
    %v4071 = vpack.c.b16 %v3767, %v3759
    %v4072 = vpack.c.b16 %v3768, %v3760
    %v4073 = vpack.c.b16 %v3769, %v3761
    %v4074 = vpack.c.b16 %v3770, %v3762
    %v4075 = vpack.c.b16 %v3771, %v3763
    %v4076 = vpack.c.b16 %v3780, %v3772
    %v4077 = vpack.c.b16 %v3781, %v3773
    %v4078 = vpack.c.b16 %v3782, %v3774
    %v4079 = vpack.c.b16 %v3783, %v3775
    %v4080 = vpack.c.b16 %v3784, %v3776
    %v4081 = vpack.c.b16 %v3785, %v3777
    %v4082 = vpack.c.b16 %v3786, %v3778
    %v4083 = vpack.c.b16 %v3787, %v3779
    %v4084 = vpack.c.b16 %v3796, %v3788
    %v4085 = vpack.c.b16 %v3797, %v3789
    %v4086 = vpack.c.b16 %v3798, %v3790
    %v4087 = vpack.c.b16 %v3799, %v3791
    %v4088 = vpack.c.b16 %v3800, %v3792
    %v4089 = vpack.c.b16 %v3801, %v3793
    %v4090 = vpack.c.b16 %v3802, %v3794
    %v4091 = vpack.c.b16 %v3803, %v3795
    %v4092 = vpack.c.b16 %v3812, %v3804
    %v4093 = vpack.c.b16 %v3813, %v3805
    %v4094 = vpack.c.b16 %v3814, %v3806
    %v4095 = vpack.c.b16 %v3815, %v3807
    %v4096 = vpack.c.b16 %v3816, %v3808
    %v4097 = vpack.c.b16 %v3817, %v3809
    %v4098 = vpack.c.b16 %v3818, %v3810
    %v4099 = vpack.c.b16 %v3819, %v3811
    %v4100 = vpack.c.b16 %v3828, %v3820
    %v4101 = vpack.c.b16 %v3829, %v3821
    %v4102 = vpack.c.b16 %v3830, %v3822
    %v4103 = vpack.c.b16 %v3831, %v3823
    %v4104 = vpack.c.b16 %v3832, %v3824
    %v4105 = vpack.c.b16 %v3833, %v3825
    %v4106 = vpack.c.b16 %v3834, %v3826
    %v4107 = vpack.c.b16 %v3835, %v3827
    %v4108 = vpack.c.b16 %v3844, %v3836
    %v4109 = vpack.c.b16 %v3845, %v3837
    %v4110 = vpack.c.b16 %v3846, %v3838
    %v4111 = vpack.c.b16 %v3847, %v3839
    %v4112 = vpack.c.b16 %v3848, %v3840
    %v4113 = vpack.c.b16 %v3849, %v3841
    %v4114 = vpack.c.b16 %v3850, %v3842
    %v4115 = vpack.c.b16 %v3851, %v3843
    %v4116 = vpack.c.b16 %v3860, %v3852
    %v4117 = vpack.c.b16 %v3861, %v3853
    %v4118 = vpack.c.b16 %v3862, %v3854
    %v4119 = vpack.c.b16 %v3863, %v3855
    %v4120 = vpack.c.b16 %v3864, %v3856
    %v4121 = vpack.c.b16 %v3865, %v3857
    %v4122 = vpack.c.b16 %v3866, %v3858
    %v4123 = vpack.c.b16 %v3867, %v3859
    %4380 = vmatprep.subr.bf16.mxu0 %v3869
    %4381 = vmatpush1.bf16.msra.mxu0 %v3868
    %4382 = vmatprep.subr.bf16.mxu0 %v3877
    %4383 = vmatpush1.bf16.msra.mxu0 %v3876
    %4384 = vmatprep.subr.bf16.mxu0 %v3885
    %4385 = vmatpush1.bf16.msra.mxu0 %v3884
    %4386 = vmatprep.subr.bf16.mxu0 %v3893
    %4387 = vmatpush1.bf16.msra.mxu0 %v3892
    %4388 = vmatprep.subr.bf16.mxu0 %v3901
    %4389 = vmatpush1.bf16.msra.mxu0 %v3900
    %4390 = vmatprep.subr.bf16.mxu0 %v3909
    %4391 = vmatpush1.bf16.msra.mxu0 %v3908
    %4392 = vmatprep.subr.bf16.mxu0 %v3917
    %4393 = vmatpush1.bf16.msra.mxu0 %v3916
    %4394 = vmatprep.subr.bf16.mxu0 %v3925
    %4395 = vmatpush1.bf16.msra.mxu0 %v3924
    %4396 = vmatprep.subr.bf16.mxu0 %v3933
    %4397 = vmatpush1.bf16.msra.mxu0 %v3932
    %4398 = vmatprep.subr.bf16.mxu0 %v3941
    %4399 = vmatpush1.bf16.msra.mxu0 %v3940
    %4400 = vmatprep.subr.bf16.mxu0 %v3949
    %4401 = vmatpush1.bf16.msra.mxu0 %v3948
    %4402 = vmatprep.subr.bf16.mxu0 %v3957
    %4403 = vmatpush1.bf16.msra.mxu0 %v3956
    %4404 = vmatprep.subr.bf16.mxu0 %v3965
    %4405 = vmatpush1.bf16.msra.mxu0 %v3964
    %4406 = vmatprep.subr.bf16.mxu0 %v3973
    %4407 = vmatpush1.bf16.msra.mxu0 %v3972
    %4408 = vmatprep.subr.bf16.mxu0 %v3981
    %4409 = vmatpush1.bf16.msra.mxu0 %v3980
    %4410 = vmatprep.subr.bf16.mxu0 %v3989
    %4411 = vmatpush1.bf16.msra.mxu0 %v3988
    %4412 = vmatprep.mubr.bf16.mxu0 %v2799
    %4413 = vmatmul.mubr.bf16.gmra.mrb[0].mxu0 %v2798
    %v4414 = vpop.f32.mrb[0].mxu0
    %v4415 = vadd.f32 %v3063, %v4414
    %v4416 = vpop.f32.mrb[0].mxu0
    %v4417 = vadd.f32 %v3067, %v4416
    %v4418 = vpop.f32.mrb[0].mxu0
    %v4419 = vpop.f32.mrb[0].mxu0
    %4420 = vdwg.mxu0
    %4421 = vmatprep.subr.bf16.mxu0 %v3997
    %4422 = vmatpush1.bf16.msra.mxu0 %v3996
    %4423 = vmatprep.subr.bf16.mxu0 %v4005
    %4424 = vmatpush1.bf16.msra.mxu0 %v4004
    %4425 = vmatprep.subr.bf16.mxu0 %v4013
    %4426 = vmatpush1.bf16.msra.mxu0 %v4012
    %4427 = vmatprep.subr.bf16.mxu0 %v4021
    %4428 = vmatpush1.bf16.msra.mxu0 %v4020
    %4429 = vmatprep.subr.bf16.mxu0 %v4029
    %4430 = vmatpush1.bf16.msra.mxu0 %v4028
    %4431 = vmatprep.subr.bf16.mxu0 %v4037
    %4432 = vmatpush1.bf16.msra.mxu0 %v4036
    %4433 = vmatprep.subr.bf16.mxu0 %v4045
    %4434 = vmatpush1.bf16.msra.mxu0 %v4044
    %4435 = vmatprep.subr.bf16.mxu0 %v4053
    %4436 = vmatpush1.bf16.msra.mxu0 %v4052
    %4437 = vmatprep.subr.bf16.mxu0 %v4061
    %4438 = vmatpush1.bf16.msra.mxu0 %v4060
    %4439 = vmatprep.subr.bf16.mxu0 %v4069
    %4440 = vmatpush1.bf16.msra.mxu0 %v4068
    %4441 = vmatprep.subr.bf16.mxu0 %v4077
    %4442 = vmatpush1.bf16.msra.mxu0 %v4076
    %4443 = vmatprep.subr.bf16.mxu0 %v4085
    %4444 = vmatpush1.bf16.msra.mxu0 %v4084
    %4445 = vmatprep.subr.bf16.mxu0 %v4093
    %4446 = vmatpush1.bf16.msra.mxu0 %v4092
    %4447 = vmatprep.subr.bf16.mxu0 %v4101
    %4448 = vmatpush1.bf16.msra.mxu0 %v4100
    %4449 = vmatprep.subr.bf16.mxu0 %v4109
    %4450 = vmatpush1.bf16.msra.mxu0 %v4108
    %4451 = vmatprep.subr.bf16.mxu0 %v4117
    %4452 = vmatpush1.bf16.msra.mxu0 %v4116
    %4453 = vmatprep.mubr.bf16.mxu0 %v2801
    %4454 = vmatmul.mubr.bf16.gmra.mrb[0].mxu0 %v2800
    %v4455 = vpop.f32.mrb[0].mxu0
    %v4456 = vadd.f32 %v4415, %v4455
    %v4457 = vpop.f32.mrb[0].mxu0
    %v4458 = vadd.f32 %v4417, %v4457
    %v4459 = vpop.f32.mrb[0].mxu0
    %v4460 = vpop.f32.mrb[0].mxu0
    %4461 = vdwg.mxu0
    %4462 = vmatprep.subr.bf16.mxu0 %v3871
    %4463 = vmatpush1.bf16.msra.mxu0 %v3870
    %4464 = vmatprep.subr.bf16.mxu0 %v3879
    %4465 = vmatpush1.bf16.msra.mxu0 %v3878
    %4466 = vmatprep.subr.bf16.mxu0 %v3887
    %4467 = vmatpush1.bf16.msra.mxu0 %v3886
    %4468 = vmatprep.subr.bf16.mxu0 %v3895
    %4469 = vmatpush1.bf16.msra.mxu0 %v3894
    %4470 = vmatprep.subr.bf16.mxu0 %v3903
    %4471 = vmatpush1.bf16.msra.mxu0 %v3902
    %4472 = vmatprep.subr.bf16.mxu0 %v3911
    %4473 = vmatpush1.bf16.msra.mxu0 %v3910
    %4474 = vmatprep.subr.bf16.mxu0 %v3919
    %4475 = vmatpush1.bf16.msra.mxu0 %v3918
    %4476 = vmatprep.subr.bf16.mxu0 %v3927
    %4477 = vmatpush1.bf16.msra.mxu0 %v3926
    %4478 = vmatprep.subr.bf16.mxu0 %v3935
    %4479 = vmatpush1.bf16.msra.mxu0 %v3934
    %4480 = vmatprep.subr.bf16.mxu0 %v3943
    %4481 = vmatpush1.bf16.msra.mxu0 %v3942
    %4482 = vmatprep.subr.bf16.mxu0 %v3951
    %4483 = vmatpush1.bf16.msra.mxu0 %v3950
    %4484 = vmatprep.subr.bf16.mxu0 %v3959
    %4485 = vmatpush1.bf16.msra.mxu0 %v3958
    %4486 = vmatprep.subr.bf16.mxu0 %v3967
    %4487 = vmatpush1.bf16.msra.mxu0 %v3966
    %4488 = vmatprep.subr.bf16.mxu0 %v3975
    %4489 = vmatpush1.bf16.msra.mxu0 %v3974
    %4490 = vmatprep.subr.bf16.mxu0 %v3983
    %4491 = vmatpush1.bf16.msra.mxu0 %v3982
    %4492 = vmatprep.subr.bf16.mxu0 %v3991
    %4493 = vmatpush1.bf16.msra.mxu0 %v3990
    %4494 = vmatprep.mubr.bf16.mxu0 %v2799
    %4495 = vmatmul.mubr.bf16.gmra.mrb[0].mxu0 %v2798
    %v4496 = vpop.f32.mrb[0].mxu0
    %v4497 = vadd.f32 %v3071, %v4496
    %v4498 = vpop.f32.mrb[0].mxu0
    %v4499 = vadd.f32 %v3075, %v4498
    %v4500 = vpop.f32.mrb[0].mxu0
    %v4501 = vpop.f32.mrb[0].mxu0
    %4502 = vdwg.mxu0
    %4503 = vmatprep.subr.bf16.mxu0 %v3999
    %4504 = vmatpush1.bf16.msra.mxu0 %v3998
    %4505 = vmatprep.subr.bf16.mxu0 %v4007
    %4506 = vmatpush1.bf16.msra.mxu0 %v4006
    %4507 = vmatprep.subr.bf16.mxu0 %v4015
    %4508 = vmatpush1.bf16.msra.mxu0 %v4014
    %4509 = vmatprep.subr.bf16.mxu0 %v4023
    %4510 = vmatpush1.bf16.msra.mxu0 %v4022
    %4511 = vmatprep.subr.bf16.mxu0 %v4031
    %4512 = vmatpush1.bf16.msra.mxu0 %v4030
    %4513 = vmatprep.subr.bf16.mxu0 %v4039
    %4514 = vmatpush1.bf16.msra.mxu0 %v4038
    %4515 = vmatprep.subr.bf16.mxu0 %v4047
    %4516 = vmatpush1.bf16.msra.mxu0 %v4046
    %4517 = vmatprep.subr.bf16.mxu0 %v4055
    %4518 = vmatpush1.bf16.msra.mxu0 %v4054
    %4519 = vmatprep.subr.bf16.mxu0 %v4063
    %4520 = vmatpush1.bf16.msra.mxu0 %v4062
    %4521 = vmatprep.subr.bf16.mxu0 %v4071
    %4522 = vmatpush1.bf16.msra.mxu0 %v4070
    %4523 = vmatprep.subr.bf16.mxu0 %v4079
    %4524 = vmatpush1.bf16.msra.mxu0 %v4078
    %4525 = vmatprep.subr.bf16.mxu0 %v4087
    %4526 = vmatpush1.bf16.msra.mxu0 %v4086
    %4527 = vmatprep.subr.bf16.mxu0 %v4095
    %4528 = vmatpush1.bf16.msra.mxu0 %v4094
    %4529 = vmatprep.subr.bf16.mxu0 %v4103
    %4530 = vmatpush1.bf16.msra.mxu0 %v4102
    %4531 = vmatprep.subr.bf16.mxu0 %v4111
    %4532 = vmatpush1.bf16.msra.mxu0 %v4110
    %4533 = vmatprep.subr.bf16.mxu0 %v4119
    %4534 = vmatpush1.bf16.msra.mxu0 %v4118
    %4535 = vmatprep.mubr.bf16.mxu0 %v2801
    %4536 = vmatmul.mubr.bf16.gmra.mrb[0].mxu0 %v2800
    %v4537 = vpop.f32.mrb[0].mxu0
    %v4538 = vadd.f32 %v4497, %v4537
    %v4539 = vpop.f32.mrb[0].mxu0
    %v4540 = vadd.f32 %v4499, %v4539
    %v4541 = vpop.f32.mrb[0].mxu0
    %v4542 = vpop.f32.mrb[0].mxu0
    %4543 = vdwg.mxu0
    %4544 = vmatprep.subr.bf16.mxu0 %v3873
    %4545 = vmatpush1.bf16.msra.mxu0 %v3872
    %4546 = vmatprep.subr.bf16.mxu0 %v3881
    %4547 = vmatpush1.bf16.msra.mxu0 %v3880
    %4548 = vmatprep.subr.bf16.mxu0 %v3889
    %4549 = vmatpush1.bf16.msra.mxu0 %v3888
    %4550 = vmatprep.subr.bf16.mxu0 %v3897
    %4551 = vmatpush1.bf16.msra.mxu0 %v3896
    %4552 = vmatprep.subr.bf16.mxu0 %v3905
    %4553 = vmatpush1.bf16.msra.mxu0 %v3904
    %4554 = vmatprep.subr.bf16.mxu0 %v3913
    %4555 = vmatpush1.bf16.msra.mxu0 %v3912
    %4556 = vmatprep.subr.bf16.mxu0 %v3921
    %4557 = vmatpush1.bf16.msra.mxu0 %v3920
    %4558 = vmatprep.subr.bf16.mxu0 %v3929
    %4559 = vmatpush1.bf16.msra.mxu0 %v3928
    %4560 = vmatprep.subr.bf16.mxu0 %v3937
    %4561 = vmatpush1.bf16.msra.mxu0 %v3936
    %4562 = vmatprep.subr.bf16.mxu0 %v3945
    %4563 = vmatpush1.bf16.msra.mxu0 %v3944
    %4564 = vmatprep.subr.bf16.mxu0 %v3953
    %4565 = vmatpush1.bf16.msra.mxu0 %v3952
    %4566 = vmatprep.subr.bf16.mxu0 %v3961
    %4567 = vmatpush1.bf16.msra.mxu0 %v3960
    %4568 = vmatprep.subr.bf16.mxu0 %v3969
    %4569 = vmatpush1.bf16.msra.mxu0 %v3968
    %4570 = vmatprep.subr.bf16.mxu0 %v3977
    %4571 = vmatpush1.bf16.msra.mxu0 %v3976
    %4572 = vmatprep.subr.bf16.mxu0 %v3985
    %4573 = vmatpush1.bf16.msra.mxu0 %v3984
    %4574 = vmatprep.subr.bf16.mxu0 %v3993
    %4575 = vmatpush1.bf16.msra.mxu0 %v3992
    %4576 = vmatprep.mubr.bf16.mxu0 %v2799
    %4577 = vmatmul.mubr.bf16.gmra.mrb[0].mxu0 %v2798
    %v4578 = vpop.f32.mrb[0].mxu0
    %v4579 = vadd.f32 %v3079, %v4578
    %v4580 = vpop.f32.mrb[0].mxu0
    %v4581 = vadd.f32 %v3083, %v4580
    %v4582 = vpop.f32.mrb[0].mxu0
    %v4583 = vpop.f32.mrb[0].mxu0
    %4584 = vdwg.mxu0
    %4585 = vmatprep.subr.bf16.mxu0 %v4001
    %4586 = vmatpush1.bf16.msra.mxu0 %v4000
    %4587 = vmatprep.subr.bf16.mxu0 %v4009
    %4588 = vmatpush1.bf16.msra.mxu0 %v4008
    %4589 = vmatprep.subr.bf16.mxu0 %v4017
    %4590 = vmatpush1.bf16.msra.mxu0 %v4016
    %4591 = vmatprep.subr.bf16.mxu0 %v4025
    %4592 = vmatpush1.bf16.msra.mxu0 %v4024
    %4593 = vmatprep.subr.bf16.mxu0 %v4033
    %4594 = vmatpush1.bf16.msra.mxu0 %v4032
    %4595 = vmatprep.subr.bf16.mxu0 %v4041
    %4596 = vmatpush1.bf16.msra.mxu0 %v4040
    %4597 = vmatprep.subr.bf16.mxu0 %v4049
    %4598 = vmatpush1.bf16.msra.mxu0 %v4048
    %4599 = vmatprep.subr.bf16.mxu0 %v4057
    %4600 = vmatpush1.bf16.msra.mxu0 %v4056
    %4601 = vmatprep.subr.bf16.mxu0 %v4065
    %4602 = vmatpush1.bf16.msra.mxu0 %v4064
    %4603 = vmatprep.subr.bf16.mxu0 %v4073
    %4604 = vmatpush1.bf16.msra.mxu0 %v4072
    %4605 = vmatprep.subr.bf16.mxu0 %v4081
    %4606 = vmatpush1.bf16.msra.mxu0 %v4080
    %4607 = vmatprep.subr.bf16.mxu0 %v4089
    %4608 = vmatpush1.bf16.msra.mxu0 %v4088
    %4609 = vmatprep.subr.bf16.mxu0 %v4097
    %4610 = vmatpush1.bf16.msra.mxu0 %v4096
    %4611 = vmatprep.subr.bf16.mxu0 %v4105
    %4612 = vmatpush1.bf16.msra.mxu0 %v4104
    %4613 = vmatprep.subr.bf16.mxu0 %v4113
    %4614 = vmatpush1.bf16.msra.mxu0 %v4112
    %4615 = vmatprep.subr.bf16.mxu0 %v4121
    %4616 = vmatpush1.bf16.msra.mxu0 %v4120
    %4617 = vmatprep.mubr.bf16.mxu0 %v2801
    %4618 = vmatmul.mubr.bf16.gmra.mrb[0].mxu0 %v2800
    %v4619 = vpop.f32.mrb[0].mxu0
    %v4620 = vadd.f32 %v4579, %v4619
    %v4621 = vpop.f32.mrb[0].mxu0
    %v4622 = vadd.f32 %v4581, %v4621
    %v4623 = vpop.f32.mrb[0].mxu0
    %v4624 = vpop.f32.mrb[0].mxu0
    %4625 = vdwg.mxu0
    %4626 = vmatprep.subr.bf16.mxu0 %v3875
    %4627 = vmatpush1.bf16.msra.mxu0 %v3874
    %4628 = vmatprep.subr.bf16.mxu0 %v3883
    %4629 = vmatpush1.bf16.msra.mxu0 %v3882
    %4630 = vmatprep.subr.bf16.mxu0 %v3891
    %4631 = vmatpush1.bf16.msra.mxu0 %v3890
    %4632 = vmatprep.subr.bf16.mxu0 %v3899
    %4633 = vmatpush1.bf16.msra.mxu0 %v3898
    %4634 = vmatprep.subr.bf16.mxu0 %v3907
    %4635 = vmatpush1.bf16.msra.mxu0 %v3906
    %4636 = vmatprep.subr.bf16.mxu0 %v3915
    %4637 = vmatpush1.bf16.msra.mxu0 %v3914
    %4638 = vmatprep.subr.bf16.mxu0 %v3923
    %4639 = vmatpush1.bf16.msra.mxu0 %v3922
    %4640 = vmatprep.subr.bf16.mxu0 %v3931
    %4641 = vmatpush1.bf16.msra.mxu0 %v3930
    %4642 = vmatprep.subr.bf16.mxu0 %v3939
    %4643 = vmatpush1.bf16.msra.mxu0 %v3938
    %4644 = vmatprep.subr.bf16.mxu0 %v3947
    %4645 = vmatpush1.bf16.msra.mxu0 %v3946
    %4646 = vmatprep.subr.bf16.mxu0 %v3955
    %4647 = vmatpush1.bf16.msra.mxu0 %v3954
    %4648 = vmatprep.subr.bf16.mxu0 %v3963
    %4649 = vmatpush1.bf16.msra.mxu0 %v3962
    %4650 = vmatprep.subr.bf16.mxu0 %v3971
    %4651 = vmatpush1.bf16.msra.mxu0 %v3970
    %4652 = vmatprep.subr.bf16.mxu0 %v3979
    %4653 = vmatpush1.bf16.msra.mxu0 %v3978
    %4654 = vmatprep.subr.bf16.mxu0 %v3987
    %4655 = vmatpush1.bf16.msra.mxu0 %v3986
    %4656 = vmatprep.subr.bf16.mxu0 %v3995
    %4657 = vmatpush1.bf16.msra.mxu0 %v3994
    %4658 = vmatprep.mubr.bf16.mxu0 %v2799
    %4659 = vmatmul.mubr.bf16.gmra.mrb[0].mxu0 %v2798
    %v4660 = vpop.f32.mrb[0].mxu0
    %v4661 = vadd.f32 %v3087, %v4660
    %v4662 = vpop.f32.mrb[0].mxu0
    %v4663 = vadd.f32 %v3091, %v4662
    %v4664 = vpop.f32.mrb[0].mxu0
    %v4665 = vpop.f32.mrb[0].mxu0
    %4666 = vdwg.mxu0
    %4667 = vmatprep.subr.bf16.mxu0 %v4003
    %4668 = vmatpush1.bf16.msra.mxu0 %v4002
    %4669 = vmatprep.subr.bf16.mxu0 %v4011
    %4670 = vmatpush1.bf16.msra.mxu0 %v4010
    %4671 = vmatprep.subr.bf16.mxu0 %v4019
    %4672 = vmatpush1.bf16.msra.mxu0 %v4018
    %4673 = vmatprep.subr.bf16.mxu0 %v4027
    %4674 = vmatpush1.bf16.msra.mxu0 %v4026
    %4675 = vmatprep.subr.bf16.mxu0 %v4035
    %4676 = vmatpush1.bf16.msra.mxu0 %v4034
    %4677 = vmatprep.subr.bf16.mxu0 %v4043
    %4678 = vmatpush1.bf16.msra.mxu0 %v4042
    %4679 = vmatprep.subr.bf16.mxu0 %v4051
    %4680 = vmatpush1.bf16.msra.mxu0 %v4050
    %4681 = vmatprep.subr.bf16.mxu0 %v4059
    %4682 = vmatpush1.bf16.msra.mxu0 %v4058
    %4683 = vmatprep.subr.bf16.mxu0 %v4067
    %4684 = vmatpush1.bf16.msra.mxu0 %v4066
    %4685 = vmatprep.subr.bf16.mxu0 %v4075
    %4686 = vmatpush1.bf16.msra.mxu0 %v4074
    %4687 = vmatprep.subr.bf16.mxu0 %v4083
    %4688 = vmatpush1.bf16.msra.mxu0 %v4082
    %4689 = vmatprep.subr.bf16.mxu0 %v4091
    %4690 = vmatpush1.bf16.msra.mxu0 %v4090
    %4691 = vmatprep.subr.bf16.mxu0 %v4099
    %4692 = vmatpush1.bf16.msra.mxu0 %v4098
    %4693 = vmatprep.subr.bf16.mxu0 %v4107
    %4694 = vmatpush1.bf16.msra.mxu0 %v4106
    %4695 = vmatprep.subr.bf16.mxu0 %v4115
    %4696 = vmatpush1.bf16.msra.mxu0 %v4114
    %4697 = vmatprep.subr.bf16.mxu0 %v4123
    %4698 = vmatpush1.bf16.msra.mxu0 %v4122
    %4699 = vmatprep.mubr.bf16.mxu0 %v2801
    %4700 = vmatmul.mubr.bf16.gmra.mrb[0].mxu0 %v2800
    %v4701 = vpop.f32.mrb[0].mxu0
    %v4702 = vadd.f32 %v4661, %v4701
    %v4703 = vpop.f32.mrb[0].mxu0
    %v4704 = vadd.f32 %v4663, %v4703
    %v4705 = vpop.f32.mrb[0].mxu0
    %v4706 = vpop.f32.mrb[0].mxu0
    %4707 = vdwg.mxu0
    %v4708 = vmul.f32 %v4456, 0.5
    %v4709 = vmul.f32 %v4458, 0.5
    %v4710 = vmul.f32 %v4538, 0.5
    %v4711 = vmul.f32 %v4540, 0.5
    %v4712 = vmul.f32 %v4620, 0.5
    %v4713 = vmul.f32 %v4622, 0.5
    %v4714 = vmul.f32 %v4702, 0.5
    %v4715 = vmul.f32 %v4704, 0.5
    %v4716 = vtanh.pop %v4708
    %v4717 = vtanh.pop %v4709
    %v4718 = vtanh.pop %v4710
    %v4719 = vtanh.pop %v4711
    %v4720 = vtanh.pop %v4712
    %v4721 = vtanh.pop %v4713
    %v4722 = vtanh.pop %v4714
    %v4723 = vtanh.pop %v4715
    %v4724 = vmul.f32 %v4716, 0.5
    %v4725 = vmul.f32 %v4717, 0.5
    %v4726 = vmul.f32 %v4718, 0.5
    %v4727 = vmul.f32 %v4719, 0.5
    %v4728 = vmul.f32 %v4720, 0.5
    %v4729 = vmul.f32 %v4721, 0.5
    %v4730 = vmul.f32 %v4722, 0.5
    %v4731 = vmul.f32 %v4723, 0.5
    %v4732 = vadd.f32 %v4724, 0.5
    %v4733 = vadd.f32 %v4725, 0.5
    %v4734 = vadd.f32 %v4726, 0.5
    %v4735 = vadd.f32 %v4727, 0.5
    %v4736 = vadd.f32 %v4728, 0.5
    %v4737 = vadd.f32 %v4729, 0.5
    %v4738 = vadd.f32 %v4730, 0.5
    %v4739 = vadd.f32 %v4731, 0.5
    %4740 = vst [vmem:[#allocation17] sm:$0xff] %v4732
    %4741 = vst [vmem:[#allocation17 + $0x8] sm:$0xff] %v4733
    %4742 = vst [vmem:[#allocation17 + $0x10] sm:$0xff] %v4734
    %4743 = vst [vmem:[#allocation17 + $0x18] sm:$0xff] %v4735
    %4744 = vst [vmem:[#allocation17 + $0x20] sm:$0xff] %v4736
    %4745 = vst [vmem:[#allocation17 + $0x28] sm:$0xff] %v4737
    %4746 = vst [vmem:[#allocation17 + $0x30] sm:$0xff] %v4738
    %4747 = vst [vmem:[#allocation17 + $0x38] sm:$0xff] %v4739
    // Predicated region
    $region82: #{tpu_custom_call.1} parent=1 // pred_check
      _
    $region83: #{tpu_custom_call.1} parent=1 // pred_check_branch
      %4749 = sbr.rel (0) target = $region85
    $region84: #{tpu_custom_call.1} parent=1 // pred_region
      %s4751 = ssub.s32 1024, 1024
      %4752 = vsyncadd [#allocation4], %s4751
      %s4754 = sshll.u32 [#allocation17], 4
      %s4755 = int_to_ptr.vmem [resolvable:$true] %s4754
      %4757 = dma.vmem_to_hbm [thread:$0]  %s4755, 1024, %s11, [#allocation4]
    $region85: #{tpu_custom_call.1} parent=1 // pred_fallthru
      _
    // Predicated region
    $region86: #{tpu_custom_call.1} parent=1 // pred_check
      _
    $region87: #{tpu_custom_call.1} parent=1 // pred_check_branch
      %4759 = sbr.rel (0) target = $region89
    $region88: #{tpu_custom_call.1} parent=1 // pred_region
      %s4761 = ssub.s32 128, 128
      %4762 = vsyncadd [#allocation19], %s4761
      %s4764 = sshll.u32 [#allocation18], 4
      %s4765 = int_to_ptr.vmem [resolvable:$true] %s4764
      %4767 = dma.vmem_to_hbm [thread:$0]  %s4765, 128, %s12, [#allocation19]
    $region89: #{tpu_custom_call.1} parent=1 // pred_fallthru
      _
    // Predicated region
    $region90: #{tpu_custom_call.1} parent=1 // pred_check
      _
    $region91: #{tpu_custom_call.1} parent=1 // pred_check_branch
      %4769 = sbr.rel (0) target = $region93
    $region92: #{tpu_custom_call.1} parent=1 // pred_region
      %4770 = dma.done [#allocation4], 1024
    $region93: #{tpu_custom_call.1} parent=1 // pred_fallthru
      _
    // Predicated region
    $region94: #{tpu_custom_call.1} parent=1 // pred_check
      _
    $region95: #{tpu_custom_call.1} parent=1 // pred_check_branch
      %4772 = sbr.rel (0) target = $region97
    $region96: #{tpu_custom_call.1} parent=1 // pred_region
      %4773 = dma.done [#allocation19], 128
    $region97: #{tpu_custom_call.1} parent=1 // pred_fallthru
      _
    %4774 = vsyncpa [#allocation3], 1
    %4775 = vsyncpa [#allocation6], 1
    %4776 = vsyncpa [#allocation9], 1
    %4777 = vsyncpa [#allocation12], 1
    %4778 = vsyncpa [#allocation15], 1
    %4779 = vsyncpa [#allocation4], 1
    %4780 = vsyncpa [#allocation19], 1

</llo_original>
